<compile_context>
chip_gen: v5e
topology: v5e:2x2
jax: 0.10.0
libtpu: 0.0.40
codegen_flags: <defaults>
</compile_context>

<pallas_src>
import functools
import math

import jax
import jax.numpy as jnp
from jax import lax
from jax.experimental import pallas as pl
from jax.experimental.pallas import tpu as pltpu

LN_EPS = 1e-5
MASK_VALUE = -1e30   # bounded mask value (finite after row-max subtraction)


def _round_up(x, m):
    return ((x + m - 1) // m) * m


def _layernorm(v, gamma, beta):
    mu = jnp.mean(v, axis=-1, keepdims=True)
    var = jnp.mean((v - mu) ** 2, axis=-1, keepdims=True)
    return (v - mu) * lax.rsqrt(var + LN_EPS) * gamma + beta


def _gelu_tanh(v):
    # GELU(approximate='tanh')
    c = math.sqrt(2.0 / math.pi)
    return 0.5 * v * (1.0 + jnp.tanh(c * (v + 0.044715 * v * v * v)))


def block_kernel(x_ref,
                 ln1g_ref, ln1b_ref,
                 wqkv_ref, bqkv_ref,
                 wproj_ref, bproj_ref,
                 ln2g_ref, ln2b_ref,
                 w1_ref, b1_ref,
                 w2_ref, b2_ref,
                 out_ref,
                 q_cache, k_cache, v_cache,
                 *, num_heads: int, q_tile: int):
    H = num_heads
    TQ = q_tile
    qi = pl.program_id(1)

    Tp = x_ref.shape[1]          # padded sequence length (full block per batch elt)
    C = x_ref.shape[2]
    Dh = C // H

    # ---- once per batch element: LN1 over full sequence + fused QKV projection ----
    @pl.when(qi == 0)
    def _():
        x_full = x_ref[0].astype(jnp.float32)                                 # (Tp, C)
        h_full = _layernorm(x_full, ln1g_ref[0], ln1b_ref[0]).astype(jnp.bfloat16)
        qkv = jnp.dot(h_full, wqkv_ref[...],
                      preferred_element_type=jnp.float32) + bqkv_ref[0]       # (Tp, 3C)
        qkv = qkv.astype(jnp.bfloat16)   # post-bias bf16 (softmax scale pre-folded in W_q)
        for h in range(H):               # static unroll: split heads into cached slabs
            q_cache[h] = qkv[:, h * Dh:(h + 1) * Dh]
            k_cache[h] = qkv[:, C + h * Dh:C + (h + 1) * Dh]
            v_cache[h] = qkv[:, 2 * C + h * Dh:2 * C + (h + 1) * Dh]

    # ---- per query tile (slice from the resident full-sequence block) ----
    q_start = pl.multiple_of(qi * TQ, TQ)
    x_q = x_ref[0, pl.ds(q_start, TQ), :].astype(jnp.float32)                 # (TQ, C)

    q_t = q_cache[:, pl.ds(q_start, TQ), :]                                   # (H, TQ, Dh)
    k_all = k_cache[...]                                                      # (H, Tp, Dh)
    v_all = v_cache[...]                                                      # (H, Tp, Dh)

    # scores (f32 accumulation); scale already folded into W_q host-side
    s = jnp.einsum("hqd,hkd->hqk", q_t, k_all,
                   preferred_element_type=jnp.float32)                        # (H, TQ, Tp)

    # causal mask for this query tile only (prefix_length = 0)
    row = q_start + lax.broadcasted_iota(jnp.int32, (TQ, Tp), 0)
    col = lax.broadcasted_iota(jnp.int32, (TQ, Tp), 1)
    s = jnp.where((col <= row)[None], s, MASK_VALUE)

    # softmax (f32 stats, EUP reciprocal)
    m = jnp.max(s, axis=-1, keepdims=True)
    p = jnp.exp(s - m)
    p = p * pl.reciprocal(jnp.sum(p, axis=-1, keepdims=True), approx=True)

    # PV (f32 accumulation)
    o = jnp.einsum("hqk,hkd->hqd", p.astype(jnp.bfloat16), v_all,
                   preferred_element_type=jnp.float32)                        # (H, TQ, Dh)

    # merge heads along lanes -> single full-width output projection
    o_merged = jnp.concatenate([o[h] for h in range(H)], axis=-1)             # (TQ, C)
    attn_out = jnp.dot(o_merged.astype(jnp.bfloat16), wproj_ref[...],
                       preferred_element_type=jnp.float32) + bproj_ref[0]

    x1 = x_q + attn_out                  # dropout_1 is identity (eval)

    # ---- LayerNorm 2 + MLP + residual ----
    h2 = _layernorm(x1, ln2g_ref[0], ln2b_ref[0]).astype(jnp.bfloat16)
    z = jnp.dot(h2, w1_ref[...], preferred_element_type=jnp.float32) + b1_ref[0]
    z = _gelu_tanh(z).astype(jnp.bfloat16)
    z = jnp.dot(z, w2_ref[...], preferred_element_type=jnp.float32) + b2_ref[0]

    out_ref[0] = (x1 + z).astype(out_ref.dtype)   # dropout_2 is identity (eval)


def _vmem_cap_bytes():
    """Generation-aware VMEM cap with headroom (v7x: 64 MiB phys, v5e/v6e: 128 MiB)."""
    try:
        cap = int(pltpu.get_tpu_info().vmem_capacity_bytes)
    except Exception:
        cap = 64 * 2 ** 20          # conservative fallback (v7x per-core size)
    return int(cap * 0.78)          # leave ~22% headroom for compiler scratch


def _vmem_estimate(T_pad, TQ, C, H):
    """Rough upper bound on VMEM use (bytes) for the chosen tiles; hint only."""
    f32, bf16 = 4, 2
    Dh = C // H
    Dh_pad = _round_up(Dh, 128)                       # lane padding of per-head caches
    hidden = 4 * C
    weights = 2 * (3 * C * C + C * C + C * hidden + hidden * C) * bf16   # assume 2x buffered
    biases = (3 * C + hidden + 8 * C) * f32
    caches = 3 * H * T_pad * Dh_pad * bf16
    blocks = 2 * T_pad * C * f32 + 2 * TQ * C * f32
    qkv_once = T_pad * C * (f32 + bf16) + T_pad * 3 * C * (f32 + bf16)
    per_tile = (3 * H * TQ * max(T_pad, 128) * f32     # scores / probs / temps
                + H * TQ * Dh_pad * f32                # per-head PV output
                + 2 * TQ * hidden * f32                # MLP hidden
                + 8 * TQ * C * f32)                    # residuals / misc
    return int(1.3 * (weights + biases + caches + blocks + qkv_once + per_tile))


def block_forward(x, params, num_heads, q_tile=None):
    B, T, C = x.shape
    H = num_heads
    assert C % H == 0, "embed_dim must be divisible by num_heads"
    Dh = C // H
    hidden = 4 * C
    bf16 = jnp.bfloat16

    vmem_cap = _vmem_cap_bytes()

    # ---- query-tile policy (keep live score tensors bounded relative to VMEM cap) ----
    if q_tile is None:
        q_tile = 256
    q_tile = max(8, _round_up(min(q_tile, _round_up(T, 8)), 8))
    while q_tile > 8 and 3 * H * q_tile * _round_up(T, q_tile) * 4 > 0.4 * vmem_cap:
        q_tile = max(8, _round_up(q_tile // 2, 8))
    TQ = q_tile
    T_pad = _round_up(T, TQ)
    n_q = T_pad // TQ

    # Pad T instead of falling back to a full-sequence tile: padded key rows are
    # causally masked for every real query row; padded query rows are sliced off.
    x_in = x if T_pad == T else jnp.pad(x, ((0, 0), (0, T_pad - T), (0, 0)))

    # ---- host-side weight prep (free): fused QKV, softmax scale folded into W_q ----
    scale = Dh ** (-0.5)
    col_scale = jnp.concatenate(
        [jnp.full((C,), scale, jnp.float32), jnp.ones((2 * C,), jnp.float32)])
    w_qkv = (params["w_qkv"].astype(jnp.float32) * col_scale[None, :]).astype(bf16)
    b_qkv = params["b_qkv"].astype(jnp.float32) * col_scale[None, :]
    w_proj = params["w_proj"].astype(bf16)
    w1 = params["w1"].astype(bf16)
    w2 = params["w2"].astype(bf16)

    vmem_limit = int(min(max(_vmem_estimate(T_pad, TQ, C, H), 8 * 2 ** 20), vmem_cap))

    # Advisory cost estimate for XLA scheduling around the custom call.
    flops = int(B * T_pad * C * (24 * C + 4 * T_pad))
    transcendentals = int(B * H * T_pad * T_pad + B * T_pad * hidden)
    bytes_accessed = int(2 * B * T_pad * C * 4
                         + (3 * C * C + C * C + 2 * C * hidden) * 2)

    def _make_call(single_buffer_weights):
        def const_spec(shape):
            # Constant index map => DMA'd once; single-buffer to halve weight residency.
            if single_buffer_weights:
                return pl.BlockSpec(shape, lambda b, qi: (0,) * len(shape),
                                    pipeline_mode=pl.Buffered(1))
            return pl.BlockSpec(shape, lambda b, qi: (0,) * len(shape))

        in_specs = [
            pl.BlockSpec((1, T_pad, C), lambda b, qi: (b, 0, 0)),   # x: full seq / batch elt
            const_spec((1, C)), const_spec((1, C)),                 # ln1 gamma / beta
            const_spec((C, 3 * C)), const_spec((1, 3 * C)),         # fused qkv W / b
            const_spec((C, C)), const_spec((1, C)),                 # proj W / b
            const_spec((1, C)), const_spec((1, C)),                 # ln2 gamma / beta
            const_spec((C, hidden)), const_spec((1, hidden)),       # fc1 W / b
            const_spec((hidden, C)), const_spec((1, C)),            # fc2 W / b
        ]

        kernel = functools.partial(block_kernel, num_heads=H, q_tile=TQ)
        return pl.pallas_call(
            kernel,
            out_shape=jax.ShapeDtypeStruct((B, T_pad, C), x.dtype),
            grid_spec=pltpu.PrefetchScalarGridSpec(
                num_scalar_prefetch=0,
                grid=(B, n_q),
                in_specs=in_specs,
                out_specs=pl.BlockSpec((1, TQ, C), lambda b, qi: (b, qi, 0)),
                scratch_shapes=[
                    pltpu.VMEM((H, T_pad, Dh), bf16),   # Q cache (per batch element)
                    pltpu.VMEM((H, T_pad, Dh), bf16),   # K cache
                    pltpu.VMEM((H, T_pad, Dh), bf16),   # V cache
                ],
            ),
            compiler_params=pltpu.CompilerParams(
                dimension_semantics=("parallel", "arbitrary"),
                vmem_limit_bytes=vmem_limit),
            cost_estimate=pl.CostEstimate(
                flops=flops, transcendentals=transcendentals,
                bytes_accessed=bytes_accessed),
        )

    args = (x_in,
            params["ln1_g"], params["ln1_b"],
            w_qkv, b_qkv,
            w_proj, params["b_proj"],
            params["ln2_g"], params["ln2_b"],
            w1, params["b1"], w2, params["b2"])

    try:
        out = jax.block_until_ready(_make_call(True)(*args))
    except Exception:
        # TODO(synk): fallback if pipeline_mode=pl.Buffered(1) is rejected by this build.
        out = jax.block_until_ready(_make_call(False)(*args))

    return out if T_pad == T else out[:, :T, :]


# ---- pure-JAX reference (f32) for verification ----
def block_reference(x, params, num_heads):
    B, T, C = x.shape
    Dh = C // num_heads
    scale = Dh ** (-0.5)

    def ln(v, g, b):
        mu = jnp.mean(v, axis=-1, keepdims=True)
        var = jnp.mean((v - mu) ** 2, axis=-1, keepdims=True)
        return (v - mu) / jnp.sqrt(var + LN_EPS) * g + b

    h = ln(x, params["ln1_g"][0], params["ln1_b"][0])
    qkv = h @ params["w_qkv"] + params["b_qkv"][0]
    qkv = qkv.reshape(B, T, 3, num_heads, Dh).transpose(2, 0, 3, 1, 4)
    q, k, v = qkv[0], qkv[1], qkv[2]                      # (B, H, T, Dh)
    attn = jnp.einsum("bhtd,bhsd->bhts", q, k) * scale
    causal = jnp.tril(jnp.ones((T, T), dtype=bool))
    attn = jnp.where(causal[None, None], attn, -jnp.finfo(jnp.float32).max)
    attn = jax.nn.softmax(attn, axis=-1)
    o = jnp.einsum("bhts,bhsd->bhtd", attn, v).transpose(0, 2, 1, 3).reshape(B, T, C)
    o = o @ params["w_proj"] + params["b_proj"][0]
    x1 = x + o
    h2 = ln(x1, params["ln2_g"][0], params["ln2_b"][0])
    z = h2 @ params["w1"] + params["b1"][0]
    c = math.sqrt(2.0 / math.pi)
    z = 0.5 * z * (1.0 + jnp.tanh(c * (z + 0.044715 * z ** 3)))
    z = z @ params["w2"] + params["b2"][0]
    return x1 + z


def make_params(key, embed_dim, widening_factor=4, init_scale=0.02):
    C = embed_dim
    hidden = widening_factor * C
    ks = jax.random.split(key, 4)

    # variance_scaling-style fan-in normal init; biases zero, LN gamma=1 / beta=0.
    def vs(k, in_dim, out_dim):
        std = math.sqrt(init_scale / in_dim)
        return (std * jax.random.normal(k, (in_dim, out_dim))).astype(jnp.float32)

    return {
        "ln1_g": jnp.ones((1, C), jnp.float32),
        "ln1_b": jnp.zeros((1, C), jnp.float32),
        "w_qkv": vs(ks[0], C, 3 * C),
        "b_qkv": jnp.zeros((1, 3 * C), jnp.float32),
        "w_proj": vs(ks[1], C, C),
        "b_proj": jnp.zeros((1, C), jnp.float32),
        "ln2_g": jnp.ones((1, C), jnp.float32),
        "ln2_b": jnp.zeros((1, C), jnp.float32),
        "w1": vs(ks[2], C, hidden),
        "b1": jnp.zeros((1, hidden), jnp.float32),
        "w2": vs(ks[3], hidden, C),
        "b2": jnp.zeros((1, C), jnp.float32),
    }


if __name__ == "__main__":
    # Small but lane-dense shapes: C multiple of 128, T multiple of the 8-row tile.
    B, T, C = 2, 16, 128
    num_heads = 4

    key = jax.random.PRNGKey(0)
    kx, kp = jax.random.split(key)
    x = jax.random.normal(kx, (B, T, C), dtype=jnp.float32)
    params = make_params(kp, C)

    # aligned T: grid = (2, 2), exercises the per-batch K/V cache across query tiles
    out = jax.block_until_ready(block_forward(x, params, num_heads, q_tile=8))
    ref = block_reference(x, params, num_heads)
    assert out.shape == (B, T, C)
    max_err = float(jnp.max(jnp.abs(out - ref)))
    assert jnp.allclose(out, ref, atol=2e-2, rtol=2e-2), \
        f"mismatch vs reference (aligned T, max abs err {max_err})"

    # ragged T: exercises the wrapper-side padding path (T=12 -> T_pad=16)
    x2 = x[:, :12, :]
    out2 = jax.block_until_ready(block_forward(x2, params, num_heads, q_tile=8))
    ref2 = block_reference(x2, params, num_heads)
    assert out2.shape == x2.shape
    max_err2 = float(jnp.max(jnp.abs(out2 - ref2)))
    assert jnp.allclose(out2, ref2, atol=2e-2, rtol=2e-2), \
        f"mismatch vs reference (padded T, max abs err {max_err2})"

    # TODO(synk): dropout is identity (inference mode); training-mode dropout would
    # need pltpu.prng_* based masking.
    print("KERNEL_OK")
</pallas_src>

<mosaic_0001>
module attributes {stable_mosaic.version = 11 : i64} {
  func.func @block_kernel(%arg0: i32, %arg1: i32, %arg2: memref<1x16x128xf32, #tpu.memory_space<vmem>>, %arg3: memref<1x128xf32, #tpu.memory_space<vmem>>, %arg4: memref<1x128xf32, #tpu.memory_space<vmem>>, %arg5: memref<128x384xbf16, #tpu.memory_space<vmem>>, %arg6: memref<1x384xf32, #tpu.memory_space<vmem>>, %arg7: memref<128x128xbf16, #tpu.memory_space<vmem>>, %arg8: memref<1x128xf32, #tpu.memory_space<vmem>>, %arg9: memref<1x128xf32, #tpu.memory_space<vmem>>, %arg10: memref<1x128xf32, #tpu.memory_space<vmem>>, %arg11: memref<128x512xbf16, #tpu.memory_space<vmem>>, %arg12: memref<1x512xf32, #tpu.memory_space<vmem>>, %arg13: memref<512x128xbf16, #tpu.memory_space<vmem>>, %arg14: memref<1x128xf32, #tpu.memory_space<vmem>>, %arg15: memref<1x8x128xf32, #tpu.memory_space<vmem>>, %arg16: memref<4x16x32xbf16, #tpu.memory_space<vmem>>, %arg17: memref<4x16x32xbf16, #tpu.memory_space<vmem>>, %arg18: memref<4x16x32xbf16, #tpu.memory_space<vmem>>) attributes {dimension_semantics = [#tpu.dimension_semantics<parallel>, #tpu.dimension_semantics<arbitrary>], iteration_bounds = array<i64: 2, 2>, scalar_prefetch = 0 : i64, scratch_operands = 3 : i64, tpu.core_type = #tpu.core_type<tc>, window_params = [{transform_indices = @transform_0, window_bounds = array<i64: 1, 16, 128>}, {pipeline_mode = #tpu.pipeline_mode<synchronous>, transform_indices = @transform_1, window_bounds = array<i64: 1, 128>}, {pipeline_mode = #tpu.pipeline_mode<synchronous>, transform_indices = @transform_2, window_bounds = array<i64: 1, 128>}, {pipeline_mode = #tpu.pipeline_mode<synchronous>, transform_indices = @transform_3, window_bounds = array<i64: 128, 384>}, {pipeline_mode = #tpu.pipeline_mode<synchronous>, transform_indices = @transform_4, window_bounds = array<i64: 1, 384>}, {pipeline_mode = #tpu.pipeline_mode<synchronous>, transform_indices = @transform_5, window_bounds = array<i64: 128, 128>}, {pipeline_mode = #tpu.pipeline_mode<synchronous>, transform_indices = @transform_6, window_bounds = array<i64: 1, 128>}, {pipeline_mode = #tpu.pipeline_mode<synchronous>, transform_indices = @transform_7, window_bounds = array<i64: 1, 128>}, {pipeline_mode = #tpu.pipeline_mode<synchronous>, transform_indices = @transform_8, window_bounds = array<i64: 1, 128>}, {pipeline_mode = #tpu.pipeline_mode<synchronous>, transform_indices = @transform_9, window_bounds = array<i64: 128, 512>}, {pipeline_mode = #tpu.pipeline_mode<synchronous>, transform_indices = @transform_10, window_bounds = array<i64: 1, 512>}, {pipeline_mode = #tpu.pipeline_mode<synchronous>, transform_indices = @transform_11, window_bounds = array<i64: 512, 128>}, {pipeline_mode = #tpu.pipeline_mode<synchronous>, transform_indices = @transform_12, window_bounds = array<i64: 1, 128>}, {transform_indices = @transform_13, window_bounds = array<i64: 1, 8, 128>}]} {
    %c0_i32 = arith.constant 0 : i32
    %0 = arith.cmpi eq, %arg1, %c0_i32 : i32
    %1 = arith.extui %0 : i1 to i32
    %c0_i32_0 = arith.constant 0 : i32
    %2 = arith.cmpi ne, %1, %c0_i32_0 : i32
    scf.if %2 {
      %c0_45 = arith.constant 0 : index
      %c0_46 = arith.constant 0 : index
      %c0_47 = arith.constant 0 : index
      %114 = vector.load %arg2[%c0_45, %c0_46, %c0_47] : memref<1x16x128xf32, #tpu.memory_space<vmem>>, vector<1x16x128xf32>
      %115 = vector.shape_cast %114 : vector<1x16x128xf32> to vector<16x128xf32>
      %c0_48 = arith.constant 0 : index
      %c0_49 = arith.constant 0 : index
      %116 = vector.load %arg3[%c0_48, %c0_49] : memref<1x128xf32, #tpu.memory_space<vmem>>, vector<1x128xf32>
      %117 = vector.shape_cast %116 : vector<1x128xf32> to vector<128xf32>
      %c0_50 = arith.constant 0 : index
      %c0_51 = arith.constant 0 : index
      %118 = vector.load %arg4[%c0_50, %c0_51] : memref<1x128xf32, #tpu.memory_space<vmem>>, vector<1x128xf32>
      %119 = vector.shape_cast %118 : vector<1x128xf32> to vector<128xf32>
      %cst_52 = arith.constant dense<0.000000e+00> : vector<16xf32>
      %120 = vector.multi_reduction <add>, %115, %cst_52 [1] : vector<16x128xf32> to vector<16xf32>
      %121 = vector.shape_cast %120 : vector<16xf32> to vector<16x1xf32>
      %cst_53 = arith.constant 1.280000e+02 : f32
      %122 = vector.broadcast %cst_53 : f32 to vector<16x1xf32>
      %123 = arith.divf %121, %122 : vector<16x1xf32>
      %124 = vector.broadcast %123 : vector<16x1xf32> to vector<16x128xf32>
      %125 = arith.subf %115, %124 : vector<16x128xf32>
      %126 = arith.mulf %125, %125 : vector<16x128xf32>
      %cst_54 = arith.constant dense<0.000000e+00> : vector<16xf32>
      %127 = vector.multi_reduction <add>, %126, %cst_54 [1] : vector<16x128xf32> to vector<16xf32>
      %128 = vector.shape_cast %127 : vector<16xf32> to vector<16x1xf32>
      %cst_55 = arith.constant 1.280000e+02 : f32
      %129 = vector.broadcast %cst_55 : f32 to vector<16x1xf32>
      %130 = arith.divf %128, %129 : vector<16x1xf32>
      %131 = vector.broadcast %123 : vector<16x1xf32> to vector<16x128xf32>
      %132 = arith.subf %115, %131 : vector<16x128xf32>
      %cst_56 = arith.constant 9.99999974E-6 : f32
      %133 = vector.broadcast %cst_56 : f32 to vector<16x1xf32>
      %134 = arith.addf %130, %133 : vector<16x1xf32>
      %135 = math.rsqrt %134 : vector<16x1xf32>
      %136 = vector.broadcast %135 : vector<16x1xf32> to vector<16x128xf32>
      %137 = arith.mulf %132, %136 : vector<16x128xf32>
      %138 = vector.shape_cast %117 : vector<128xf32> to vector<1x128xf32>
      %139 = vector.broadcast %138 : vector<1x128xf32> to vector<16x128xf32>
      %140 = arith.mulf %137, %139 : vector<16x128xf32>
      %141 = vector.shape_cast %119 : vector<128xf32> to vector<1x128xf32>
      %142 = vector.broadcast %141 : vector<1x128xf32> to vector<16x128xf32>
      %143 = arith.addf %140, %142 : vector<16x128xf32>
      %144 = arith.truncf %143 : vector<16x128xf32> to vector<16x128xbf16>
      %c0_57 = arith.constant 0 : index
      %c0_58 = arith.constant 0 : index
      %145 = vector.load %arg5[%c0_57, %c0_58] : memref<128x384xbf16, #tpu.memory_space<vmem>>, vector<128x384xbf16>
      %cst_59 = arith.constant dense<0.000000e+00> : vector<16x384xf32>
      %146 = tpu.matmul %144, %145, %cst_59 {dimension_numbers = #tpu.dot_dimension_numbers<[1], [0], [0], [1], [0, 0, 1, 1], [], []>} : vector<16x128xbf16>, vector<128x384xbf16>, vector<16x384xf32> -> vector<16x384xf32>
      %c0_60 = arith.constant 0 : index
      %c0_61 = arith.constant 0 : index
      %147 = vector.load %arg6[%c0_60, %c0_61] : memref<1x384xf32, #tpu.memory_space<vmem>>, vector<1x384xf32>
      %148 = vector.shape_cast %147 : vector<1x384xf32> to vector<384xf32>
      %149 = vector.shape_cast %148 : vector<384xf32> to vector<1x384xf32>
      %150 = vector.broadcast %149 : vector<1x384xf32> to vector<16x384xf32>
      %151 = arith.addf %146, %150 : vector<16x384xf32>
      %152 = arith.truncf %151 : vector<16x384xf32> to vector<16x384xbf16>
      %153 = vector.extract_strided_slice %152 {offsets = [0, 0], sizes = [16, 32], strides = [1, 1]} : vector<16x384xbf16> to vector<16x32xbf16>
      %c0_62 = arith.constant 0 : index
      %c0_63 = arith.constant 0 : index
      %c0_64 = arith.constant 0 : index
      %154 = vector.load %arg16[%c0_62, %c0_63, %c0_64] : memref<4x16x32xbf16, #tpu.memory_space<vmem>>, vector<1x16x32xbf16>
      %155 = vector.shape_cast %154 : vector<1x16x32xbf16> to vector<16x32xbf16>
      %156 = vector.shape_cast %153 : vector<16x32xbf16> to vector<1x16x32xbf16>
      tpu.vector_store %arg16[%c0_62, %c0_63, %c0_64], %156 {strides = array<i32>} : memref<4x16x32xbf16, #tpu.memory_space<vmem>>, vector<1x16x32xbf16>,
      %157 = vector.extract_strided_slice %152 {offsets = [0, 128], sizes = [16, 32], strides = [1, 1]} : vector<16x384xbf16> to vector<16x32xbf16>
      %c0_65 = arith.constant 0 : index
      %c0_66 = arith.constant 0 : index
      %c0_67 = arith.constant 0 : index
      %158 = vector.load %arg17[%c0_65, %c0_66, %c0_67] : memref<4x16x32xbf16, #tpu.memory_space<vmem>>, vector<1x16x32xbf16>
      %159 = vector.shape_cast %158 : vector<1x16x32xbf16> to vector<16x32xbf16>
      %160 = vector.shape_cast %157 : vector<16x32xbf16> to vector<1x16x32xbf16>
      tpu.vector_store %arg17[%c0_65, %c0_66, %c0_67], %160 {strides = array<i32>} : memref<4x16x32xbf16, #tpu.memory_space<vmem>>, vector<1x16x32xbf16>,
      %161 = vector.extract_strided_slice %152 {offsets = [0, 256], sizes = [16, 32], strides = [1, 1]} : vector<16x384xbf16> to vector<16x32xbf16>
      %c0_68 = arith.constant 0 : index
      %c0_69 = arith.constant 0 : index
      %c0_70 = arith.constant 0 : index
      %162 = vector.load %arg18[%c0_68, %c0_69, %c0_70] : memref<4x16x32xbf16, #tpu.memory_space<vmem>>, vector<1x16x32xbf16>
      %163 = vector.shape_cast %162 : vector<1x16x32xbf16> to vector<16x32xbf16>
      %164 = vector.shape_cast %161 : vector<16x32xbf16> to vector<1x16x32xbf16>
      tpu.vector_store %arg18[%c0_68, %c0_69, %c0_70], %164 {strides = array<i32>} : memref<4x16x32xbf16, #tpu.memory_space<vmem>>, vector<1x16x32xbf16>,
      %165 = vector.extract_strided_slice %152 {offsets = [0, 32], sizes = [16, 32], strides = [1, 1]} : vector<16x384xbf16> to vector<16x32xbf16>
      %c1 = arith.constant 1 : index
      %c0_71 = arith.constant 0 : index
      %c0_72 = arith.constant 0 : index
      %166 = vector.load %arg16[%c1, %c0_71, %c0_72] : memref<4x16x32xbf16, #tpu.memory_space<vmem>>, vector<1x16x32xbf16>
      %167 = vector.shape_cast %166 : vector<1x16x32xbf16> to vector<16x32xbf16>
      %168 = vector.shape_cast %165 : vector<16x32xbf16> to vector<1x16x32xbf16>
      tpu.vector_store %arg16[%c1, %c0_71, %c0_72], %168 {strides = array<i32>} : memref<4x16x32xbf16, #tpu.memory_space<vmem>>, vector<1x16x32xbf16>,
      %169 = vector.extract_strided_slice %152 {offsets = [0, 160], sizes = [16, 32], strides = [1, 1]} : vector<16x384xbf16> to vector<16x32xbf16>
      %c1_73 = arith.constant 1 : index
      %c0_74 = arith.constant 0 : index
      %c0_75 = arith.constant 0 : index
      %170 = vector.load %arg17[%c1_73, %c0_74, %c0_75] : memref<4x16x32xbf16, #tpu.memory_space<vmem>>, vector<1x16x32xbf16>
      %171 = vector.shape_cast %170 : vector<1x16x32xbf16> to vector<16x32xbf16>
      %172 = vector.shape_cast %169 : vector<16x32xbf16> to vector<1x16x32xbf16>
      tpu.vector_store %arg17[%c1_73, %c0_74, %c0_75], %172 {strides = array<i32>} : memref<4x16x32xbf16, #tpu.memory_space<vmem>>, vector<1x16x32xbf16>,
      %173 = vector.extract_strided_slice %152 {offsets = [0, 288], sizes = [16, 32], strides = [1, 1]} : vector<16x384xbf16> to vector<16x32xbf16>
      %c1_76 = arith.constant 1 : index
      %c0_77 = arith.constant 0 : index
      %c0_78 = arith.constant 0 : index
      %174 = vector.load %arg18[%c1_76, %c0_77, %c0_78] : memref<4x16x32xbf16, #tpu.memory_space<vmem>>, vector<1x16x32xbf16>
      %175 = vector.shape_cast %174 : vector<1x16x32xbf16> to vector<16x32xbf16>
      %176 = vector.shape_cast %173 : vector<16x32xbf16> to vector<1x16x32xbf16>
      tpu.vector_store %arg18[%c1_76, %c0_77, %c0_78], %176 {strides = array<i32>} : memref<4x16x32xbf16, #tpu.memory_space<vmem>>, vector<1x16x32xbf16>,
      %177 = vector.extract_strided_slice %152 {offsets = [0, 64], sizes = [16, 32], strides = [1, 1]} : vector<16x384xbf16> to vector<16x32xbf16>
      %c2 = arith.constant 2 : index
      %c0_79 = arith.constant 0 : index
      %c0_80 = arith.constant 0 : index
      %178 = vector.load %arg16[%c2, %c0_79, %c0_80] : memref<4x16x32xbf16, #tpu.memory_space<vmem>>, vector<1x16x32xbf16>
      %179 = vector.shape_cast %178 : vector<1x16x32xbf16> to vector<16x32xbf16>
      %180 = vector.shape_cast %177 : vector<16x32xbf16> to vector<1x16x32xbf16>
      tpu.vector_store %arg16[%c2, %c0_79, %c0_80], %180 {strides = array<i32>} : memref<4x16x32xbf16, #tpu.memory_space<vmem>>, vector<1x16x32xbf16>,
      %181 = vector.extract_strided_slice %152 {offsets = [0, 192], sizes = [16, 32], strides = [1, 1]} : vector<16x384xbf16> to vector<16x32xbf16>
      %c2_81 = arith.constant 2 : index
      %c0_82 = arith.constant 0 : index
      %c0_83 = arith.constant 0 : index
      %182 = vector.load %arg17[%c2_81, %c0_82, %c0_83] : memref<4x16x32xbf16, #tpu.memory_space<vmem>>, vector<1x16x32xbf16>
      %183 = vector.shape_cast %182 : vector<1x16x32xbf16> to vector<16x32xbf16>
      %184 = vector.shape_cast %181 : vector<16x32xbf16> to vector<1x16x32xbf16>
      tpu.vector_store %arg17[%c2_81, %c0_82, %c0_83], %184 {strides = array<i32>} : memref<4x16x32xbf16, #tpu.memory_space<vmem>>, vector<1x16x32xbf16>,
      %185 = vector.extract_strided_slice %152 {offsets = [0, 320], sizes = [16, 32], strides = [1, 1]} : vector<16x384xbf16> to vector<16x32xbf16>
      %c2_84 = arith.constant 2 : index
      %c0_85 = arith.constant 0 : index
      %c0_86 = arith.constant 0 : index
      %186 = vector.load %arg18[%c2_84, %c0_85, %c0_86] : memref<4x16x32xbf16, #tpu.memory_space<vmem>>, vector<1x16x32xbf16>
      %187 = vector.shape_cast %186 : vector<1x16x32xbf16> to vector<16x32xbf16>
      %188 = vector.shape_cast %185 : vector<16x32xbf16> to vector<1x16x32xbf16>
      tpu.vector_store %arg18[%c2_84, %c0_85, %c0_86], %188 {strides = array<i32>} : memref<4x16x32xbf16, #tpu.memory_space<vmem>>, vector<1x16x32xbf16>,
      %189 = vector.extract_strided_slice %152 {offsets = [0, 96], sizes = [16, 32], strides = [1, 1]} : vector<16x384xbf16> to vector<16x32xbf16>
      %c3 = arith.constant 3 : index
      %c0_87 = arith.constant 0 : index
      %c0_88 = arith.constant 0 : index
      %190 = vector.load %arg16[%c3, %c0_87, %c0_88] : memref<4x16x32xbf16, #tpu.memory_space<vmem>>, vector<1x16x32xbf16>
      %191 = vector.shape_cast %190 : vector<1x16x32xbf16> to vector<16x32xbf16>
      %192 = vector.shape_cast %189 : vector<16x32xbf16> to vector<1x16x32xbf16>
      tpu.vector_store %arg16[%c3, %c0_87, %c0_88], %192 {strides = array<i32>} : memref<4x16x32xbf16, #tpu.memory_space<vmem>>, vector<1x16x32xbf16>,
      %193 = vector.extract_strided_slice %152 {offsets = [0, 224], sizes = [16, 32], strides = [1, 1]} : vector<16x384xbf16> to vector<16x32xbf16>
      %c3_89 = arith.constant 3 : index
      %c0_90 = arith.constant 0 : index
      %c0_91 = arith.constant 0 : index
      %194 = vector.load %arg17[%c3_89, %c0_90, %c0_91] : memref<4x16x32xbf16, #tpu.memory_space<vmem>>, vector<1x16x32xbf16>
      %195 = vector.shape_cast %194 : vector<1x16x32xbf16> to vector<16x32xbf16>
      %196 = vector.shape_cast %193 : vector<16x32xbf16> to vector<1x16x32xbf16>
      tpu.vector_store %arg17[%c3_89, %c0_90, %c0_91], %196 {strides = array<i32>} : memref<4x16x32xbf16, #tpu.memory_space<vmem>>, vector<1x16x32xbf16>,
      %197 = vector.extract_strided_slice %152 {offsets = [0, 352], sizes = [16, 32], strides = [1, 1]} : vector<16x384xbf16> to vector<16x32xbf16>
      %c3_92 = arith.constant 3 : index
      %c0_93 = arith.constant 0 : index
      %c0_94 = arith.constant 0 : index
      %198 = vector.load %arg18[%c3_92, %c0_93, %c0_94] : memref<4x16x32xbf16, #tpu.memory_space<vmem>>, vector<1x16x32xbf16>
      %199 = vector.shape_cast %198 : vector<1x16x32xbf16> to vector<16x32xbf16>
      %200 = vector.shape_cast %197 : vector<16x32xbf16> to vector<1x16x32xbf16>
      tpu.vector_store %arg18[%c3_92, %c0_93, %c0_94], %200 {strides = array<i32>} : memref<4x16x32xbf16, #tpu.memory_space<vmem>>, vector<1x16x32xbf16>,
    } else {
    }
    %c8_i32 = arith.constant 8 : i32
    %3 = arith.muli %arg1, %c8_i32 : i32
    %4 = tpu.assume_multiple %3, 8 : i32
    %c0 = arith.constant 0 : index
    %5 = arith.index_cast %4 : i32 to index
    %c0_1 = arith.constant 0 : index
    %6 = vector.load %arg2[%c0, %5, %c0_1] : memref<1x16x128xf32, #tpu.memory_space<vmem>>, vector<1x8x128xf32>
    %7 = vector.shape_cast %6 : vector<1x8x128xf32> to vector<8x128xf32>
    %c0_2 = arith.constant 0 : index
    %8 = arith.index_cast %4 : i32 to index
    %c0_3 = arith.constant 0 : index
    %9 = vector.load %arg16[%c0_2, %8, %c0_3] : memref<4x16x32xbf16, #tpu.memory_space<vmem>>, vector<4x8x32xbf16>
    %c0_4 = arith.constant 0 : index
    %c0_5 = arith.constant 0 : index
    %c0_6 = arith.constant 0 : index
    %10 = vector.load %arg17[%c0_4, %c0_5, %c0_6] : memref<4x16x32xbf16, #tpu.memory_space<vmem>>, vector<4x16x32xbf16>
    %c0_7 = arith.constant 0 : index
    %c0_8 = arith.constant 0 : index
    %c0_9 = arith.constant 0 : index
    %11 = vector.load %arg18[%c0_7, %c0_8, %c0_9] : memref<4x16x32xbf16, #tpu.memory_space<vmem>>, vector<4x16x32xbf16>
    "tpu.trace_start"() <{level = 10 : i32, message = "hqd,hkd->hqk"}> : () -> ()
    %cst = arith.constant dense<0.000000e+00> : vector<4x8x16xf32>
    %12 = tpu.matmul %9, %10, %cst {dimension_numbers = #tpu.dot_dimension_numbers<[2], [2], [1], [1], [0, 0, 0, 1, 1, 1], [0], [0]>} : vector<4x8x32xbf16>, vector<4x16x32xbf16>, vector<4x8x16xf32> -> vector<4x8x16xf32>
    "tpu.trace_stop"() : () -> ()
    %13 = tpu.iota {dimensions = array<i32: 0>} : vector<8x16xi32>
    %14 = vector.broadcast %4 : i32 to vector<8x16xi32>
    %15 = arith.addi %14, %13 : vector<8x16xi32>
    %16 = tpu.iota {dimensions = array<i32: 1>} : vector<8x16xi32>
    %17 = arith.cmpi sle, %16, %15 : vector<8x16xi32>
    %18 = vector.shape_cast %17 : vector<8x16xi1> to vector<1x8x16xi1>
    %cst_10 = arith.constant -1.000000e+30 : f32
    %19 = vector.shape_cast %18 : vector<1x8x16xi1> to vector<1x8x16xi1>
    %20 = vector.broadcast %19 : vector<1x8x16xi1> to vector<4x8x16xi1>
    %21 = vector.broadcast %cst_10 : f32 to vector<4x8x16xf32>
    %22 = arith.select %20, %12, %21 : vector<4x8x16xi1>, vector<4x8x16xf32>
    %cst_11 = arith.constant dense<0xFF800000> : vector<4x8xf32>
    %23 = vector.multi_reduction <maximumf>, %22, %cst_11 [2] : vector<4x8x16xf32> to vector<4x8xf32>
    %24 = vector.shape_cast %23 : vector<4x8xf32> to vector<4x8x1xf32>
    %25 = vector.broadcast %24 : vector<4x8x1xf32> to vector<4x8x16xf32>
    %26 = arith.subf %22, %25 : vector<4x8x16xf32>
    %27 = math.exp %26 : vector<4x8x16xf32>
    %cst_12 = arith.constant dense<0.000000e+00> : vector<4x8xf32>
    %28 = vector.multi_reduction <add>, %27, %cst_12 [2] : vector<4x8x16xf32> to vector<4x8xf32>
    %29 = vector.shape_cast %28 : vector<4x8xf32> to vector<4x8x1xf32>
    %30 = tpu.reciprocal %29 {approx = true} : vector<4x8x1xf32> -> vector<4x8x1xf32>
    %31 = vector.broadcast %30 : vector<4x8x1xf32> to vector<4x8x16xf32>
    %32 = arith.mulf %27, %31 : vector<4x8x16xf32>
    %33 = arith.truncf %32 : vector<4x8x16xf32> to vector<4x8x16xbf16>
    "tpu.trace_start"() <{level = 10 : i32, message = "hqk,hkd->hqd"}> : () -> ()
    %cst_13 = arith.constant dense<0.000000e+00> : vector<4x8x32xf32>
    %34 = tpu.matmul %33, %11, %cst_13 {dimension_numbers = #tpu.dot_dimension_numbers<[2], [1], [1], [2], [0, 0, 0, 1, 1, 2], [0], [0]>} : vector<4x8x16xbf16>, vector<4x16x32xbf16>, vector<4x8x32xf32> -> vector<4x8x32xf32>
    "tpu.trace_stop"() : () -> ()
    %35 = vector.extract_strided_slice %34 {offsets = [0, 0, 0], sizes = [1, 8, 32], strides = [1, 1, 1]} : vector<4x8x32xf32> to vector<1x8x32xf32>
    %36 = vector.shape_cast %35 : vector<1x8x32xf32> to vector<8x32xf32>
    %37 = vector.extract_strided_slice %34 {offsets = [1, 0, 0], sizes = [1, 8, 32], strides = [1, 1, 1]} : vector<4x8x32xf32> to vector<1x8x32xf32>
    %38 = vector.shape_cast %37 : vector<1x8x32xf32> to vector<8x32xf32>
    %39 = vector.extract_strided_slice %34 {offsets = [2, 0, 0], sizes = [1, 8, 32], strides = [1, 1, 1]} : vector<4x8x32xf32> to vector<1x8x32xf32>
    %40 = vector.shape_cast %39 : vector<1x8x32xf32> to vector<8x32xf32>
    %41 = vector.extract_strided_slice %34 {offsets = [3, 0, 0], sizes = [1, 8, 32], strides = [1, 1, 1]} : vector<4x8x32xf32> to vector<1x8x32xf32>
    %42 = vector.shape_cast %41 : vector<1x8x32xf32> to vector<8x32xf32>
    %43 = tpu.concatenate %36, %38, %40, %42 in 1 : vector<8x32xf32>, vector<8x32xf32>, vector<8x32xf32>, vector<8x32xf32> -> vector<8x128xf32>
    %44 = arith.truncf %43 : vector<8x128xf32> to vector<8x128xbf16>
    %c0_14 = arith.constant 0 : index
    %c0_15 = arith.constant 0 : index
    %45 = vector.load %arg7[%c0_14, %c0_15] : memref<128x128xbf16, #tpu.memory_space<vmem>>, vector<128x128xbf16>
    %cst_16 = arith.constant dense<0.000000e+00> : vector<8x128xf32>
    %46 = tpu.matmul %44, %45, %cst_16 {dimension_numbers = #tpu.dot_dimension_numbers<[1], [0], [0], [1], [0, 0, 1, 1], [], []>} : vector<8x128xbf16>, vector<128x128xbf16>, vector<8x128xf32> -> vector<8x128xf32>
    %c0_17 = arith.constant 0 : index
    %c0_18 = arith.constant 0 : index
    %47 = vector.load %arg8[%c0_17, %c0_18] : memref<1x128xf32, #tpu.memory_space<vmem>>, vector<1x128xf32>
    %48 = vector.shape_cast %47 : vector<1x128xf32> to vector<128xf32>
    %49 = vector.shape_cast %48 : vector<128xf32> to vector<1x128xf32>
    %50 = vector.broadcast %49 : vector<1x128xf32> to vector<8x128xf32>
    %51 = arith.addf %46, %50 : vector<8x128xf32>
    %52 = arith.addf %7, %51 : vector<8x128xf32>
    %c0_19 = arith.constant 0 : index
    %c0_20 = arith.constant 0 : index
    %53 = vector.load %arg9[%c0_19, %c0_20] : memref<1x128xf32, #tpu.memory_space<vmem>>, vector<1x128xf32>
    %54 = vector.shape_cast %53 : vector<1x128xf32> to vector<128xf32>
    %c0_21 = arith.constant 0 : index
    %c0_22 = arith.constant 0 : index
    %55 = vector.load %arg10[%c0_21, %c0_22] : memref<1x128xf32, #tpu.memory_space<vmem>>, vector<1x128xf32>
    %56 = vector.shape_cast %55 : vector<1x128xf32> to vector<128xf32>
    %cst_23 = arith.constant dense<0.000000e+00> : vector<8xf32>
    %57 = vector.multi_reduction <add>, %52, %cst_23 [1] : vector<8x128xf32> to vector<8xf32>
    %58 = vector.shape_cast %57 : vector<8xf32> to vector<8x1xf32>
    %cst_24 = arith.constant 1.280000e+02 : f32
    %59 = vector.broadcast %cst_24 : f32 to vector<8x1xf32>
    %60 = arith.divf %58, %59 : vector<8x1xf32>
    %61 = vector.broadcast %60 : vector<8x1xf32> to vector<8x128xf32>
    %62 = arith.subf %52, %61 : vector<8x128xf32>
    %63 = arith.mulf %62, %62 : vector<8x128xf32>
    %cst_25 = arith.constant dense<0.000000e+00> : vector<8xf32>
    %64 = vector.multi_reduction <add>, %63, %cst_25 [1] : vector<8x128xf32> to vector<8xf32>
    %65 = vector.shape_cast %64 : vector<8xf32> to vector<8x1xf32>
    %cst_26 = arith.constant 1.280000e+02 : f32
    %66 = vector.broadcast %cst_26 : f32 to vector<8x1xf32>
    %67 = arith.divf %65, %66 : vector<8x1xf32>
    %68 = vector.broadcast %60 : vector<8x1xf32> to vector<8x128xf32>
    %69 = arith.subf %52, %68 : vector<8x128xf32>
    %cst_27 = arith.constant 9.99999974E-6 : f32
    %70 = vector.broadcast %cst_27 : f32 to vector<8x1xf32>
    %71 = arith.addf %67, %70 : vector<8x1xf32>
    %72 = math.rsqrt %71 : vector<8x1xf32>
    %73 = vector.broadcast %72 : vector<8x1xf32> to vector<8x128xf32>
    %74 = arith.mulf %69, %73 : vector<8x128xf32>
    %75 = vector.shape_cast %54 : vector<128xf32> to vector<1x128xf32>
    %76 = vector.broadcast %75 : vector<1x128xf32> to vector<8x128xf32>
    %77 = arith.mulf %74, %76 : vector<8x128xf32>
    %78 = vector.shape_cast %56 : vector<128xf32> to vector<1x128xf32>
    %79 = vector.broadcast %78 : vector<1x128xf32> to vector<8x128xf32>
    %80 = arith.addf %77, %79 : vector<8x128xf32>
    %81 = arith.truncf %80 : vector<8x128xf32> to vector<8x128xbf16>
    %c0_28 = arith.constant 0 : index
    %c0_29 = arith.constant 0 : index
    %82 = vector.load %arg11[%c0_28, %c0_29] : memref<128x512xbf16, #tpu.memory_space<vmem>>, vector<128x512xbf16>
    %cst_30 = arith.constant dense<0.000000e+00> : vector<8x512xf32>
    %83 = tpu.matmul %81, %82, %cst_30 {dimension_numbers = #tpu.dot_dimension_numbers<[1], [0], [0], [1], [0, 0, 1, 1], [], []>} : vector<8x128xbf16>, vector<128x512xbf16>, vector<8x512xf32> -> vector<8x512xf32>
    %c0_31 = arith.constant 0 : index
    %c0_32 = arith.constant 0 : index
    %84 = vector.load %arg12[%c0_31, %c0_32] : memref<1x512xf32, #tpu.memory_space<vmem>>, vector<1x512xf32>
    %85 = vector.shape_cast %84 : vector<1x512xf32> to vector<512xf32>
    %86 = vector.shape_cast %85 : vector<512xf32> to vector<1x512xf32>
    %87 = vector.broadcast %86 : vector<1x512xf32> to vector<8x512xf32>
    %88 = arith.addf %83, %87 : vector<8x512xf32>
    %cst_33 = arith.constant 5.000000e-01 : f32
    %89 = vector.broadcast %cst_33 : f32 to vector<8x512xf32>
    %90 = arith.mulf %89, %88 : vector<8x512xf32>
    %cst_34 = arith.constant 4.471500e-02 : f32
    %91 = vector.broadcast %cst_34 : f32 to vector<8x512xf32>
    %92 = arith.mulf %91, %88 : vector<8x512xf32>
    %93 = arith.mulf %92, %88 : vector<8x512xf32>
    %94 = arith.mulf %93, %88 : vector<8x512xf32>
    %95 = arith.addf %88, %94 : vector<8x512xf32>
    %cst_35 = arith.constant 0.797884583 : f32
    %96 = vector.broadcast %cst_35 : f32 to vector<8x512xf32>
    %97 = arith.mulf %96, %95 : vector<8x512xf32>
    %98 = math.tanh %97 : vector<8x512xf32>
    %cst_36 = arith.constant 1.000000e+00 : f32
    %99 = vector.broadcast %cst_36 : f32 to vector<8x512xf32>
    %100 = arith.addf %99, %98 : vector<8x512xf32>
    %101 = arith.mulf %90, %100 : vector<8x512xf32>
    %102 = arith.truncf %101 : vector<8x512xf32> to vector<8x512xbf16>
    %c0_37 = arith.constant 0 : index
    %c0_38 = arith.constant 0 : index
    %103 = vector.load %arg13[%c0_37, %c0_38] : memref<512x128xbf16, #tpu.memory_space<vmem>>, vector<512x128xbf16>
    %cst_39 = arith.constant dense<0.000000e+00> : vector<8x128xf32>
    %104 = tpu.matmul %102, %103, %cst_39 {dimension_numbers = #tpu.dot_dimension_numbers<[1], [0], [0], [1], [0, 0, 1, 1], [], []>} : vector<8x512xbf16>, vector<512x128xbf16>, vector<8x128xf32> -> vector<8x128xf32>
    %c0_40 = arith.constant 0 : index
    %c0_41 = arith.constant 0 : index
    %105 = vector.load %arg14[%c0_40, %c0_41] : memref<1x128xf32, #tpu.memory_space<vmem>>, vector<1x128xf32>
    %106 = vector.shape_cast %105 : vector<1x128xf32> to vector<128xf32>
    %107 = vector.shape_cast %106 : vector<128xf32> to vector<1x128xf32>
    %108 = vector.broadcast %107 : vector<1x128xf32> to vector<8x128xf32>
    %109 = arith.addf %104, %108 : vector<8x128xf32>
    %110 = arith.addf %52, %109 : vector<8x128xf32>
    %c0_42 = arith.constant 0 : index
    %c0_43 = arith.constant 0 : index
    %c0_44 = arith.constant 0 : index
    %111 = vector.load %arg15[%c0_42, %c0_43, %c0_44] : memref<1x8x128xf32, #tpu.memory_space<vmem>>, vector<1x8x128xf32>
    %112 = vector.shape_cast %111 : vector<1x8x128xf32> to vector<8x128xf32>
    %113 = vector.shape_cast %110 : vector<8x128xf32> to vector<1x8x128xf32>
    tpu.vector_store %arg15[%c0_42, %c0_43, %c0_44], %113 {strides = array<i32>} : memref<1x8x128xf32, #tpu.memory_space<vmem>>, vector<1x8x128xf32>,
    return
  }
  func.func @transform_0(%arg0: i32, %arg1: i32) -> (i32, i32, i32) {
    %c0_i32 = arith.constant 0 : i32
    %c0_i32_0 = arith.constant 0 : i32
    %c0_i32_1 = arith.constant 0 : i32
    return %arg0, %c0_i32, %c0_i32_0 : i32, i32, i32
  }
  func.func @transform_1(%arg0: i32, %arg1: i32) -> (i32, i32) {
    %c0_i32 = arith.constant 0 : i32
    %c0_i32_0 = arith.constant 0 : i32
    %c0_i32_1 = arith.constant 0 : i32
    return %c0_i32, %c0_i32_0 : i32, i32
  }
  func.func @transform_2(%arg0: i32, %arg1: i32) -> (i32, i32) {
    %c0_i32 = arith.constant 0 : i32
    %c0_i32_0 = arith.constant 0 : i32
    %c0_i32_1 = arith.constant 0 : i32
    return %c0_i32, %c0_i32_0 : i32, i32
  }
  func.func @transform_3(%arg0: i32, %arg1: i32) -> (i32, i32) {
    %c0_i32 = arith.constant 0 : i32
    %c0_i32_0 = arith.constant 0 : i32
    %c0_i32_1 = arith.constant 0 : i32
    return %c0_i32, %c0_i32_0 : i32, i32
  }
  func.func @transform_4(%arg0: i32, %arg1: i32) -> (i32, i32) {
    %c0_i32 = arith.constant 0 : i32
    %c0_i32_0 = arith.constant 0 : i32
    %c0_i32_1 = arith.constant 0 : i32
    return %c0_i32, %c0_i32_0 : i32, i32
  }
  func.func @transform_5(%arg0: i32, %arg1: i32) -> (i32, i32) {
    %c0_i32 = arith.constant 0 : i32
    %c0_i32_0 = arith.constant 0 : i32
    %c0_i32_1 = arith.constant 0 : i32
    return %c0_i32, %c0_i32_0 : i32, i32
  }
  func.func @transform_6(%arg0: i32, %arg1: i32) -> (i32, i32) {
    %c0_i32 = arith.constant 0 : i32
    %c0_i32_0 = arith.constant 0 : i32
    %c0_i32_1 = arith.constant 0 : i32
    return %c0_i32, %c0_i32_0 : i32, i32
  }
  func.func @transform_7(%arg0: i32, %arg1: i32) -> (i32, i32) {
    %c0_i32 = arith.constant 0 : i32
    %c0_i32_0 = arith.constant 0 : i32
    %c0_i32_1 = arith.constant 0 : i32
    return %c0_i32, %c0_i32_0 : i32, i32
  }
  func.func @transform_8(%arg0: i32, %arg1: i32) -> (i32, i32) {
    %c0_i32 = arith.constant 0 : i32
    %c0_i32_0 = arith.constant 0 : i32
    %c0_i32_1 = arith.constant 0 : i32
    return %c0_i32, %c0_i32_0 : i32, i32
  }
  func.func @transform_9(%arg0: i32, %arg1: i32) -> (i32, i32) {
    %c0_i32 = arith.constant 0 : i32
    %c0_i32_0 = arith.constant 0 : i32
    %c0_i32_1 = arith.constant 0 : i32
    return %c0_i32, %c0_i32_0 : i32, i32
  }
  func.func @transform_10(%arg0: i32, %arg1: i32) -> (i32, i32) {
    %c0_i32 = arith.constant 0 : i32
    %c0_i32_0 = arith.constant 0 : i32
    %c0_i32_1 = arith.constant 0 : i32
    return %c0_i32, %c0_i32_0 : i32, i32
  }
  func.func @transform_11(%arg0: i32, %arg1: i32) -> (i32, i32) {
    %c0_i32 = arith.constant 0 : i32
    %c0_i32_0 = arith.constant 0 : i32
    %c0_i32_1 = arith.constant 0 : i32
    return %c0_i32, %c0_i32_0 : i32, i32
  }
  func.func @transform_12(%arg0: i32, %arg1: i32) -> (i32, i32) {
    %c0_i32 = arith.constant 0 : i32
    %c0_i32_0 = arith.constant 0 : i32
    %c0_i32_1 = arith.constant 0 : i32
    return %c0_i32, %c0_i32_0 : i32, i32
  }
  func.func @transform_13(%arg0: i32, %arg1: i32) -> (i32, i32, i32) {
    %c0_i32 = arith.constant 0 : i32
    %c0_i32_0 = arith.constant 0 : i32
    return %arg0, %arg1, %c0_i32 : i32, i32, i32
  }
}

module attributes {stable_mosaic.version = 11 : i64} {
  func.func @block_kernel(%arg0: i32, %arg1: i32, %arg2: memref<1x16x128xf32, #tpu.memory_space<vmem>>, %arg3: memref<1x128xf32, #tpu.memory_space<vmem>>, %arg4: memref<1x128xf32, #tpu.memory_space<vmem>>, %arg5: memref<128x384xbf16, #tpu.memory_space<vmem>>, %arg6: memref<1x384xf32, #tpu.memory_space<vmem>>, %arg7: memref<128x128xbf16, #tpu.memory_space<vmem>>, %arg8: memref<1x128xf32, #tpu.memory_space<vmem>>, %arg9: memref<1x128xf32, #tpu.memory_space<vmem>>, %arg10: memref<1x128xf32, #tpu.memory_space<vmem>>, %arg11: memref<128x512xbf16, #tpu.memory_space<vmem>>, %arg12: memref<1x512xf32, #tpu.memory_space<vmem>>, %arg13: memref<512x128xbf16, #tpu.memory_space<vmem>>, %arg14: memref<1x128xf32, #tpu.memory_space<vmem>>, %arg15: memref<1x8x128xf32, #tpu.memory_space<vmem>>, %arg16: memref<4x16x32xbf16, #tpu.memory_space<vmem>>, %arg17: memref<4x16x32xbf16, #tpu.memory_space<vmem>>, %arg18: memref<4x16x32xbf16, #tpu.memory_space<vmem>>) attributes {dimension_semantics = [#tpu.dimension_semantics<parallel>, #tpu.dimension_semantics<arbitrary>], iteration_bounds = array<i64: 2, 2>, scalar_prefetch = 0 : i64, scratch_operands = 3 : i64, tpu.core_type = #tpu.core_type<tc>, window_params = [{transform_indices = @transform_0, window_bounds = array<i64: 1, 16, 128>}, {pipeline_mode = #tpu.pipeline_mode<synchronous>, transform_indices = @transform_1, window_bounds = array<i64: 1, 128>}, {pipeline_mode = #tpu.pipeline_mode<synchronous>, transform_indices = @transform_2, window_bounds = array<i64: 1, 128>}, {pipeline_mode = #tpu.pipeline_mode<synchronous>, transform_indices = @transform_3, window_bounds = array<i64: 128, 384>}, {pipeline_mode = #tpu.pipeline_mode<synchronous>, transform_indices = @transform_4, window_bounds = array<i64: 1, 384>}, {pipeline_mode = #tpu.pipeline_mode<synchronous>, transform_indices = @transform_5, window_bounds = array<i64: 128, 128>}, {pipeline_mode = #tpu.pipeline_mode<synchronous>, transform_indices = @transform_6, window_bounds = array<i64: 1, 128>}, {pipeline_mode = #tpu.pipeline_mode<synchronous>, transform_indices = @transform_7, window_bounds = array<i64: 1, 128>}, {pipeline_mode = #tpu.pipeline_mode<synchronous>, transform_indices = @transform_8, window_bounds = array<i64: 1, 128>}, {pipeline_mode = #tpu.pipeline_mode<synchronous>, transform_indices = @transform_9, window_bounds = array<i64: 128, 512>}, {pipeline_mode = #tpu.pipeline_mode<synchronous>, transform_indices = @transform_10, window_bounds = array<i64: 1, 512>}, {pipeline_mode = #tpu.pipeline_mode<synchronous>, transform_indices = @transform_11, window_bounds = array<i64: 512, 128>}, {pipeline_mode = #tpu.pipeline_mode<synchronous>, transform_indices = @transform_12, window_bounds = array<i64: 1, 128>}, {transform_indices = @transform_13, window_bounds = array<i64: 1, 8, 128>}]} {
    %c0_i32 = arith.constant 0 : i32
    %0 = arith.cmpi eq, %arg1, %c0_i32 : i32
    %1 = arith.extui %0 : i1 to i32
    %c0_i32_0 = arith.constant 0 : i32
    %2 = arith.cmpi ne, %1, %c0_i32_0 : i32
    scf.if %2 {
      %c0_45 = arith.constant 0 : index
      %c0_46 = arith.constant 0 : index
      %c0_47 = arith.constant 0 : index
      %114 = vector.load %arg2[%c0_45, %c0_46, %c0_47] : memref<1x16x128xf32, #tpu.memory_space<vmem>>, vector<1x16x128xf32>
      %115 = vector.shape_cast %114 : vector<1x16x128xf32> to vector<16x128xf32>
      %c0_48 = arith.constant 0 : index
      %c0_49 = arith.constant 0 : index
      %116 = vector.load %arg3[%c0_48, %c0_49] : memref<1x128xf32, #tpu.memory_space<vmem>>, vector<1x128xf32>
      %117 = vector.shape_cast %116 : vector<1x128xf32> to vector<128xf32>
      %c0_50 = arith.constant 0 : index
      %c0_51 = arith.constant 0 : index
      %118 = vector.load %arg4[%c0_50, %c0_51] : memref<1x128xf32, #tpu.memory_space<vmem>>, vector<1x128xf32>
      %119 = vector.shape_cast %118 : vector<1x128xf32> to vector<128xf32>
      %cst_52 = arith.constant dense<0.000000e+00> : vector<16xf32>
      %120 = vector.multi_reduction <add>, %115, %cst_52 [1] : vector<16x128xf32> to vector<16xf32>
      %121 = vector.shape_cast %120 : vector<16xf32> to vector<16x1xf32>
      %cst_53 = arith.constant 1.280000e+02 : f32
      %122 = vector.broadcast %cst_53 : f32 to vector<16x1xf32>
      %123 = arith.divf %121, %122 : vector<16x1xf32>
      %124 = vector.broadcast %123 : vector<16x1xf32> to vector<16x128xf32>
      %125 = arith.subf %115, %124 : vector<16x128xf32>
      %126 = arith.mulf %125, %125 : vector<16x128xf32>
      %cst_54 = arith.constant dense<0.000000e+00> : vector<16xf32>
      %127 = vector.multi_reduction <add>, %126, %cst_54 [1] : vector<16x128xf32> to vector<16xf32>
      %128 = vector.shape_cast %127 : vector<16xf32> to vector<16x1xf32>
      %cst_55 = arith.constant 1.280000e+02 : f32
      %129 = vector.broadcast %cst_55 : f32 to vector<16x1xf32>
      %130 = arith.divf %128, %129 : vector<16x1xf32>
      %131 = vector.broadcast %123 : vector<16x1xf32> to vector<16x128xf32>
      %132 = arith.subf %115, %131 : vector<16x128xf32>
      %cst_56 = arith.constant 9.99999974E-6 : f32
      %133 = vector.broadcast %cst_56 : f32 to vector<16x1xf32>
      %134 = arith.addf %130, %133 : vector<16x1xf32>
      %135 = math.rsqrt %134 : vector<16x1xf32>
      %136 = vector.broadcast %135 : vector<16x1xf32> to vector<16x128xf32>
      %137 = arith.mulf %132, %136 : vector<16x128xf32>
      %138 = vector.shape_cast %117 : vector<128xf32> to vector<1x128xf32>
      %139 = vector.broadcast %138 : vector<1x128xf32> to vector<16x128xf32>
      %140 = arith.mulf %137, %139 : vector<16x128xf32>
      %141 = vector.shape_cast %119 : vector<128xf32> to vector<1x128xf32>
      %142 = vector.broadcast %141 : vector<1x128xf32> to vector<16x128xf32>
      %143 = arith.addf %140, %142 : vector<16x128xf32>
      %144 = arith.truncf %143 : vector<16x128xf32> to vector<16x128xbf16>
      %c0_57 = arith.constant 0 : index
      %c0_58 = arith.constant 0 : index
      %145 = vector.load %arg5[%c0_57, %c0_58] : memref<128x384xbf16, #tpu.memory_space<vmem>>, vector<128x384xbf16>
      %cst_59 = arith.constant dense<0.000000e+00> : vector<16x384xf32>
      %146 = tpu.matmul %144, %145, %cst_59 {dimension_numbers = #tpu.dot_dimension_numbers<[1], [0], [0], [1], [0, 0, 1, 1], [], []>} : vector<16x128xbf16>, vector<128x384xbf16>, vector<16x384xf32> -> vector<16x384xf32>
      %c0_60 = arith.constant 0 : index
      %c0_61 = arith.constant 0 : index
      %147 = vector.load %arg6[%c0_60, %c0_61] : memref<1x384xf32, #tpu.memory_space<vmem>>, vector<1x384xf32>
      %148 = vector.shape_cast %147 : vector<1x384xf32> to vector<384xf32>
      %149 = vector.shape_cast %148 : vector<384xf32> to vector<1x384xf32>
      %150 = vector.broadcast %149 : vector<1x384xf32> to vector<16x384xf32>
      %151 = arith.addf %146, %150 : vector<16x384xf32>
      %152 = arith.truncf %151 : vector<16x384xf32> to vector<16x384xbf16>
      %153 = vector.extract_strided_slice %152 {offsets = [0, 0], sizes = [16, 32], strides = [1, 1]} : vector<16x384xbf16> to vector<16x32xbf16>
      %c0_62 = arith.constant 0 : index
      %c0_63 = arith.constant 0 : index
      %c0_64 = arith.constant 0 : index
      %154 = vector.load %arg16[%c0_62, %c0_63, %c0_64] : memref<4x16x32xbf16, #tpu.memory_space<vmem>>, vector<1x16x32xbf16>
      %155 = vector.shape_cast %154 : vector<1x16x32xbf16> to vector<16x32xbf16>
      %156 = vector.shape_cast %153 : vector<16x32xbf16> to vector<1x16x32xbf16>
      tpu.vector_store %arg16[%c0_62, %c0_63, %c0_64], %156 {strides = array<i32>} : memref<4x16x32xbf16, #tpu.memory_space<vmem>>, vector<1x16x32xbf16>,
      %157 = vector.extract_strided_slice %152 {offsets = [0, 128], sizes = [16, 32], strides = [1, 1]} : vector<16x384xbf16> to vector<16x32xbf16>
      %c0_65 = arith.constant 0 : index
      %c0_66 = arith.constant 0 : index
      %c0_67 = arith.constant 0 : index
      %158 = vector.load %arg17[%c0_65, %c0_66, %c0_67] : memref<4x16x32xbf16, #tpu.memory_space<vmem>>, vector<1x16x32xbf16>
      %159 = vector.shape_cast %158 : vector<1x16x32xbf16> to vector<16x32xbf16>
      %160 = vector.shape_cast %157 : vector<16x32xbf16> to vector<1x16x32xbf16>
      tpu.vector_store %arg17[%c0_65, %c0_66, %c0_67], %160 {strides = array<i32>} : memref<4x16x32xbf16, #tpu.memory_space<vmem>>, vector<1x16x32xbf16>,
      %161 = vector.extract_strided_slice %152 {offsets = [0, 256], sizes = [16, 32], strides = [1, 1]} : vector<16x384xbf16> to vector<16x32xbf16>
      %c0_68 = arith.constant 0 : index
      %c0_69 = arith.constant 0 : index
      %c0_70 = arith.constant 0 : index
      %162 = vector.load %arg18[%c0_68, %c0_69, %c0_70] : memref<4x16x32xbf16, #tpu.memory_space<vmem>>, vector<1x16x32xbf16>
      %163 = vector.shape_cast %162 : vector<1x16x32xbf16> to vector<16x32xbf16>
      %164 = vector.shape_cast %161 : vector<16x32xbf16> to vector<1x16x32xbf16>
      tpu.vector_store %arg18[%c0_68, %c0_69, %c0_70], %164 {strides = array<i32>} : memref<4x16x32xbf16, #tpu.memory_space<vmem>>, vector<1x16x32xbf16>,
      %165 = vector.extract_strided_slice %152 {offsets = [0, 32], sizes = [16, 32], strides = [1, 1]} : vector<16x384xbf16> to vector<16x32xbf16>
      %c1 = arith.constant 1 : index
      %c0_71 = arith.constant 0 : index
      %c0_72 = arith.constant 0 : index
      %166 = vector.load %arg16[%c1, %c0_71, %c0_72] : memref<4x16x32xbf16, #tpu.memory_space<vmem>>, vector<1x16x32xbf16>
      %167 = vector.shape_cast %166 : vector<1x16x32xbf16> to vector<16x32xbf16>
      %168 = vector.shape_cast %165 : vector<16x32xbf16> to vector<1x16x32xbf16>
      tpu.vector_store %arg16[%c1, %c0_71, %c0_72], %168 {strides = array<i32>} : memref<4x16x32xbf16, #tpu.memory_space<vmem>>, vector<1x16x32xbf16>,
      %169 = vector.extract_strided_slice %152 {offsets = [0, 160], sizes = [16, 32], strides = [1, 1]} : vector<16x384xbf16> to vector<16x32xbf16>
      %c1_73 = arith.constant 1 : index
      %c0_74 = arith.constant 0 : index
      %c0_75 = arith.constant 0 : index
      %170 = vector.load %arg17[%c1_73, %c0_74, %c0_75] : memref<4x16x32xbf16, #tpu.memory_space<vmem>>, vector<1x16x32xbf16>
      %171 = vector.shape_cast %170 : vector<1x16x32xbf16> to vector<16x32xbf16>
      %172 = vector.shape_cast %169 : vector<16x32xbf16> to vector<1x16x32xbf16>
      tpu.vector_store %arg17[%c1_73, %c0_74, %c0_75], %172 {strides = array<i32>} : memref<4x16x32xbf16, #tpu.memory_space<vmem>>, vector<1x16x32xbf16>,
      %173 = vector.extract_strided_slice %152 {offsets = [0, 288], sizes = [16, 32], strides = [1, 1]} : vector<16x384xbf16> to vector<16x32xbf16>
      %c1_76 = arith.constant 1 : index
      %c0_77 = arith.constant 0 : index
      %c0_78 = arith.constant 0 : index
      %174 = vector.load %arg18[%c1_76, %c0_77, %c0_78] : memref<4x16x32xbf16, #tpu.memory_space<vmem>>, vector<1x16x32xbf16>
      %175 = vector.shape_cast %174 : vector<1x16x32xbf16> to vector<16x32xbf16>
      %176 = vector.shape_cast %173 : vector<16x32xbf16> to vector<1x16x32xbf16>
      tpu.vector_store %arg18[%c1_76, %c0_77, %c0_78], %176 {strides = array<i32>} : memref<4x16x32xbf16, #tpu.memory_space<vmem>>, vector<1x16x32xbf16>,
      %177 = vector.extract_strided_slice %152 {offsets = [0, 64], sizes = [16, 32], strides = [1, 1]} : vector<16x384xbf16> to vector<16x32xbf16>
      %c2 = arith.constant 2 : index
      %c0_79 = arith.constant 0 : index
      %c0_80 = arith.constant 0 : index
      %178 = vector.load %arg16[%c2, %c0_79, %c0_80] : memref<4x16x32xbf16, #tpu.memory_space<vmem>>, vector<1x16x32xbf16>
      %179 = vector.shape_cast %178 : vector<1x16x32xbf16> to vector<16x32xbf16>
      %180 = vector.shape_cast %177 : vector<16x32xbf16> to vector<1x16x32xbf16>
      tpu.vector_store %arg16[%c2, %c0_79, %c0_80], %180 {strides = array<i32>} : memref<4x16x32xbf16, #tpu.memory_space<vmem>>, vector<1x16x32xbf16>,
      %181 = vector.extract_strided_slice %152 {offsets = [0, 192], sizes = [16, 32], strides = [1, 1]} : vector<16x384xbf16> to vector<16x32xbf16>
      %c2_81 = arith.constant 2 : index
      %c0_82 = arith.constant 0 : index
      %c0_83 = arith.constant 0 : index
      %182 = vector.load %arg17[%c2_81, %c0_82, %c0_83] : memref<4x16x32xbf16, #tpu.memory_space<vmem>>, vector<1x16x32xbf16>
      %183 = vector.shape_cast %182 : vector<1x16x32xbf16> to vector<16x32xbf16>
      %184 = vector.shape_cast %181 : vector<16x32xbf16> to vector<1x16x32xbf16>
      tpu.vector_store %arg17[%c2_81, %c0_82, %c0_83], %184 {strides = array<i32>} : memref<4x16x32xbf16, #tpu.memory_space<vmem>>, vector<1x16x32xbf16>,
      %185 = vector.extract_strided_slice %152 {offsets = [0, 320], sizes = [16, 32], strides = [1, 1]} : vector<16x384xbf16> to vector<16x32xbf16>
      %c2_84 = arith.constant 2 : index
      %c0_85 = arith.constant 0 : index
      %c0_86 = arith.constant 0 : index
      %186 = vector.load %arg18[%c2_84, %c0_85, %c0_86] : memref<4x16x32xbf16, #tpu.memory_space<vmem>>, vector<1x16x32xbf16>
      %187 = vector.shape_cast %186 : vector<1x16x32xbf16> to vector<16x32xbf16>
      %188 = vector.shape_cast %185 : vector<16x32xbf16> to vector<1x16x32xbf16>
      tpu.vector_store %arg18[%c2_84, %c0_85, %c0_86], %188 {strides = array<i32>} : memref<4x16x32xbf16, #tpu.memory_space<vmem>>, vector<1x16x32xbf16>,
      %189 = vector.extract_strided_slice %152 {offsets = [0, 96], sizes = [16, 32], strides = [1, 1]} : vector<16x384xbf16> to vector<16x32xbf16>
      %c3 = arith.constant 3 : index
      %c0_87 = arith.constant 0 : index
      %c0_88 = arith.constant 0 : index
      %190 = vector.load %arg16[%c3, %c0_87, %c0_88] : memref<4x16x32xbf16, #tpu.memory_space<vmem>>, vector<1x16x32xbf16>
      %191 = vector.shape_cast %190 : vector<1x16x32xbf16> to vector<16x32xbf16>
      %192 = vector.shape_cast %189 : vector<16x32xbf16> to vector<1x16x32xbf16>
      tpu.vector_store %arg16[%c3, %c0_87, %c0_88], %192 {strides = array<i32>} : memref<4x16x32xbf16, #tpu.memory_space<vmem>>, vector<1x16x32xbf16>,
      %193 = vector.extract_strided_slice %152 {offsets = [0, 224], sizes = [16, 32], strides = [1, 1]} : vector<16x384xbf16> to vector<16x32xbf16>
      %c3_89 = arith.constant 3 : index
      %c0_90 = arith.constant 0 : index
      %c0_91 = arith.constant 0 : index
      %194 = vector.load %arg17[%c3_89, %c0_90, %c0_91] : memref<4x16x32xbf16, #tpu.memory_space<vmem>>, vector<1x16x32xbf16>
      %195 = vector.shape_cast %194 : vector<1x16x32xbf16> to vector<16x32xbf16>
      %196 = vector.shape_cast %193 : vector<16x32xbf16> to vector<1x16x32xbf16>
      tpu.vector_store %arg17[%c3_89, %c0_90, %c0_91], %196 {strides = array<i32>} : memref<4x16x32xbf16, #tpu.memory_space<vmem>>, vector<1x16x32xbf16>,
      %197 = vector.extract_strided_slice %152 {offsets = [0, 352], sizes = [16, 32], strides = [1, 1]} : vector<16x384xbf16> to vector<16x32xbf16>
      %c3_92 = arith.constant 3 : index
      %c0_93 = arith.constant 0 : index
      %c0_94 = arith.constant 0 : index
      %198 = vector.load %arg18[%c3_92, %c0_93, %c0_94] : memref<4x16x32xbf16, #tpu.memory_space<vmem>>, vector<1x16x32xbf16>
      %199 = vector.shape_cast %198 : vector<1x16x32xbf16> to vector<16x32xbf16>
      %200 = vector.shape_cast %197 : vector<16x32xbf16> to vector<1x16x32xbf16>
      tpu.vector_store %arg18[%c3_92, %c0_93, %c0_94], %200 {strides = array<i32>} : memref<4x16x32xbf16, #tpu.memory_space<vmem>>, vector<1x16x32xbf16>,
    } else {
    }
    %c8_i32 = arith.constant 8 : i32
    %3 = arith.muli %arg1, %c8_i32 : i32
    %4 = tpu.assume_multiple %3, 8 : i32
    %c0 = arith.constant 0 : index
    %5 = arith.index_cast %4 : i32 to index
    %c0_1 = arith.constant 0 : index
    %6 = vector.load %arg2[%c0, %5, %c0_1] : memref<1x16x128xf32, #tpu.memory_space<vmem>>, vector<1x8x128xf32>
    %7 = vector.shape_cast %6 : vector<1x8x128xf32> to vector<8x128xf32>
    %c0_2 = arith.constant 0 : index
    %8 = arith.index_cast %4 : i32 to index
    %c0_3 = arith.constant 0 : index
    %9 = vector.load %arg16[%c0_2, %8, %c0_3] : memref<4x16x32xbf16, #tpu.memory_space<vmem>>, vector<4x8x32xbf16>
    %c0_4 = arith.constant 0 : index
    %c0_5 = arith.constant 0 : index
    %c0_6 = arith.constant 0 : index
    %10 = vector.load %arg17[%c0_4, %c0_5, %c0_6] : memref<4x16x32xbf16, #tpu.memory_space<vmem>>, vector<4x16x32xbf16>
    %c0_7 = arith.constant 0 : index
    %c0_8 = arith.constant 0 : index
    %c0_9 = arith.constant 0 : index
    %11 = vector.load %arg18[%c0_7, %c0_8, %c0_9] : memref<4x16x32xbf16, #tpu.memory_space<vmem>>, vector<4x16x32xbf16>
    "tpu.trace_start"() <{level = 10 : i32, message = "hqd,hkd->hqk"}> : () -> ()
    %cst = arith.constant dense<0.000000e+00> : vector<4x8x16xf32>
    %12 = tpu.matmul %9, %10, %cst {dimension_numbers = #tpu.dot_dimension_numbers<[2], [2], [1], [1], [0, 0, 0, 1, 1, 1], [0], [0]>} : vector<4x8x32xbf16>, vector<4x16x32xbf16>, vector<4x8x16xf32> -> vector<4x8x16xf32>
    "tpu.trace_stop"() : () -> ()
    %13 = tpu.iota {dimensions = array<i32: 0>} : vector<8x16xi32>
    %14 = vector.broadcast %4 : i32 to vector<8x16xi32>
    %15 = arith.addi %14, %13 : vector<8x16xi32>
    %16 = tpu.iota {dimensions = array<i32: 1>} : vector<8x16xi32>
    %17 = arith.cmpi sle, %16, %15 : vector<8x16xi32>
    %18 = vector.shape_cast %17 : vector<8x16xi1> to vector<1x8x16xi1>
    %cst_10 = arith.constant -1.000000e+30 : f32
    %19 = vector.shape_cast %18 : vector<1x8x16xi1> to vector<1x8x16xi1>
    %20 = vector.broadcast %19 : vector<1x8x16xi1> to vector<4x8x16xi1>
    %21 = vector.broadcast %cst_10 : f32 to vector<4x8x16xf32>
    %22 = arith.select %20, %12, %21 : vector<4x8x16xi1>, vector<4x8x16xf32>
    %cst_11 = arith.constant dense<0xFF800000> : vector<4x8xf32>
    %23 = vector.multi_reduction <maximumf>, %22, %cst_11 [2] : vector<4x8x16xf32> to vector<4x8xf32>
    %24 = vector.shape_cast %23 : vector<4x8xf32> to vector<4x8x1xf32>
    %25 = vector.broadcast %24 : vector<4x8x1xf32> to vector<4x8x16xf32>
    %26 = arith.subf %22, %25 : vector<4x8x16xf32>
    %27 = math.exp %26 : vector<4x8x16xf32>
    %cst_12 = arith.constant dense<0.000000e+00> : vector<4x8xf32>
    %28 = vector.multi_reduction <add>, %27, %cst_12 [2] : vector<4x8x16xf32> to vector<4x8xf32>
    %29 = vector.shape_cast %28 : vector<4x8xf32> to vector<4x8x1xf32>
    %30 = tpu.reciprocal %29 {approx = true} : vector<4x8x1xf32> -> vector<4x8x1xf32>
    %31 = vector.broadcast %30 : vector<4x8x1xf32> to vector<4x8x16xf32>
    %32 = arith.mulf %27, %31 : vector<4x8x16xf32>
    %33 = arith.truncf %32 : vector<4x8x16xf32> to vector<4x8x16xbf16>
    "tpu.trace_start"() <{level = 10 : i32, message = "hqk,hkd->hqd"}> : () -> ()
    %cst_13 = arith.constant dense<0.000000e+00> : vector<4x8x32xf32>
    %34 = tpu.matmul %33, %11, %cst_13 {dimension_numbers = #tpu.dot_dimension_numbers<[2], [1], [1], [2], [0, 0, 0, 1, 1, 2], [0], [0]>} : vector<4x8x16xbf16>, vector<4x16x32xbf16>, vector<4x8x32xf32> -> vector<4x8x32xf32>
    "tpu.trace_stop"() : () -> ()
    %35 = vector.extract_strided_slice %34 {offsets = [0, 0, 0], sizes = [1, 8, 32], strides = [1, 1, 1]} : vector<4x8x32xf32> to vector<1x8x32xf32>
    %36 = vector.shape_cast %35 : vector<1x8x32xf32> to vector<8x32xf32>
    %37 = vector.extract_strided_slice %34 {offsets = [1, 0, 0], sizes = [1, 8, 32], strides = [1, 1, 1]} : vector<4x8x32xf32> to vector<1x8x32xf32>
    %38 = vector.shape_cast %37 : vector<1x8x32xf32> to vector<8x32xf32>
    %39 = vector.extract_strided_slice %34 {offsets = [2, 0, 0], sizes = [1, 8, 32], strides = [1, 1, 1]} : vector<4x8x32xf32> to vector<1x8x32xf32>
    %40 = vector.shape_cast %39 : vector<1x8x32xf32> to vector<8x32xf32>
    %41 = vector.extract_strided_slice %34 {offsets = [3, 0, 0], sizes = [1, 8, 32], strides = [1, 1, 1]} : vector<4x8x32xf32> to vector<1x8x32xf32>
    %42 = vector.shape_cast %41 : vector<1x8x32xf32> to vector<8x32xf32>
    %43 = tpu.concatenate %36, %38, %40, %42 in 1 : vector<8x32xf32>, vector<8x32xf32>, vector<8x32xf32>, vector<8x32xf32> -> vector<8x128xf32>
    %44 = arith.truncf %43 : vector<8x128xf32> to vector<8x128xbf16>
    %c0_14 = arith.constant 0 : index
    %c0_15 = arith.constant 0 : index
    %45 = vector.load %arg7[%c0_14, %c0_15] : memref<128x128xbf16, #tpu.memory_space<vmem>>, vector<128x128xbf16>
    %cst_16 = arith.constant dense<0.000000e+00> : vector<8x128xf32>
    %46 = tpu.matmul %44, %45, %cst_16 {dimension_numbers = #tpu.dot_dimension_numbers<[1], [0], [0], [1], [0, 0, 1, 1], [], []>} : vector<8x128xbf16>, vector<128x128xbf16>, vector<8x128xf32> -> vector<8x128xf32>
    %c0_17 = arith.constant 0 : index
    %c0_18 = arith.constant 0 : index
    %47 = vector.load %arg8[%c0_17, %c0_18] : memref<1x128xf32, #tpu.memory_space<vmem>>, vector<1x128xf32>
    %48 = vector.shape_cast %47 : vector<1x128xf32> to vector<128xf32>
    %49 = vector.shape_cast %48 : vector<128xf32> to vector<1x128xf32>
    %50 = vector.broadcast %49 : vector<1x128xf32> to vector<8x128xf32>
    %51 = arith.addf %46, %50 : vector<8x128xf32>
    %52 = arith.addf %7, %51 : vector<8x128xf32>
    %c0_19 = arith.constant 0 : index
    %c0_20 = arith.constant 0 : index
    %53 = vector.load %arg9[%c0_19, %c0_20] : memref<1x128xf32, #tpu.memory_space<vmem>>, vector<1x128xf32>
    %54 = vector.shape_cast %53 : vector<1x128xf32> to vector<128xf32>
    %c0_21 = arith.constant 0 : index
    %c0_22 = arith.constant 0 : index
    %55 = vector.load %arg10[%c0_21, %c0_22] : memref<1x128xf32, #tpu.memory_space<vmem>>, vector<1x128xf32>
    %56 = vector.shape_cast %55 : vector<1x128xf32> to vector<128xf32>
    %cst_23 = arith.constant dense<0.000000e+00> : vector<8xf32>
    %57 = vector.multi_reduction <add>, %52, %cst_23 [1] : vector<8x128xf32> to vector<8xf32>
    %58 = vector.shape_cast %57 : vector<8xf32> to vector<8x1xf32>
    %cst_24 = arith.constant 1.280000e+02 : f32
    %59 = vector.broadcast %cst_24 : f32 to vector<8x1xf32>
    %60 = arith.divf %58, %59 : vector<8x1xf32>
    %61 = vector.broadcast %60 : vector<8x1xf32> to vector<8x128xf32>
    %62 = arith.subf %52, %61 : vector<8x128xf32>
    %63 = arith.mulf %62, %62 : vector<8x128xf32>
    %cst_25 = arith.constant dense<0.000000e+00> : vector<8xf32>
    %64 = vector.multi_reduction <add>, %63, %cst_25 [1] : vector<8x128xf32> to vector<8xf32>
    %65 = vector.shape_cast %64 : vector<8xf32> to vector<8x1xf32>
    %cst_26 = arith.constant 1.280000e+02 : f32
    %66 = vector.broadcast %cst_26 : f32 to vector<8x1xf32>
    %67 = arith.divf %65, %66 : vector<8x1xf32>
    %68 = vector.broadcast %60 : vector<8x1xf32> to vector<8x128xf32>
    %69 = arith.subf %52, %68 : vector<8x128xf32>
    %cst_27 = arith.constant 9.99999974E-6 : f32
    %70 = vector.broadcast %cst_27 : f32 to vector<8x1xf32>
    %71 = arith.addf %67, %70 : vector<8x1xf32>
    %72 = math.rsqrt %71 : vector<8x1xf32>
    %73 = vector.broadcast %72 : vector<8x1xf32> to vector<8x128xf32>
    %74 = arith.mulf %69, %73 : vector<8x128xf32>
    %75 = vector.shape_cast %54 : vector<128xf32> to vector<1x128xf32>
    %76 = vector.broadcast %75 : vector<1x128xf32> to vector<8x128xf32>
    %77 = arith.mulf %74, %76 : vector<8x128xf32>
    %78 = vector.shape_cast %56 : vector<128xf32> to vector<1x128xf32>
    %79 = vector.broadcast %78 : vector<1x128xf32> to vector<8x128xf32>
    %80 = arith.addf %77, %79 : vector<8x128xf32>
    %81 = arith.truncf %80 : vector<8x128xf32> to vector<8x128xbf16>
    %c0_28 = arith.constant 0 : index
    %c0_29 = arith.constant 0 : index
    %82 = vector.load %arg11[%c0_28, %c0_29] : memref<128x512xbf16, #tpu.memory_space<vmem>>, vector<128x512xbf16>
    %cst_30 = arith.constant dense<0.000000e+00> : vector<8x512xf32>
    %83 = tpu.matmul %81, %82, %cst_30 {dimension_numbers = #tpu.dot_dimension_numbers<[1], [0], [0], [1], [0, 0, 1, 1], [], []>} : vector<8x128xbf16>, vector<128x512xbf16>, vector<8x512xf32> -> vector<8x512xf32>
    %c0_31 = arith.constant 0 : index
    %c0_32 = arith.constant 0 : index
    %84 = vector.load %arg12[%c0_31, %c0_32] : memref<1x512xf32, #tpu.memory_space<vmem>>, vector<1x512xf32>
    %85 = vector.shape_cast %84 : vector<1x512xf32> to vector<512xf32>
    %86 = vector.shape_cast %85 : vector<512xf32> to vector<1x512xf32>
    %87 = vector.broadcast %86 : vector<1x512xf32> to vector<8x512xf32>
    %88 = arith.addf %83, %87 : vector<8x512xf32>
    %cst_33 = arith.constant 5.000000e-01 : f32
    %89 = vector.broadcast %cst_33 : f32 to vector<8x512xf32>
    %90 = arith.mulf %89, %88 : vector<8x512xf32>
    %cst_34 = arith.constant 4.471500e-02 : f32
    %91 = vector.broadcast %cst_34 : f32 to vector<8x512xf32>
    %92 = arith.mulf %91, %88 : vector<8x512xf32>
    %93 = arith.mulf %92, %88 : vector<8x512xf32>
    %94 = arith.mulf %93, %88 : vector<8x512xf32>
    %95 = arith.addf %88, %94 : vector<8x512xf32>
    %cst_35 = arith.constant 0.797884583 : f32
    %96 = vector.broadcast %cst_35 : f32 to vector<8x512xf32>
    %97 = arith.mulf %96, %95 : vector<8x512xf32>
    %98 = math.tanh %97 : vector<8x512xf32>
    %cst_36 = arith.constant 1.000000e+00 : f32
    %99 = vector.broadcast %cst_36 : f32 to vector<8x512xf32>
    %100 = arith.addf %99, %98 : vector<8x512xf32>
    %101 = arith.mulf %90, %100 : vector<8x512xf32>
    %102 = arith.truncf %101 : vector<8x512xf32> to vector<8x512xbf16>
    %c0_37 = arith.constant 0 : index
    %c0_38 = arith.constant 0 : index
    %103 = vector.load %arg13[%c0_37, %c0_38] : memref<512x128xbf16, #tpu.memory_space<vmem>>, vector<512x128xbf16>
    %cst_39 = arith.constant dense<0.000000e+00> : vector<8x128xf32>
    %104 = tpu.matmul %102, %103, %cst_39 {dimension_numbers = #tpu.dot_dimension_numbers<[1], [0], [0], [1], [0, 0, 1, 1], [], []>} : vector<8x512xbf16>, vector<512x128xbf16>, vector<8x128xf32> -> vector<8x128xf32>
    %c0_40 = arith.constant 0 : index
    %c0_41 = arith.constant 0 : index
    %105 = vector.load %arg14[%c0_40, %c0_41] : memref<1x128xf32, #tpu.memory_space<vmem>>, vector<1x128xf32>
    %106 = vector.shape_cast %105 : vector<1x128xf32> to vector<128xf32>
    %107 = vector.shape_cast %106 : vector<128xf32> to vector<1x128xf32>
    %108 = vector.broadcast %107 : vector<1x128xf32> to vector<8x128xf32>
    %109 = arith.addf %104, %108 : vector<8x128xf32>
    %110 = arith.addf %52, %109 : vector<8x128xf32>
    %c0_42 = arith.constant 0 : index
    %c0_43 = arith.constant 0 : index
    %c0_44 = arith.constant 0 : index
    %111 = vector.load %arg15[%c0_42, %c0_43, %c0_44] : memref<1x8x128xf32, #tpu.memory_space<vmem>>, vector<1x8x128xf32>
    %112 = vector.shape_cast %111 : vector<1x8x128xf32> to vector<8x128xf32>
    %113 = vector.shape_cast %110 : vector<8x128xf32> to vector<1x8x128xf32>
    tpu.vector_store %arg15[%c0_42, %c0_43, %c0_44], %113 {strides = array<i32>} : memref<1x8x128xf32, #tpu.memory_space<vmem>>, vector<1x8x128xf32>,
    return
  }
  func.func @transform_0(%arg0: i32, %arg1: i32) -> (i32, i32, i32) {
    %c0_i32 = arith.constant 0 : i32
    %c0_i32_0 = arith.constant 0 : i32
    %c0_i32_1 = arith.constant 0 : i32
    return %arg0, %c0_i32, %c0_i32_0 : i32, i32, i32
  }
  func.func @transform_1(%arg0: i32, %arg1: i32) -> (i32, i32) {
    %c0_i32 = arith.constant 0 : i32
    %c0_i32_0 = arith.constant 0 : i32
    %c0_i32_1 = arith.constant 0 : i32
    return %c0_i32, %c0_i32_0 : i32, i32
  }
  func.func @transform_2(%arg0: i32, %arg1: i32) -> (i32, i32) {
    %c0_i32 = arith.constant 0 : i32
    %c0_i32_0 = arith.constant 0 : i32
    %c0_i32_1 = arith.constant 0 : i32
    return %c0_i32, %c0_i32_0 : i32, i32
  }
  func.func @transform_3(%arg0: i32, %arg1: i32) -> (i32, i32) {
    %c0_i32 = arith.constant 0 : i32
    %c0_i32_0 = arith.constant 0 : i32
    %c0_i32_1 = arith.constant 0 : i32
    return %c0_i32, %c0_i32_0 : i32, i32
  }
  func.func @transform_4(%arg0: i32, %arg1: i32) -> (i32, i32) {
    %c0_i32 = arith.constant 0 : i32
    %c0_i32_0 = arith.constant 0 : i32
    %c0_i32_1 = arith.constant 0 : i32
    return %c0_i32, %c0_i32_0 : i32, i32
  }
  func.func @transform_5(%arg0: i32, %arg1: i32) -> (i32, i32) {
    %c0_i32 = arith.constant 0 : i32
    %c0_i32_0 = arith.constant 0 : i32
    %c0_i32_1 = arith.constant 0 : i32
    return %c0_i32, %c0_i32_0 : i32, i32
  }
  func.func @transform_6(%arg0: i32, %arg1: i32) -> (i32, i32) {
    %c0_i32 = arith.constant 0 : i32
    %c0_i32_0 = arith.constant 0 : i32
    %c0_i32_1 = arith.constant 0 : i32
    return %c0_i32, %c0_i32_0 : i32, i32
  }
  func.func @transform_7(%arg0: i32, %arg1: i32) -> (i32, i32) {
    %c0_i32 = arith.constant 0 : i32
    %c0_i32_0 = arith.constant 0 : i32
    %c0_i32_1 = arith.constant 0 : i32
    return %c0_i32, %c0_i32_0 : i32, i32
  }
  func.func @transform_8(%arg0: i32, %arg1: i32) -> (i32, i32) {
    %c0_i32 = arith.constant 0 : i32
    %c0_i32_0 = arith.constant 0 : i32
    %c0_i32_1 = arith.constant 0 : i32
    return %c0_i32, %c0_i32_0 : i32, i32
  }
  func.func @transform_9(%arg0: i32, %arg1: i32) -> (i32, i32) {
    %c0_i32 = arith.constant 0 : i32
    %c0_i32_0 = arith.constant 0 : i32
    %c0_i32_1 = arith.constant 0 : i32
    return %c0_i32, %c0_i32_0 : i32, i32
  }
  func.func @transform_10(%arg0: i32, %arg1: i32) -> (i32, i32) {
    %c0_i32 = arith.constant 0 : i32
    %c0_i32_0 = arith.constant 0 : i32
    %c0_i32_1 = arith.constant 0 : i32
    return %c0_i32, %c0_i32_0 : i32, i32
  }
  func.func @transform_11(%arg0: i32, %arg1: i32) -> (i32, i32) {
    %c0_i32 = arith.constant 0 : i32
    %c0_i32_0 = arith.constant 0 : i32
    %c0_i32_1 = arith.constant 0 : i32
    return %c0_i32, %c0_i32_0 : i32, i32
  }
  func.func @transform_12(%arg0: i32, %arg1: i32) -> (i32, i32) {
    %c0_i32 = arith.constant 0 : i32
    %c0_i32_0 = arith.constant 0 : i32
    %c0_i32_1 = arith.constant 0 : i32
    return %c0_i32, %c0_i32_0 : i32, i32
  }
  func.func @transform_13(%arg0: i32, %arg1: i32) -> (i32, i32, i32) {
    %c0_i32 = arith.constant 0 : i32
    %c0_i32_0 = arith.constant 0 : i32
    return %arg0, %arg1, %c0_i32 : i32, i32, i32
  }
}

</mosaic_0001>

<llo_original>
// kernel: tpu_custom_call.1
$region0: #{tpu_custom_call.1}
  #allocation0 [shape = 'u32[]', space=smem, size = 0x4, offset = 0x4, fixed_abs, tag = 'smem constant byte address 0x4 - core index']
  #allocation1 [shape = 'u32[72,128]{1,0:T(1,128)}', space=vmem, size = 0x9000, scoped, tag = 'internal scratch']
  #allocation2 [shape = 'bf16[4,16,32]{2,1,0:T(8,128)(2,1)}', space=vmem, size = 0x4000, scoped, tag = 'scratch operand']
  #allocation3 [shape = 'bf16[4,16,32]{2,1,0:T(8,128)(2,1)}', space=vmem, size = 0x4000, scoped, tag = 'scratch operand']
  #allocation4 [shape = 'bf16[4,16,32]{2,1,0:T(8,128)(2,1)}', space=vmem, size = 0x4000, scoped, tag = 'scratch operand']
  %s0 = inlined_call_operand.hbm [shape: f32[2,16,128], index: 0, kind: input, shape index: {}]
  %s1 = inlined_call_operand.hbm [shape: f32[1,128], index: 1, kind: input, shape index: {}]
  %s2 = inlined_call_operand.hbm [shape: f32[1,128], index: 2, kind: input, shape index: {}]
  %s3 = inlined_call_operand.hbm [shape: bf16[128,384], index: 3, kind: input, shape index: {}]
  %s4 = inlined_call_operand.vmem [shape: f32[1,384], index: 4, kind: input, shape index: {}]
  %s5 = inlined_call_operand.hbm [shape: bf16[128,128], index: 5, kind: input, shape index: {}]
  %s6 = inlined_call_operand.hbm [shape: f32[1,128], index: 6, kind: input, shape index: {}]
  %s7 = inlined_call_operand.hbm [shape: f32[1,128], index: 7, kind: input, shape index: {}]
  %s8 = inlined_call_operand.hbm [shape: f32[1,128], index: 8, kind: input, shape index: {}]
  %s9 = inlined_call_operand.hbm [shape: bf16[128,512], index: 9, kind: input, shape index: {}]
  %s10 = inlined_call_operand.vmem [shape: f32[1,512], index: 10, kind: input, shape index: {}]
  %s11 = inlined_call_operand.hbm [shape: bf16[512,128], index: 11, kind: input, shape index: {}]
  %s12 = inlined_call_operand.vmem [shape: f32[1,128], index: 12, kind: input, shape index: {}]
  %s13 = inlined_call_operand.hbm [shape: f32[2,16,128], index: 13, kind: output, shape index: {}]
  %s14 = sld [smem:[#allocation0]]
  $region129: #{tpu_custom_call.1} parent=0
    _
  %s16 = ssub.s32 1, %s14
  %s17 = scalar_select 0, %s16, %s14
  $region1: #{tpu_custom_call.1} parent=0
    #allocation5 [shape = 'u8[16384]{0}', space=vmem, size = 0x4000, scoped, tag = 'input window, operand 0']
    #allocation6 [shape = 's32[2]{0}', space=sflag, size = 0x8, scoped, tag = 'scoped memory for tpu_custom_call.1']
    #allocation7 [shape = 's32[2]{0}', space=sflag, size = 0x8, scoped, tag = 'scoped memory for tpu_custom_call.1']
    #allocation8 [shape = 'u8[512]{0}', space=vmem, size = 0x400, scoped, tag = 'input window, operand 1, single buffered']
    #allocation9 [shape = 's32[1]{0}', space=sflag, size = 0x4, scoped, tag = 'scoped memory for tpu_custom_call.1']
    #allocation10 [shape = 'u8[512]{0}', space=vmem, size = 0x400, scoped, tag = 'input window, operand 2, single buffered']
    #allocation11 [shape = 'u8[98304]{0}', space=vmem, size = 0x18000, scoped, tag = 'input window, operand 3, single buffered']
    #allocation12 [shape = 's32[1]{0}', space=sflag, size = 0x4, scoped, tag = 'scoped memory for tpu_custom_call.1']
    #allocation13 [shape = 'u8[32768]{0}', space=vmem, size = 0x8000, scoped, tag = 'input window, operand 5, single buffered']
    #allocation14 [shape = 'u8[512]{0}', space=vmem, size = 0x400, scoped, tag = 'input window, operand 6, single buffered']
    #allocation15 [shape = 's32[1]{0}', space=sflag, size = 0x4, scoped, tag = 'scoped memory for tpu_custom_call.1']
    #allocation16 [shape = 'u8[512]{0}', space=vmem, size = 0x400, scoped, tag = 'input window, operand 7, single buffered']
    #allocation17 [shape = 'u8[512]{0}', space=vmem, size = 0x400, scoped, tag = 'input window, operand 8, single buffered']
    #allocation18 [shape = 's32[1]{0}', space=sflag, size = 0x4, scoped, tag = 'scoped memory for tpu_custom_call.1']
    #allocation19 [shape = 'u8[131072]{0}', space=vmem, size = 0x20000, scoped, tag = 'input window, operand 9, single buffered']
    #allocation20 [shape = 'u8[131072]{0}', space=vmem, size = 0x20000, scoped, tag = 'input window, operand 11, single buffered']
    #allocation21 [shape = 's32[1]{0}', space=sflag, size = 0x4, scoped, tag = 'scoped memory for tpu_custom_call.1']
    #allocation22 [shape = 'u8[8192]{0}', space=vmem, size = 0x2000, scoped, tag = 'output window, operand 0']
    %18 = vsyncpa [#allocation6], 0
    %s19 = scalar_lea.sflag [#allocation6], 1
    %20 = vsyncpa %s19, 0
    %21 = vsyncpa [#allocation9], 0
    %22 = vsyncpa [#allocation12], 0
    %23 = vsyncpa [#allocation15], 0
    %24 = vsyncpa [#allocation18], 0
    %25 = vsyncpa [#allocation21], 0
    %26 = vsyncpa [#allocation7], 0
    %s27 = scalar_lea.sflag [#allocation7], 1
    %28 = vsyncpa %s27, 0
    loop: start=0, step=1, limit=6
    $region2: #{tpu_custom_call.1} parent=1 // loop_pre_header
      _
    $region3: #{tpu_custom_call.1} parent=1 // loop_header
      %s30 = sphi 0, %s34
      %p31 = scmp.ge.s32.totalorder %s30, 6
      %s37 = sphi 0, %s49
      %s38 = sphi 0, %s45
      %s39 = sphi 0, %s37
      %s40 = sphi 0, %s38
      %s41 = sphi 0, %s39
      %s42 = sphi 0, %s40
      %s52 = sphi 0, %s54
      %s55 = sphi 0, %s52
      %s56 = sphi 0, %s55
      %s72 = sphi 0, %s56
      %s76 = sphi 0, %s76
      %s78 = sphi 0, %s76
      %s79 = sphi 0, %s78
      %s93 = sphi 0, %s79
      %s97 = sphi 0, %s97
      %s99 = sphi 0, %s97
      %s100 = sphi 0, %s99
      %s114 = sphi 0, %s100
      %s118 = sphi 0, %s118
      %s120 = sphi 0, %s118
      %s121 = sphi 0, %s120
      %s135 = sphi 0, %s121
      %s139 = sphi 0, %s139
      %s141 = sphi 0, %s139
      %s142 = sphi 0, %s141
      %s156 = sphi 0, %s142
      %s160 = sphi 0, %s160
      %s162 = sphi 0, %s160
      %s163 = sphi 0, %s162
      %s177 = sphi 0, %s163
      %s181 = sphi 0, %s181
      %s183 = sphi 0, %s181
      %s184 = sphi 0, %s183
      %s198 = sphi 0, %s184
      %s202 = sphi 0, %s202
      %s204 = sphi 0, %s202
      %s205 = sphi 0, %s204
      %s219 = sphi 0, %s205
      %s223 = sphi 0, %s223
      %s225 = sphi 0, %s223
      %s226 = sphi 0, %s225
      %s240 = sphi 0, %s226
      %s244 = sphi 0, %s244
      %s246 = sphi 0, %s244
      %s247 = sphi 0, %s246
      %s261 = sphi 0, %s247
      %s265 = sphi 0, %s265
      %s267 = sphi 0, %s265
      %s268 = sphi 0, %s267
      %s282 = sphi 0, %s268
      %s286 = sphi 0, %s286
      %s288 = sphi 0, %s286
      %s289 = sphi 0, %s288
      %s303 = sphi 0, %s289
      %s307 = sphi 0, %s307
      %s309 = sphi 0, %s307
      %s310 = sphi 0, %s309
      %s324 = sphi 0, %s310
      %s332 = sphi 0, %s334
      %s335 = sphi 0, %s332
      %s336 = sphi 0, %s335
      %s352 = sphi 0, %s336
    $region4: #{tpu_custom_call.1} parent=1 // loop_header_branch
      %33 = sbr.rel (%p31) target = $region8
    $region5: #{tpu_custom_call.1} parent=1 // loop_body
      %s35 = ssub.s32 %s30, 1
      %s36 = ssub.s32 %s30, 2
      %s43 = sadd.s32 1, %s38
      %p44 = scmp.ge.s32.totalorder %s43, 2
      %s45 = scalar_select %p44, 0, %s43
      %s46 = sadd.s32 1, %s37
      %s47 = scalar_select %p44, %s46, %s37
      %p48 = scmp.ge.s32.totalorder %s47, 2
      %s49 = scalar_select %p48, 0, %s47
      %s50 = ssub.s32 %s37, %s49
      %p51 = scmp.eq.s32.totalorder %s50, 0
      %s53 = sadd.s32 %s52, 1
      %s54 = scalar_select %p51, %s52, %s53
      %p57 = pneg %p51
      %p58 = scmp.eq.s32.totalorder %s30, 3
      %p59 = por %p57, %p58
      %p60 = scmp.ne.s32.totalorder %s52, %s55
      %p61 = scmp.eq.s32.totalorder %s30, 0
      %p62 = por %p60, %p61
      %p63 = scmp.ne.s32.totalorder %s52, %s55
      %p64 = scmp.eq.s32.totalorder %s35, 3
      %p65 = por %p63, %p64
      %p66 = scmp.ne.s32.totalorder %s55, %s56
      %p67 = scmp.eq.s32.totalorder %s35, 0
      %p68 = por %p66, %p67
      %p69 = scmp.ne.s32.totalorder %s55, %s56
      %p70 = scmp.eq.s32.totalorder %s36, 3
      %p71 = por %p69, %p70
      %p73 = scmp.ne.s32.totalorder %s56, %s72
      %p74 = scmp.eq.s32.totalorder %s36, 0
      %p75 = por %p73, %p74
      %s77 = sadd.s32 %s76, 1
      %p80 = scmp.eq.s32.totalorder %s30, 3
      %p81 = scmp.ne.s32.totalorder %s76, %s78
      %p82 = scmp.eq.s32.totalorder %s30, 0
      %p83 = por %p81, %p82
      %p84 = scmp.ne.s32.totalorder %s76, %s78
      %p85 = scmp.eq.s32.totalorder %s35, 3
      %p86 = por %p84, %p85
      %p87 = scmp.ne.s32.totalorder %s78, %s79
      %p88 = scmp.eq.s32.totalorder %s35, 0
      %p89 = por %p87, %p88
      %p90 = scmp.ne.s32.totalorder %s78, %s79
      %p91 = scmp.eq.s32.totalorder %s36, 3
      %p92 = por %p90, %p91
      %p94 = scmp.ne.s32.totalorder %s79, %s93
      %p95 = scmp.eq.s32.totalorder %s36, 0
      %p96 = por %p94, %p95
      %s98 = sadd.s32 %s97, 1
      %p101 = scmp.eq.s32.totalorder %s30, 3
      %p102 = scmp.ne.s32.totalorder %s97, %s99
      %p103 = scmp.eq.s32.totalorder %s30, 0
      %p104 = por %p102, %p103
      %p105 = scmp.ne.s32.totalorder %s97, %s99
      %p106 = scmp.eq.s32.totalorder %s35, 3
      %p107 = por %p105, %p106
      %p108 = scmp.ne.s32.totalorder %s99, %s100
      %p109 = scmp.eq.s32.totalorder %s35, 0
      %p110 = por %p108, %p109
      %p111 = scmp.ne.s32.totalorder %s99, %s100
      %p112 = scmp.eq.s32.totalorder %s36, 3
      %p113 = por %p111, %p112
      %p115 = scmp.ne.s32.totalorder %s100, %s114
      %p116 = scmp.eq.s32.totalorder %s36, 0
      %p117 = por %p115, %p116
      %s119 = sadd.s32 %s118, 1
      %p122 = scmp.eq.s32.totalorder %s30, 3
      %p123 = scmp.ne.s32.totalorder %s118, %s120
      %p124 = scmp.eq.s32.totalorder %s30, 0
      %p125 = por %p123, %p124
      %p126 = scmp.ne.s32.totalorder %s118, %s120
      %p127 = scmp.eq.s32.totalorder %s35, 3
      %p128 = por %p126, %p127
      %p129 = scmp.ne.s32.totalorder %s120, %s121
      %p130 = scmp.eq.s32.totalorder %s35, 0
      %p131 = por %p129, %p130
      %p132 = scmp.ne.s32.totalorder %s120, %s121
      %p133 = scmp.eq.s32.totalorder %s36, 3
      %p134 = por %p132, %p133
      %p136 = scmp.ne.s32.totalorder %s121, %s135
      %p137 = scmp.eq.s32.totalorder %s36, 0
      %p138 = por %p136, %p137
      %s140 = sadd.s32 %s139, 1
      %p143 = scmp.eq.s32.totalorder %s30, 3
      %p144 = scmp.ne.s32.totalorder %s139, %s141
      %p145 = scmp.eq.s32.totalorder %s30, 0
      %p146 = por %p144, %p145
      %p147 = scmp.ne.s32.totalorder %s139, %s141
      %p148 = scmp.eq.s32.totalorder %s35, 3
      %p149 = por %p147, %p148
      %p150 = scmp.ne.s32.totalorder %s141, %s142
      %p151 = scmp.eq.s32.totalorder %s35, 0
      %p152 = por %p150, %p151
      %p153 = scmp.ne.s32.totalorder %s141, %s142
      %p154 = scmp.eq.s32.totalorder %s36, 3
      %p155 = por %p153, %p154
      %p157 = scmp.ne.s32.totalorder %s142, %s156
      %p158 = scmp.eq.s32.totalorder %s36, 0
      %p159 = por %p157, %p158
      %s161 = sadd.s32 %s160, 1
      %p164 = scmp.eq.s32.totalorder %s30, 3
      %p165 = scmp.ne.s32.totalorder %s160, %s162
      %p166 = scmp.eq.s32.totalorder %s30, 0
      %p167 = por %p165, %p166
      %p168 = scmp.ne.s32.totalorder %s160, %s162
      %p169 = scmp.eq.s32.totalorder %s35, 3
      %p170 = por %p168, %p169
      %p171 = scmp.ne.s32.totalorder %s162, %s163
      %p172 = scmp.eq.s32.totalorder %s35, 0
      %p173 = por %p171, %p172
      %p174 = scmp.ne.s32.totalorder %s162, %s163
      %p175 = scmp.eq.s32.totalorder %s36, 3
      %p176 = por %p174, %p175
      %p178 = scmp.ne.s32.totalorder %s163, %s177
      %p179 = scmp.eq.s32.totalorder %s36, 0
      %p180 = por %p178, %p179
      %s182 = sadd.s32 %s181, 1
      %p185 = scmp.eq.s32.totalorder %s30, 3
      %p186 = scmp.ne.s32.totalorder %s181, %s183
      %p187 = scmp.eq.s32.totalorder %s30, 0
      %p188 = por %p186, %p187
      %p189 = scmp.ne.s32.totalorder %s181, %s183
      %p190 = scmp.eq.s32.totalorder %s35, 3
      %p191 = por %p189, %p190
      %p192 = scmp.ne.s32.totalorder %s183, %s184
      %p193 = scmp.eq.s32.totalorder %s35, 0
      %p194 = por %p192, %p193
      %p195 = scmp.ne.s32.totalorder %s183, %s184
      %p196 = scmp.eq.s32.totalorder %s36, 3
      %p197 = por %p195, %p196
      %p199 = scmp.ne.s32.totalorder %s184, %s198
      %p200 = scmp.eq.s32.totalorder %s36, 0
      %p201 = por %p199, %p200
      %s203 = sadd.s32 %s202, 1
      %p206 = scmp.eq.s32.totalorder %s30, 3
      %p207 = scmp.ne.s32.totalorder %s202, %s204
      %p208 = scmp.eq.s32.totalorder %s30, 0
      %p209 = por %p207, %p208
      %p210 = scmp.ne.s32.totalorder %s202, %s204
      %p211 = scmp.eq.s32.totalorder %s35, 3
      %p212 = por %p210, %p211
      %p213 = scmp.ne.s32.totalorder %s204, %s205
      %p214 = scmp.eq.s32.totalorder %s35, 0
      %p215 = por %p213, %p214
      %p216 = scmp.ne.s32.totalorder %s204, %s205
      %p217 = scmp.eq.s32.totalorder %s36, 3
      %p218 = por %p216, %p217
      %p220 = scmp.ne.s32.totalorder %s205, %s219
      %p221 = scmp.eq.s32.totalorder %s36, 0
      %p222 = por %p220, %p221
      %s224 = sadd.s32 %s223, 1
      %p227 = scmp.eq.s32.totalorder %s30, 3
      %p228 = scmp.ne.s32.totalorder %s223, %s225
      %p229 = scmp.eq.s32.totalorder %s30, 0
      %p230 = por %p228, %p229
      %p231 = scmp.ne.s32.totalorder %s223, %s225
      %p232 = scmp.eq.s32.totalorder %s35, 3
      %p233 = por %p231, %p232
      %p234 = scmp.ne.s32.totalorder %s225, %s226
      %p235 = scmp.eq.s32.totalorder %s35, 0
      %p236 = por %p234, %p235
      %p237 = scmp.ne.s32.totalorder %s225, %s226
      %p238 = scmp.eq.s32.totalorder %s36, 3
      %p239 = por %p237, %p238
      %p241 = scmp.ne.s32.totalorder %s226, %s240
      %p242 = scmp.eq.s32.totalorder %s36, 0
      %p243 = por %p241, %p242
      %s245 = sadd.s32 %s244, 1
      %p248 = scmp.eq.s32.totalorder %s30, 3
      %p249 = scmp.ne.s32.totalorder %s244, %s246
      %p250 = scmp.eq.s32.totalorder %s30, 0
      %p251 = por %p249, %p250
      %p252 = scmp.ne.s32.totalorder %s244, %s246
      %p253 = scmp.eq.s32.totalorder %s35, 3
      %p254 = por %p252, %p253
      %p255 = scmp.ne.s32.totalorder %s246, %s247
      %p256 = scmp.eq.s32.totalorder %s35, 0
      %p257 = por %p255, %p256
      %p258 = scmp.ne.s32.totalorder %s246, %s247
      %p259 = scmp.eq.s32.totalorder %s36, 3
      %p260 = por %p258, %p259
      %p262 = scmp.ne.s32.totalorder %s247, %s261
      %p263 = scmp.eq.s32.totalorder %s36, 0
      %p264 = por %p262, %p263
      %s266 = sadd.s32 %s265, 1
      %p269 = scmp.eq.s32.totalorder %s30, 3
      %p270 = scmp.ne.s32.totalorder %s265, %s267
      %p271 = scmp.eq.s32.totalorder %s30, 0
      %p272 = por %p270, %p271
      %p273 = scmp.ne.s32.totalorder %s265, %s267
      %p274 = scmp.eq.s32.totalorder %s35, 3
      %p275 = por %p273, %p274
      %p276 = scmp.ne.s32.totalorder %s267, %s268
      %p277 = scmp.eq.s32.totalorder %s35, 0
      %p278 = por %p276, %p277
      %p279 = scmp.ne.s32.totalorder %s267, %s268
      %p280 = scmp.eq.s32.totalorder %s36, 3
      %p281 = por %p279, %p280
      %p283 = scmp.ne.s32.totalorder %s268, %s282
      %p284 = scmp.eq.s32.totalorder %s36, 0
      %p285 = por %p283, %p284
      %s287 = sadd.s32 %s286, 1
      %p290 = scmp.eq.s32.totalorder %s30, 3
      %p291 = scmp.ne.s32.totalorder %s286, %s288
      %p292 = scmp.eq.s32.totalorder %s30, 0
      %p293 = por %p291, %p292
      %p294 = scmp.ne.s32.totalorder %s286, %s288
      %p295 = scmp.eq.s32.totalorder %s35, 3
      %p296 = por %p294, %p295
      %p297 = scmp.ne.s32.totalorder %s288, %s289
      %p298 = scmp.eq.s32.totalorder %s35, 0
      %p299 = por %p297, %p298
      %p300 = scmp.ne.s32.totalorder %s288, %s289
      %p301 = scmp.eq.s32.totalorder %s36, 3
      %p302 = por %p300, %p301
      %p304 = scmp.ne.s32.totalorder %s289, %s303
      %p305 = scmp.eq.s32.totalorder %s36, 0
      %p306 = por %p304, %p305
      %s308 = sadd.s32 %s307, 1
      %p311 = scmp.eq.s32.totalorder %s30, 3
      %p312 = scmp.ne.s32.totalorder %s307, %s309
      %p313 = scmp.eq.s32.totalorder %s30, 0
      %p314 = por %p312, %p313
      %p315 = scmp.ne.s32.totalorder %s307, %s309
      %p316 = scmp.eq.s32.totalorder %s35, 3
      %p317 = por %p315, %p316
      %p318 = scmp.ne.s32.totalorder %s309, %s310
      %p319 = scmp.eq.s32.totalorder %s35, 0
      %p320 = por %p318, %p319
      %p321 = scmp.ne.s32.totalorder %s309, %s310
      %p322 = scmp.eq.s32.totalorder %s36, 3
      %p323 = por %p321, %p322
      %p325 = scmp.ne.s32.totalorder %s310, %s324
      %p326 = scmp.eq.s32.totalorder %s36, 0
      %p327 = por %p325, %p326
      %s328 = ssub.s32 %s37, %s49
      %s329 = ssub.s32 %s38, %s45
      %s330 = sor.u32 %s328, %s329
      %p331 = scmp.eq.s32.totalorder %s330, 0
      %s333 = sadd.s32 %s332, 1
      %s334 = scalar_select %p331, %s332, %s333
      %p337 = pneg %p331
      %p338 = scmp.eq.s32.totalorder %s30, 3
      %p339 = por %p337, %p338
      %p340 = scmp.ne.s32.totalorder %s332, %s335
      %p341 = scmp.eq.s32.totalorder %s30, 0
      %p342 = por %p340, %p341
      %p343 = scmp.ne.s32.totalorder %s332, %s335
      %p344 = scmp.eq.s32.totalorder %s35, 3
      %p345 = por %p343, %p344
      %p346 = scmp.ne.s32.totalorder %s335, %s336
      %p347 = scmp.eq.s32.totalorder %s35, 0
      %p348 = por %p346, %p347
      %p349 = scmp.ne.s32.totalorder %s335, %s336
      %p350 = scmp.eq.s32.totalorder %s36, 3
      %p351 = por %p349, %p350
      %p353 = scmp.ne.s32.totalorder %s336, %s352
      %p354 = scmp.eq.s32.totalorder %s36, 0
      %p355 = por %p353, %p354
      %p356 = scmp.le.s32.totalorder 1, %s30
      %p357 = scmp.lt.s32.totalorder %s30, 5
      %p358 = pnand %p356, %p357
      %p359 = pneg %p358
      // Predicated region
      $region9: #{tpu_custom_call.1} parent=5 // pred_check
        _
      $region10: #{tpu_custom_call.1} parent=5 // pred_check_branch
        %361 = sbr.rel (%p358) target = $region12
      $region11: #{tpu_custom_call.1} parent=5 // pred_region
        %s362 = ssub.s32 %s30, 1
        // Predicated region
        $region13: #{tpu_custom_call.1} parent=11 // pred_check
          %p363 = pneg %p89
        $region14: #{tpu_custom_call.1} parent=11 // pred_check_branch
          %365 = sbr.rel (%p363) target = $region16
        $region15: #{tpu_custom_call.1} parent=11 // pred_region
          %367 = vsyncadd [#allocation9], 0
          %s369 = sshll.u32 %s1, 4
          %s370 = int_to_ptr.hbm [resolvable:$true] %s369
          %s371 = sshll.u32 [#allocation8], 4
          %s372 = int_to_ptr.vmem [resolvable:$true] %s371
          %374 = dma.hbm_to_vmem [thread:$0]  %s370, 16, %s372, [#allocation9]
        $region16: #{tpu_custom_call.1} parent=11 // pred_fallthru
          _
        // Predicated region
        $region17: #{tpu_custom_call.1} parent=11 // pred_check
          %p375 = pneg %p110
        $region18: #{tpu_custom_call.1} parent=11 // pred_check_branch
          %377 = sbr.rel (%p375) target = $region20
        $region19: #{tpu_custom_call.1} parent=11 // pred_region
          %379 = vsyncadd [#allocation9], 0
          %s381 = sshll.u32 %s2, 4
          %s382 = int_to_ptr.hbm [resolvable:$true] %s381
          %s383 = sshll.u32 [#allocation10], 4
          %s384 = int_to_ptr.vmem [resolvable:$true] %s383
          %386 = dma.hbm_to_vmem [thread:$0]  %s382, 16, %s384, [#allocation9]
        $region20: #{tpu_custom_call.1} parent=11 // pred_fallthru
          _
        // Predicated region
        $region21: #{tpu_custom_call.1} parent=11 // pred_check
          %p387 = pneg %p131
        $region22: #{tpu_custom_call.1} parent=11 // pred_check_branch
          %389 = sbr.rel (%p387) target = $region24
        $region23: #{tpu_custom_call.1} parent=11 // pred_region
          %391 = vsyncadd [#allocation12], 0
          %s392 = sshll.u32 %s3, 4
          %s393 = int_to_ptr.hbm [resolvable:$true] %s392
          %s394 = sshll.u32 [#allocation11], 4
          %s395 = int_to_ptr.vmem [resolvable:$true] %s394
          %400 = dma.hbm_to_vmem [thread:$0]  %s393, 3072, %s395, [#allocation12], 192, 192, 12
        $region24: #{tpu_custom_call.1} parent=11 // pred_fallthru
          _
        // Predicated region
        $region25: #{tpu_custom_call.1} parent=11 // pred_check
          %p401 = pneg %p152
        $region26: #{tpu_custom_call.1} parent=11 // pred_check_branch
          %403 = sbr.rel (%p401) target = $region28
        $region27: #{tpu_custom_call.1} parent=11 // pred_region
          _
        $region28: #{tpu_custom_call.1} parent=11 // pred_fallthru
          _
        // Predicated region
        $region29: #{tpu_custom_call.1} parent=11 // pred_check
          %p404 = pneg %p173
        $region30: #{tpu_custom_call.1} parent=11 // pred_check_branch
          %406 = sbr.rel (%p404) target = $region32
        $region31: #{tpu_custom_call.1} parent=11 // pred_region
          %408 = vsyncadd [#allocation12], 0
          %s409 = sshll.u32 %s5, 4
          %s410 = int_to_ptr.hbm [resolvable:$true] %s409
          %s411 = sshll.u32 [#allocation13], 4
          %s412 = int_to_ptr.vmem [resolvable:$true] %s411
          %417 = dma.hbm_to_vmem [thread:$0]  %s410, 1024, %s412, [#allocation12], 64, 64, 4
        $region32: #{tpu_custom_call.1} parent=11 // pred_fallthru
          _
        // Predicated region
        $region33: #{tpu_custom_call.1} parent=11 // pred_check
          %p418 = pneg %p194
        $region34: #{tpu_custom_call.1} parent=11 // pred_check_branch
          %420 = sbr.rel (%p418) target = $region36
        $region35: #{tpu_custom_call.1} parent=11 // pred_region
          %422 = vsyncadd [#allocation15], 0
          %s424 = sshll.u32 %s6, 4
          %s425 = int_to_ptr.hbm [resolvable:$true] %s424
          %s426 = sshll.u32 [#allocation14], 4
          %s427 = int_to_ptr.vmem [resolvable:$true] %s426
          %429 = dma.hbm_to_vmem [thread:$0]  %s425, 16, %s427, [#allocation15]
        $region36: #{tpu_custom_call.1} parent=11 // pred_fallthru
          _
        // Predicated region
        $region37: #{tpu_custom_call.1} parent=11 // pred_check
          %p430 = pneg %p215
        $region38: #{tpu_custom_call.1} parent=11 // pred_check_branch
          %432 = sbr.rel (%p430) target = $region40
        $region39: #{tpu_custom_call.1} parent=11 // pred_region
          %434 = vsyncadd [#allocation15], 0
          %s436 = sshll.u32 %s7, 4
          %s437 = int_to_ptr.hbm [resolvable:$true] %s436
          %s438 = sshll.u32 [#allocation16], 4
          %s439 = int_to_ptr.vmem [resolvable:$true] %s438
          %441 = dma.hbm_to_vmem [thread:$0]  %s437, 16, %s439, [#allocation15]
        $region40: #{tpu_custom_call.1} parent=11 // pred_fallthru
          _
        // Predicated region
        $region41: #{tpu_custom_call.1} parent=11 // pred_check
          %p442 = pneg %p236
        $region42: #{tpu_custom_call.1} parent=11 // pred_check_branch
          %444 = sbr.rel (%p442) target = $region44
        $region43: #{tpu_custom_call.1} parent=11 // pred_region
          %446 = vsyncadd [#allocation18], 0
          %s448 = sshll.u32 %s8, 4
          %s449 = int_to_ptr.hbm [resolvable:$true] %s448
          %s450 = sshll.u32 [#allocation17], 4
          %s451 = int_to_ptr.vmem [resolvable:$true] %s450
          %453 = dma.hbm_to_vmem [thread:$0]  %s449, 16, %s451, [#allocation18]
        $region44: #{tpu_custom_call.1} parent=11 // pred_fallthru
          _
        // Predicated region
        $region45: #{tpu_custom_call.1} parent=11 // pred_check
          %p454 = pneg %p257
        $region46: #{tpu_custom_call.1} parent=11 // pred_check_branch
          %456 = sbr.rel (%p454) target = $region48
        $region47: #{tpu_custom_call.1} parent=11 // pred_region
          %458 = vsyncadd [#allocation18], 0
          %s459 = sshll.u32 %s9, 4
          %s460 = int_to_ptr.hbm [resolvable:$true] %s459
          %s461 = sshll.u32 [#allocation19], 4
          %s462 = int_to_ptr.vmem [resolvable:$true] %s461
          %467 = dma.hbm_to_vmem [thread:$0]  %s460, 4096, %s462, [#allocation18], 256, 256, 16
        $region48: #{tpu_custom_call.1} parent=11 // pred_fallthru
          _
        // Predicated region
        $region49: #{tpu_custom_call.1} parent=11 // pred_check
          %p468 = pneg %p278
        $region50: #{tpu_custom_call.1} parent=11 // pred_check_branch
          %470 = sbr.rel (%p468) target = $region52
        $region51: #{tpu_custom_call.1} parent=11 // pred_region
          _
        $region52: #{tpu_custom_call.1} parent=11 // pred_fallthru
          _
        // Predicated region
        $region53: #{tpu_custom_call.1} parent=11 // pred_check
          %p471 = pneg %p299
        $region54: #{tpu_custom_call.1} parent=11 // pred_check_branch
          %473 = sbr.rel (%p471) target = $region56
        $region55: #{tpu_custom_call.1} parent=11 // pred_region
          %475 = vsyncadd [#allocation21], 0
          %s476 = sshll.u32 %s11, 4
          %s477 = int_to_ptr.hbm [resolvable:$true] %s476
          %s478 = sshll.u32 [#allocation20], 4
          %s479 = int_to_ptr.vmem [resolvable:$true] %s478
          %484 = dma.hbm_to_vmem [thread:$0]  %s477, 4096, %s479, [#allocation21], 64, 64, 4
        $region56: #{tpu_custom_call.1} parent=11 // pred_fallthru
          _
        // Predicated region
        $region57: #{tpu_custom_call.1} parent=11 // pred_check
          %p485 = pneg %p320
        $region58: #{tpu_custom_call.1} parent=11 // pred_check_branch
          %487 = sbr.rel (%p485) target = $region60
        $region59: #{tpu_custom_call.1} parent=11 // pred_region
          _
        $region60: #{tpu_custom_call.1} parent=11 // pred_fallthru
          _
      $region12: #{tpu_custom_call.1} parent=5 // pred_fallthru
        _
      %p488 = scmp.lt.s32.totalorder %s30, 4
      // Predicated region
      $region61: #{tpu_custom_call.1} parent=5 // pred_check
        %p489 = pneg %p488
      $region62: #{tpu_custom_call.1} parent=5 // pred_check_branch
        %491 = sbr.rel (%p489) target = $region64
      $region63: #{tpu_custom_call.1} parent=5 // pred_region
        // Predicated region
        $region65: #{tpu_custom_call.1} parent=63 // pred_check
          %p492 = pneg %p62
        $region66: #{tpu_custom_call.1} parent=63 // pred_check_branch
          %494 = sbr.rel (%p492) target = $region68
        $region67: #{tpu_custom_call.1} parent=63 // pred_region
          %s495 = sand.u32 %s52, 1
          %s496 = scalar_lea.sflag [#allocation6], %s495
          %s497 = sand.u32 %s52, 1
          %s498 = smul.addr %s497, 16
          %s499 = scalar_lea.vmem [#allocation5], %s498
          %501 = vsyncadd %s496, 0
          %s502 = smul.addr %s37, 2
          %s503 = smul.addr %s502, 8
          %s504 = scalar_lea.hbm %s0, %s503
          %s505 = sshll.u32 %s504, 4
          %s506 = int_to_ptr.hbm [resolvable:$true] %s505
          %s507 = sshll.u32 %s499, 4
          %s508 = int_to_ptr.vmem [resolvable:$true] %s507
          %513 = dma.hbm_to_vmem [thread:$0]  %s506, 256, %s508, %s496, 128, 128, 8
        $region68: #{tpu_custom_call.1} parent=63 // pred_fallthru
          _
      $region64: #{tpu_custom_call.1} parent=5 // pred_fallthru
        _
      %p514 = scmp.le.s32.totalorder 1, %s30
      %p515 = scmp.lt.s32.totalorder %s30, 5
      %p516 = pnand %p514, %p515
      %p517 = pneg %p516
      // Predicated region
      $region69: #{tpu_custom_call.1} parent=5 // pred_check
        _
      $region70: #{tpu_custom_call.1} parent=5 // pred_check_branch
        %519 = sbr.rel (%p516) target = $region72
      $region71: #{tpu_custom_call.1} parent=5 // pred_region
        %s520 = ssub.s32 %s30, 1
        %s521 = sand.u32 %s55, 1
        %s522 = scalar_lea.sflag [#allocation6], %s521
        %s523 = sand.u32 %s55, 1
        %s524 = smul.addr %s523, 16
        %s525 = scalar_lea.vmem [#allocation5], %s524
        // Predicated region
        $region73: #{tpu_custom_call.1} parent=71 // pred_check
          %p526 = pneg %p68
        $region74: #{tpu_custom_call.1} parent=71 // pred_check_branch
          %528 = sbr.rel (%p526) target = $region76
        $region75: #{tpu_custom_call.1} parent=71 // pred_region
          %530 = dma.done %s522, 256
        $region76: #{tpu_custom_call.1} parent=71 // pred_fallthru
          _
        // Predicated region
        $region77: #{tpu_custom_call.1} parent=71 // pred_check
          %p531 = pneg %p89
        $region78: #{tpu_custom_call.1} parent=71 // pred_check_branch
          %533 = sbr.rel (%p531) target = $region80
        $region79: #{tpu_custom_call.1} parent=71 // pred_region
          %535 = dma.done [#allocation9], 16
        $region80: #{tpu_custom_call.1} parent=71 // pred_fallthru
          _
        // Predicated region
        $region81: #{tpu_custom_call.1} parent=71 // pred_check
          %p536 = pneg %p110
        $region82: #{tpu_custom_call.1} parent=71 // pred_check_branch
          %538 = sbr.rel (%p536) target = $region84
        $region83: #{tpu_custom_call.1} parent=71 // pred_region
          %540 = dma.done [#allocation9], 16
        $region84: #{tpu_custom_call.1} parent=71 // pred_fallthru
          _
        // Predicated region
        $region85: #{tpu_custom_call.1} parent=71 // pred_check
          %p541 = pneg %p131
        $region86: #{tpu_custom_call.1} parent=71 // pred_check_branch
          %543 = sbr.rel (%p541) target = $region88
        $region87: #{tpu_custom_call.1} parent=71 // pred_region
          %545 = dma.done [#allocation12], 3072
        $region88: #{tpu_custom_call.1} parent=71 // pred_fallthru
          _
        // Predicated region
        $region89: #{tpu_custom_call.1} parent=71 // pred_check
          %p546 = pneg %p173
        $region90: #{tpu_custom_call.1} parent=71 // pred_check_branch
          %548 = sbr.rel (%p546) target = $region92
        $region91: #{tpu_custom_call.1} parent=71 // pred_region
          %550 = dma.done [#allocation12], 1024
        $region92: #{tpu_custom_call.1} parent=71 // pred_fallthru
          _
        // Predicated region
        $region93: #{tpu_custom_call.1} parent=71 // pred_check
          %p551 = pneg %p194
        $region94: #{tpu_custom_call.1} parent=71 // pred_check_branch
          %553 = sbr.rel (%p551) target = $region96
        $region95: #{tpu_custom_call.1} parent=71 // pred_region
          %555 = dma.done [#allocation15], 16
        $region96: #{tpu_custom_call.1} parent=71 // pred_fallthru
          _
        // Predicated region
        $region97: #{tpu_custom_call.1} parent=71 // pred_check
          %p556 = pneg %p215
        $region98: #{tpu_custom_call.1} parent=71 // pred_check_branch
          %558 = sbr.rel (%p556) target = $region100
        $region99: #{tpu_custom_call.1} parent=71 // pred_region
          %560 = dma.done [#allocation15], 16
        $region100: #{tpu_custom_call.1} parent=71 // pred_fallthru
          _
        // Predicated region
        $region101: #{tpu_custom_call.1} parent=71 // pred_check
          %p561 = pneg %p236
        $region102: #{tpu_custom_call.1} parent=71 // pred_check_branch
          %563 = sbr.rel (%p561) target = $region104
        $region103: #{tpu_custom_call.1} parent=71 // pred_region
          %565 = dma.done [#allocation18], 16
        $region104: #{tpu_custom_call.1} parent=71 // pred_fallthru
          _
        // Predicated region
        $region105: #{tpu_custom_call.1} parent=71 // pred_check
          %p566 = pneg %p257
        $region106: #{tpu_custom_call.1} parent=71 // pred_check_branch
          %568 = sbr.rel (%p566) target = $region108
        $region107: #{tpu_custom_call.1} parent=71 // pred_region
          %570 = dma.done [#allocation18], 4096
        $region108: #{tpu_custom_call.1} parent=71 // pred_fallthru
          _
        // Predicated region
        $region109: #{tpu_custom_call.1} parent=71 // pred_check
          %p571 = pneg %p299
        $region110: #{tpu_custom_call.1} parent=71 // pred_check_branch
          %573 = sbr.rel (%p571) target = $region112
        $region111: #{tpu_custom_call.1} parent=71 // pred_region
          %575 = dma.done [#allocation21], 4096
        $region112: #{tpu_custom_call.1} parent=71 // pred_fallthru
          _
        %s576 = sand.u32 %s55, 1
        %s577 = scalar_lea.sflag [#allocation6], %s576
        %s578 = sand.u32 %s55, 1
        %s579 = smul.addr %s578, 16
        %s580 = scalar_lea.vmem [#allocation5], %s579
        %p581 = pneg %p68
        %p582 = pneg %p65
        %p583 = pneg %p89
        %p584 = pneg %p86
        %p585 = pneg %p110
        %p586 = pneg %p107
        %p587 = pneg %p131
        %p588 = pneg %p128
        %p589 = pneg %p152
        %p590 = pneg %p149
        %p591 = pneg %p173
        %p592 = pneg %p170
        %p593 = pneg %p194
        %p594 = pneg %p191
        %p595 = pneg %p215
        %p596 = pneg %p212
        %p597 = pneg %p236
        %p598 = pneg %p233
        %p599 = pneg %p257
        %p600 = pneg %p254
        %p601 = pneg %p278
        %p602 = pneg %p275
        %p603 = pneg %p299
        %p604 = pneg %p296
        %p605 = pneg %p320
        %p606 = pneg %p317
        %p607 = pneg %p348
        %p608 = pneg %p345
        %s609 = sand.u32 %s335, 1
        %s610 = scalar_lea.sflag [#allocation7], %s609
        %s611 = sand.u32 %s335, 1
        %s612 = smul.addr %s611, 8
        %s613 = scalar_lea.vmem [#allocation22], %s612
        %p615 = scmp.eq.s32.totalorder %s40, 0
        // Predicated region
        $region113: #{tpu_custom_call.1} parent=71 // pred_check
          %p616 = pneg %p615
        $region114: #{tpu_custom_call.1} parent=71 // pred_check_branch
          %618 = sbr.rel (%p616) target = $region116
        $region115: #{tpu_custom_call.1} parent=71 // pred_region
          %v619 = vld [vmem:[%s525] sm:$0xff]
          %v620 = vld [vmem:[%s525 + $0x8] sm:$0xff]
          %v621 = vld [vmem:[#allocation8] sm:$0x1]
          %v622 = vld [vmem:[#allocation10] sm:$0x1]
          %623 = vadd.xlane.f32.xlu0 %v619
          %v624 = vpop.xlane.xlu0 %623
          %625 = vadd.xlane.f32.xlu0 %v620
          %v626 = vpop.xlane.xlu0 %625
          %v627 = vrcp.pop 128.0
          %v628 = vmul.f32 128.0, %v627
          %v629 = vsub.f32 1.0, %v628
          %v630 = vmul.f32 %v627, %v629
          %v631 = vadd.f32 %v627, %v630
          %vm632 = vweird.f32 %v627
          %v633 = vsel %vm632, %v627, %v631
          %v634 = vmul.f32 %v624, %v633
          %v635 = vmul.f32 %v626, %v633
          %v636 = vsub.f32 %v619, %v634
          %v637 = vsub.f32 %v620, %v635
          %v638 = vmul.f32 %v636, %v636
          %v639 = vmul.f32 %v637, %v637
          %640 = vadd.xlane.f32.xlu0 %v638
          %v641 = vpop.xlane.xlu0 %640
          %642 = vadd.xlane.f32.xlu0 %v639
          %v643 = vpop.xlane.xlu0 %642
          %v644 = vmul.f32 %v641, %v633
          %v645 = vmul.f32 %v643, %v633
          %v646 = vadd.f32 %v644, 1e-05
          %v647 = vadd.f32 %v645, 1e-05
          %v648 = vrsqrt.pop %v646
          %v649 = vmul.f32 %v648, %v646
          %v650 = vmul.f32 %v649, %v648
          %v651 = vmul.f32 0.5, %v650
          %v652 = vsub.f32 1.5, %v651
          %v653 = vmul.f32 %v648, %v652
          %vm654 = vweird.f32 %v646
          %vm655 = vweird.f32 %v648
          %vm656 = vmor %vm654, %vm655
          %v657 = vsel %vm656, %v648, %v653
          %v658 = vrsqrt.pop %v647
          %v659 = vmul.f32 %v658, %v647
          %v660 = vmul.f32 %v659, %v658
          %v661 = vmul.f32 0.5, %v660
          %v662 = vsub.f32 1.5, %v661
          %v663 = vmul.f32 %v658, %v662
          %vm664 = vweird.f32 %v647
          %vm665 = vweird.f32 %v658
          %vm666 = vmor %vm664, %vm665
          %v667 = vsel %vm666, %v658, %v663
          %v668 = vmul.f32 %v636, %v657
          %v669 = vmul.f32 %v637, %v667
          %v671 = vperm.slane %v621, 0
          %v673 = vmul.f32 %v668, %v671
          %v674 = vmul.f32 %v669, %v671
          %v676 = vperm.slane %v622, 0
          %v678 = vadd.f32 %v673, %v676
          %v679 = vadd.f32 %v674, %v676
          %v680 = vpack.c.bf16 %v679, %v678
          %v681 = vld [vmem:[#allocation11] sm:$0xff]
          %v682 = vld [vmem:[#allocation11 + $0x8] sm:$0xf]
          %v683 = vld [vmem:[#allocation11 + $0xc] sm:$0xff]
          %v684 = vld [vmem:[#allocation11 + $0x14] sm:$0xf]
          %v685 = vld [vmem:[#allocation11 + $0x18] sm:$0xff]
          %v686 = vld [vmem:[#allocation11 + $0x20] sm:$0xf]
          %v687 = vld [vmem:[#allocation11 + $0x24] sm:$0xff]
          %v688 = vld [vmem:[#allocation11 + $0x2c] sm:$0xf]
          %v689 = vld [vmem:[#allocation11 + $0x30] sm:$0xff]
          %v690 = vld [vmem:[#allocation11 + $0x38] sm:$0xf]
          %v691 = vld [vmem:[#allocation11 + $0x3c] sm:$0xff]
          %v692 = vld [vmem:[#allocation11 + $0x44] sm:$0xf]
          %v693 = vld [vmem:[#allocation11 + $0x48] sm:$0xff]
          %v694 = vld [vmem:[#allocation11 + $0x50] sm:$0xf]
          %v695 = vld [vmem:[#allocation11 + $0x54] sm:$0xff]
          %v696 = vld [vmem:[#allocation11 + $0x5c] sm:$0xf]
          %v697 = vld [vmem:[#allocation11 + $0x60] sm:$0xff]
          %v698 = vld [vmem:[#allocation11 + $0x68] sm:$0xf]
          %v699 = vld [vmem:[#allocation11 + $0x6c] sm:$0xff]
          %v700 = vld [vmem:[#allocation11 + $0x74] sm:$0xf]
          %v701 = vld [vmem:[#allocation11 + $0x78] sm:$0xff]
          %v702 = vld [vmem:[#allocation11 + $0x80] sm:$0xf]
          %v703 = vld [vmem:[#allocation11 + $0x84] sm:$0xff]
          %v704 = vld [vmem:[#allocation11 + $0x8c] sm:$0xf]
          %v705 = vld [vmem:[#allocation11 + $0x90] sm:$0xff]
          %v706 = vld [vmem:[#allocation11 + $0x98] sm:$0xf]
          %v707 = vld [vmem:[#allocation11 + $0x9c] sm:$0xff]
          %v708 = vld [vmem:[#allocation11 + $0xa4] sm:$0xf]
          %v709 = vld [vmem:[#allocation11 + $0xa8] sm:$0xff]
          %v710 = vld [vmem:[#allocation11 + $0xb0] sm:$0xf]
          %v711 = vld [vmem:[#allocation11 + $0xb4] sm:$0xff]
          %v712 = vld [vmem:[#allocation11 + $0xbc] sm:$0xf]
          %v713 = vld [vmem:[%s4] sm:$0x7]
          %v715 = vperm.slane %v713, 0
          %v716 = vperm.slane %v713, 1
          %v717 = vperm.slane %v713, 2
          %v753 = vunpack.c.l.b16 %v681
          %v754 = vunpack.c.h.b16 %v681
          %v755 = vunpack.c.l.b16 %v682
          %v756 = vunpack.c.l.b16 %v683
          %v757 = vunpack.c.h.b16 %v683
          %v758 = vunpack.c.l.b16 %v684
          %v759 = vunpack.c.l.b16 %v685
          %v760 = vunpack.c.h.b16 %v685
          %v761 = vunpack.c.l.b16 %v686
          %v762 = vunpack.c.l.b16 %v687
          %v763 = vunpack.c.h.b16 %v687
          %v764 = vunpack.c.l.b16 %v688
          %v765 = vunpack.c.l.b16 %v689
          %v766 = vunpack.c.h.b16 %v689
          %v767 = vunpack.c.l.b16 %v690
          %v768 = vunpack.c.l.b16 %v691
          %v769 = vunpack.c.h.b16 %v691
          %v770 = vunpack.c.l.b16 %v692
          %v771 = vunpack.c.l.b16 %v693
          %v772 = vunpack.c.h.b16 %v693
          %v773 = vunpack.c.l.b16 %v694
          %v774 = vunpack.c.l.b16 %v695
          %v775 = vunpack.c.h.b16 %v695
          %v776 = vunpack.c.l.b16 %v696
          %v777 = vunpack.c.l.b16 %v697
          %v778 = vunpack.c.h.b16 %v697
          %v779 = vunpack.c.l.b16 %v698
          %v780 = vunpack.c.l.b16 %v699
          %v781 = vunpack.c.h.b16 %v699
          %v782 = vunpack.c.l.b16 %v700
          %v783 = vunpack.c.l.b16 %v701
          %v784 = vunpack.c.h.b16 %v701
          %v785 = vunpack.c.l.b16 %v702
          %v786 = vunpack.c.l.b16 %v703
          %v787 = vunpack.c.h.b16 %v703
          %v788 = vunpack.c.l.b16 %v704
          %v789 = vunpack.c.l.b16 %v705
          %v790 = vunpack.c.h.b16 %v705
          %v791 = vunpack.c.l.b16 %v706
          %v792 = vunpack.c.l.b16 %v707
          %v793 = vunpack.c.h.b16 %v707
          %v794 = vunpack.c.l.b16 %v708
          %v795 = vunpack.c.l.b16 %v709
          %v796 = vunpack.c.h.b16 %v709
          %v797 = vunpack.c.l.b16 %v710
          %v798 = vunpack.c.l.b16 %v711
          %v799 = vunpack.c.h.b16 %v711
          %v800 = vunpack.c.l.b16 %v712
          %v801 = vpack.c.b16 %v756, %v753
          %v802 = vpack.c.b16 %v757, %v754
          %v803 = vpack.c.b16 %v758, %v755
          %v804 = vpack.c.b16 %v762, %v759
          %v805 = vpack.c.b16 %v763, %v760
          %v806 = vpack.c.b16 %v764, %v761
          %v807 = vpack.c.b16 %v768, %v765
          %v808 = vpack.c.b16 %v769, %v766
          %v809 = vpack.c.b16 %v770, %v767
          %v810 = vpack.c.b16 %v774, %v771
          %v811 = vpack.c.b16 %v775, %v772
          %v812 = vpack.c.b16 %v776, %v773
          %v813 = vpack.c.b16 %v780, %v777
          %v814 = vpack.c.b16 %v781, %v778
          %v815 = vpack.c.b16 %v782, %v779
          %v816 = vpack.c.b16 %v786, %v783
          %v817 = vpack.c.b16 %v787, %v784
          %v818 = vpack.c.b16 %v788, %v785
          %v819 = vpack.c.b16 %v792, %v789
          %v820 = vpack.c.b16 %v793, %v790
          %v821 = vpack.c.b16 %v794, %v791
          %v822 = vpack.c.b16 %v798, %v795
          %v823 = vpack.c.b16 %v799, %v796
          %v824 = vpack.c.b16 %v800, %v797
          %849 = vmatpush.bf16.msra.mxu0 %v822
          %850 = vmatpush.bf16.msra.mxu0 %v819
          %851 = vmatpush.bf16.msra.mxu0 %v816
          %852 = vmatpush.bf16.msra.mxu0 %v813
          %853 = vmatpush.bf16.msra.mxu0 %v810
          %854 = vmatpush.bf16.msra.mxu0 %v807
          %855 = vmatpush.bf16.msra.mxu0 %v804
          %856 = vmatpush.bf16.msra.mxu0 %v801
          %857 = vmatmul.bf16.gmra.mxu0 %v680
          %v858 = vpop.f32.mrf.mxu0
          %v859 = vadd.f32 %v715, %v858
          %v860 = vpop.f32.mrf.mxu0
          %v861 = vadd.f32 %v715, %v860
          %862 = vdwg.mxu0
          %863 = vmatpush.bf16.msra.mxu0 %v823
          %864 = vmatpush.bf16.msra.mxu0 %v820
          %865 = vmatpush.bf16.msra.mxu0 %v817
          %866 = vmatpush.bf16.msra.mxu0 %v814
          %867 = vmatpush.bf16.msra.mxu0 %v811
          %868 = vmatpush.bf16.msra.mxu0 %v808
          %869 = vmatpush.bf16.msra.mxu0 %v805
          %870 = vmatpush.bf16.msra.mxu0 %v802
          %871 = vmatmul.bf16.gmra.mxu0 %v680
          %v872 = vpop.f32.mrf.mxu0
          %v873 = vadd.f32 %v716, %v872
          %v874 = vpop.f32.mrf.mxu0
          %v875 = vadd.f32 %v716, %v874
          %876 = vdwg.mxu0
          %877 = vmatpush.bf16.msra.mxu0 %v824
          %878 = vmatpush.bf16.msra.mxu0 %v821
          %879 = vmatpush.bf16.msra.mxu0 %v818
          %880 = vmatpush.bf16.msra.mxu0 %v815
          %881 = vmatpush.bf16.msra.mxu0 %v812
          %882 = vmatpush.bf16.msra.mxu0 %v809
          %883 = vmatpush.bf16.msra.mxu0 %v806
          %884 = vmatpush.bf16.msra.mxu0 %v803
          %885 = vmatmul.bf16.gmra.mxu0 %v680
          %v886 = vpop.f32.mrf.mxu0
          %v887 = vadd.f32 %v717, %v886
          %v888 = vpop.f32.mrf.mxu0
          %v889 = vadd.f32 %v717, %v888
          %890 = vdwg.mxu0
          %v891 = vpack.c.bf16 %v873, %v859
          %v892 = vpack.c.bf16 %v887, %v887
          %v893 = vpack.c.bf16 %v875, %v861
          %v894 = vpack.c.bf16 %v889, %v889
          %vm895 = vcmask 257024
          %896 = vst.msk [vmem:[#allocation2] sm:$0xf] %vm895, %v891
          %897 = vst.msk [vmem:[#allocation2 + $0x4] sm:$0xf] %vm895, %v893
          %v900 = vrot.slane %v891, 4
          %v901 = vrot.slane %v893, 4
          %904 = vst.msk [vmem:[#allocation3] sm:$0xf] %vm895, %v900
          %905 = vst.msk [vmem:[#allocation3 + $0x4] sm:$0xf] %vm895, %v901
          %906 = vst.msk [vmem:[#allocation4] sm:$0xf] %vm895, %v892
          %907 = vst.msk [vmem:[#allocation4 + $0x4] sm:$0xf] %vm895, %v894
          %908 = vrot.lane.b32.xlu0 %v891, 96
          %v909 = vpop.permute.xlu0 %908
          %910 = vrot.lane.b32.xlu0 %v893, 96
          %v911 = vpop.permute.xlu0 %910
          %s914 = scalar_lea.vmem [#allocation2], 8
          %915 = vst.msk [vmem:[%s914] sm:$0xf] %vm895, %v909
          %916 = vst.msk [vmem:[%s914 + $0x4] sm:$0xf] %vm895, %v911
          %v917 = vrot.slane %v909, 4
          %v918 = vrot.slane %v911, 4
          %s921 = scalar_lea.vmem [#allocation3], 8
          %922 = vst.msk [vmem:[%s921] sm:$0xf] %vm895, %v917
          %923 = vst.msk [vmem:[%s921 + $0x4] sm:$0xf] %vm895, %v918
          %926 = vrot.lane.b32.xlu0 %v892, 96
          %v927 = vpop.permute.xlu0 %926
          %928 = vrot.lane.b32.xlu0 %v894, 96
          %v929 = vpop.permute.xlu0 %928
          %s932 = scalar_lea.vmem [#allocation4], 8
          %933 = vst.msk [vmem:[%s932] sm:$0xf] %vm895, %v927
          %934 = vst.msk [vmem:[%s932 + $0x4] sm:$0xf] %vm895, %v929
          %935 = vrot.lane.b32.xlu0 %v891, 64
          %v936 = vpop.permute.xlu0 %935
          %937 = vrot.lane.b32.xlu0 %v893, 64
          %v938 = vpop.permute.xlu0 %937
          %s941 = scalar_lea.vmem [#allocation2], 16
          %942 = vst.msk [vmem:[%s941] sm:$0xf] %vm895, %v936
          %943 = vst.msk [vmem:[%s941 + $0x4] sm:$0xf] %vm895, %v938
          %v944 = vrot.slane %v936, 4
          %v945 = vrot.slane %v938, 4
          %s948 = scalar_lea.vmem [#allocation3], 16
          %949 = vst.msk [vmem:[%s948] sm:$0xf] %vm895, %v944
          %950 = vst.msk [vmem:[%s948 + $0x4] sm:$0xf] %vm895, %v945
          %951 = vrot.lane.b32.xlu0 %v892, 64
          %v952 = vpop.permute.xlu0 %951
          %953 = vrot.lane.b32.xlu0 %v894, 64
          %v954 = vpop.permute.xlu0 %953
          %s957 = scalar_lea.vmem [#allocation4], 16
          %958 = vst.msk [vmem:[%s957] sm:$0xf] %vm895, %v952
          %959 = vst.msk [vmem:[%s957 + $0x4] sm:$0xf] %vm895, %v954
          %960 = vrot.lane.b32.xlu0 %v891, 32
          %v961 = vpop.permute.xlu0 %960
          %962 = vrot.lane.b32.xlu0 %v893, 32
          %v963 = vpop.permute.xlu0 %962
          %s966 = scalar_lea.vmem [#allocation2], 24
          %967 = vst.msk [vmem:[%s966] sm:$0xf] %vm895, %v961
          %968 = vst.msk [vmem:[%s966 + $0x4] sm:$0xf] %vm895, %v963
          %v969 = vrot.slane %v961, 4
          %v970 = vrot.slane %v963, 4
          %s973 = scalar_lea.vmem [#allocation3], 24
          %974 = vst.msk [vmem:[%s973] sm:$0xf] %vm895, %v969
          %975 = vst.msk [vmem:[%s973 + $0x4] sm:$0xf] %vm895, %v970
          %976 = vrot.lane.b32.xlu0 %v892, 32
          %v977 = vpop.permute.xlu0 %976
          %978 = vrot.lane.b32.xlu0 %v894, 32
          %v979 = vpop.permute.xlu0 %978
          %s982 = scalar_lea.vmem [#allocation4], 24
          %983 = vst.msk [vmem:[%s982] sm:$0xf] %vm895, %v977
          %984 = vst.msk [vmem:[%s982 + $0x4] sm:$0xf] %vm895, %v979
        $region116: #{tpu_custom_call.1} parent=71 // pred_fallthru
          _
        %s985 = smul.u32 %s40, 8
        %s986 = scalar_lea.vmem %s525, %s985 [#allocation5]
        %v987 = vld [vmem:[%s986] sm:$0xff]
        %s988 = sshra.s32 %s985, 3
        %s989 = sand.u32 %s985, 7
        %s990 = smul.addr %s988, 4
        %s991 = scalar_lea.vmem [#allocation2], %s990
        %v992 = vld [vmem:[%s991] sm:$0xf]
        %v993 = vld [vmem:[%s991 + $0x8] sm:$0xf]
        %v994 = vld [vmem:[%s991 + $0x10] sm:$0xf]
        %v995 = vld [vmem:[%s991 + $0x18] sm:$0xf]
        %v996 = vld [vmem:[#allocation3] sm:$0xf]
        %v997 = vld [vmem:[#allocation3 + $0x4] sm:$0xf]
        %v998 = vld [vmem:[#allocation3 + $0x8] sm:$0xf]
        %v999 = vld [vmem:[#allocation3 + $0xc] sm:$0xf]
        %v1000 = vld [vmem:[#allocation3 + $0x10] sm:$0xf]
        %v1001 = vld [vmem:[#allocation3 + $0x14] sm:$0xf]
        %v1002 = vld [vmem:[#allocation3 + $0x18] sm:$0xf]
        %v1003 = vld [vmem:[#allocation3 + $0x1c] sm:$0xf]
        %v1004 = vld [vmem:[#allocation4] sm:$0xf]
        %v1005 = vld [vmem:[#allocation4 + $0x4] sm:$0xf]
        %v1006 = vld [vmem:[#allocation4 + $0x8] sm:$0xf]
        %v1007 = vld [vmem:[#allocation4 + $0xc] sm:$0xf]
        %v1008 = vld [vmem:[#allocation4 + $0x10] sm:$0xf]
        %v1009 = vld [vmem:[#allocation4 + $0x14] sm:$0xf]
        %v1010 = vld [vmem:[#allocation4 + $0x18] sm:$0xf]
        %v1011 = vld [vmem:[#allocation4 + $0x1c] sm:$0xf]
        %v1014 = vunpack.c.l.b16 %v996
        %v1015 = vunpack.c.l.b16 %v997
        %v1016 = vpack.c.b16 %v1015, %v1014
        %vm1017 = vcmask 261120
        %v1019 = vsel %vm1017, %v992, 0
        %v1022 = vsel %vm1017, %v1016, 0
        %1024 = vmatpush.bf16.xpose.msra.mxu0 0
        %1025 = vmatpush.bf16.xpose.msra.mxu0 0
        %1026 = vmatpush.bf16.xpose.msra.mxu0 0
        %1027 = vmatpush.bf16.xpose.msra.mxu0 0
        %1028 = vmatpush.bf16.xpose.msra.mxu0 0
        %1029 = vmatpush.bf16.xpose.msra.mxu0 0
        %1030 = vmatpush.bf16.xpose.msra.mxu0 0
        %1031 = vmatpush.bf16.xpose.msra.mxu0 %v1022
        %1032 = vmatmul.bf16.gmra.mxu0 %v1019
        %v1033 = vpop.f32.mrf.mxu0
        %v1034 = vadd.f32 0.0, %v1033
        %v1035 = vpop.f32.mrf.mxu0
        %1036 = vdwg.mxu0
        %v1039 = vunpack.c.l.b16 %v998
        %v1040 = vunpack.c.l.b16 %v999
        %v1041 = vpack.c.b16 %v1040, %v1039
        %v1043 = vsel %vm1017, %v993, 0
        %v1046 = vsel %vm1017, %v1041, 0
        %1048 = vmatpush.bf16.xpose.msra.mxu0 0
        %1049 = vmatpush.bf16.xpose.msra.mxu0 0
        %1050 = vmatpush.bf16.xpose.msra.mxu0 0
        %1051 = vmatpush.bf16.xpose.msra.mxu0 0
        %1052 = vmatpush.bf16.xpose.msra.mxu0 0
        %1053 = vmatpush.bf16.xpose.msra.mxu0 0
        %1054 = vmatpush.bf16.xpose.msra.mxu0 0
        %1055 = vmatpush.bf16.xpose.msra.mxu0 %v1046
        %1056 = vmatmul.bf16.gmra.mxu0 %v1043
        %v1057 = vpop.f32.mrf.mxu0
        %v1058 = vadd.f32 0.0, %v1057
        %v1059 = vpop.f32.mrf.mxu0
        %1060 = vdwg.mxu0
        %v1063 = vunpack.c.l.b16 %v1000
        %v1064 = vunpack.c.l.b16 %v1001
        %v1065 = vpack.c.b16 %v1064, %v1063
        %v1067 = vsel %vm1017, %v994, 0
        %v1070 = vsel %vm1017, %v1065, 0
        %1072 = vmatpush.bf16.xpose.msra.mxu0 0
        %1073 = vmatpush.bf16.xpose.msra.mxu0 0
        %1074 = vmatpush.bf16.xpose.msra.mxu0 0
        %1075 = vmatpush.bf16.xpose.msra.mxu0 0
        %1076 = vmatpush.bf16.xpose.msra.mxu0 0
        %1077 = vmatpush.bf16.xpose.msra.mxu0 0
        %1078 = vmatpush.bf16.xpose.msra.mxu0 0
        %1079 = vmatpush.bf16.xpose.msra.mxu0 %v1070
        %1080 = vmatmul.bf16.gmra.mxu0 %v1067
        %v1081 = vpop.f32.mrf.mxu0
        %v1082 = vadd.f32 0.0, %v1081
        %v1083 = vpop.f32.mrf.mxu0
        %1084 = vdwg.mxu0
        %v1087 = vunpack.c.l.b16 %v1002
        %v1088 = vunpack.c.l.b16 %v1003
        %v1089 = vpack.c.b16 %v1088, %v1087
        %v1091 = vsel %vm1017, %v995, 0
        %v1094 = vsel %vm1017, %v1089, 0
        %1096 = vmatpush.bf16.xpose.msra.mxu0 0
        %1097 = vmatpush.bf16.xpose.msra.mxu0 0
        %1098 = vmatpush.bf16.xpose.msra.mxu0 0
        %1099 = vmatpush.bf16.xpose.msra.mxu0 0
        %1100 = vmatpush.bf16.xpose.msra.mxu0 0
        %1101 = vmatpush.bf16.xpose.msra.mxu0 0
        %1102 = vmatpush.bf16.xpose.msra.mxu0 0
        %1103 = vmatpush.bf16.xpose.msra.mxu0 %v1094
        %1104 = vmatmul.bf16.gmra.mxu0 %v1091
        %v1105 = vpop.f32.mrf.mxu0
        %v1106 = vadd.f32 0.0, %v1105
        %v1107 = vpop.f32.mrf.mxu0
        %1108 = vdwg.mxu0
        %v1109 = vlaneseq
        %v1110 = vshrl.u32 %v1109, 7
        %v1111 = vstv %s985
        %v1112 = vadd.s32 %v1111, %v1110
        %v1113 = vlaneseq
        %v1114 = vand.u32 %v1113, 127
        %vm1115 = vcmp.le.s32.totalorder %v1114, %v1112
        %v1116 = vsel %vm1115, 1, 0
        %vm1117 = vcmp.eq.s32.totalorder %v1116, 1
        %v1118 = vsel %vm1117, %v1034, -1e+30
        %v1119 = vsel %vm1117, %v1058, -1e+30
        %v1120 = vsel %vm1117, %v1082, -1e+30
        %v1121 = vsel %vm1117, %v1106, -1e+30
        %vm1122 = vcmask 130048
        %v1123 = vsel %vm1122, %v1118, -inf
        %1124 = vmax.xlane.f32.xlu0 %v1123
        %v1125 = vpop.xlane.xlu0 %1124
        %v1126 = vsel %vm1122, %v1119, -inf
        %1127 = vmax.xlane.f32.xlu0 %v1126
        %v1128 = vpop.xlane.xlu0 %1127
        %v1129 = vsel %vm1122, %v1120, -inf
        %1130 = vmax.xlane.f32.xlu0 %v1129
        %v1131 = vpop.xlane.xlu0 %1130
        %v1132 = vsel %vm1122, %v1121, -inf
        %1133 = vmax.xlane.f32.xlu0 %v1132
        %v1134 = vpop.xlane.xlu0 %1133
        %v1135 = vsub.f32 %v1118, %v1125
        %v1136 = vsub.f32 %v1119, %v1128
        %v1137 = vsub.f32 %v1120, %v1131
        %v1138 = vsub.f32 %v1121, %v1134
        %v1139 = vmul.f32 %v1135, 1.442695
        %v1140 = vpow.pop %v1139
        %v1141 = vmul.f32 %v1136, 1.442695
        %v1142 = vpow.pop %v1141
        %v1143 = vmul.f32 %v1137, 1.442695
        %v1144 = vpow.pop %v1143
        %v1145 = vmul.f32 %v1138, 1.442695
        %v1146 = vpow.pop %v1145
        %v1147 = vsel %vm1122, %v1140, 0.0
        %1148 = vadd.xlane.f32.xlu0 %v1147
        %v1149 = vpop.xlane.xlu0 %1148
        %v1150 = vsel %vm1122, %v1142, 0.0
        %1151 = vadd.xlane.f32.xlu0 %v1150
        %v1152 = vpop.xlane.xlu0 %1151
        %v1153 = vsel %vm1122, %v1144, 0.0
        %1154 = vadd.xlane.f32.xlu0 %v1153
        %v1155 = vpop.xlane.xlu0 %1154
        %v1156 = vsel %vm1122, %v1146, 0.0
        %1157 = vadd.xlane.f32.xlu0 %v1156
        %v1158 = vpop.xlane.xlu0 %1157
        %v1159 = vrcp.pop %v1149
        %v1160 = vrcp.pop %v1152
        %v1161 = vrcp.pop %v1155
        %v1162 = vrcp.pop %v1158
        %v1163 = vmul.f32 %v1140, %v1159
        %v1164 = vmul.f32 %v1142, %v1160
        %v1165 = vmul.f32 %v1144, %v1161
        %v1166 = vmul.f32 %v1146, %v1162
        %v1167 = vpack.c.bf16 %v1163, %v1163
        %v1168 = vpack.c.bf16 %v1164, %v1164
        %v1169 = vpack.c.bf16 %v1165, %v1165
        %v1170 = vpack.c.bf16 %v1166, %v1166
        %v1173 = vunpack.c.l.b16 %v1004
        %v1174 = vunpack.c.l.b16 %v1005
        %v1175 = vpack.c.b16 %v1174, %v1173
        %v1178 = vsel %vm1122, %v1167, 0
        %1180 = vmatpush.bf16.msra.mxu0 0
        %1181 = vmatpush.bf16.msra.mxu0 0
        %1182 = vmatpush.bf16.msra.mxu0 0
        %1183 = vmatpush.bf16.msra.mxu0 0
        %1184 = vmatpush.bf16.msra.mxu0 0
        %1185 = vmatpush.bf16.msra.mxu0 0
        %1186 = vmatpush.bf16.msra.mxu0 0
        %1187 = vmatpush.bf16.msra.mxu0 %v1175
        %1188 = vmatmul.bf16.gmra.mxu0 %v1178
        %v1189 = vpop.f32.mrf.mxu0
        %v1190 = vadd.f32 0.0, %v1189
        %v1191 = vpop.f32.mrf.mxu0
        %1192 = vdwg.mxu0
        %v1195 = vunpack.c.l.b16 %v1006
        %v1196 = vunpack.c.l.b16 %v1007
        %v1197 = vpack.c.b16 %v1196, %v1195
        %v1200 = vsel %vm1122, %v1168, 0
        %1202 = vmatpush.bf16.msra.mxu0 0
        %1203 = vmatpush.bf16.msra.mxu0 0
        %1204 = vmatpush.bf16.msra.mxu0 0
        %1205 = vmatpush.bf16.msra.mxu0 0
        %1206 = vmatpush.bf16.msra.mxu0 0
        %1207 = vmatpush.bf16.msra.mxu0 0
        %1208 = vmatpush.bf16.msra.mxu0 0
        %1209 = vmatpush.bf16.msra.mxu0 %v1197
        %1210 = vmatmul.bf16.gmra.mxu0 %v1200
        %v1211 = vpop.f32.mrf.mxu0
        %v1212 = vadd.f32 0.0, %v1211
        %v1213 = vpop.f32.mrf.mxu0
        %1214 = vdwg.mxu0
        %v1217 = vunpack.c.l.b16 %v1008
        %v1218 = vunpack.c.l.b16 %v1009
        %v1219 = vpack.c.b16 %v1218, %v1217
        %v1222 = vsel %vm1122, %v1169, 0
        %1224 = vmatpush.bf16.msra.mxu0 0
        %1225 = vmatpush.bf16.msra.mxu0 0
        %1226 = vmatpush.bf16.msra.mxu0 0
        %1227 = vmatpush.bf16.msra.mxu0 0
        %1228 = vmatpush.bf16.msra.mxu0 0
        %1229 = vmatpush.bf16.msra.mxu0 0
        %1230 = vmatpush.bf16.msra.mxu0 0
        %1231 = vmatpush.bf16.msra.mxu0 %v1219
        %1232 = vmatmul.bf16.gmra.mxu0 %v1222
        %v1233 = vpop.f32.mrf.mxu0
        %v1234 = vadd.f32 0.0, %v1233
        %v1235 = vpop.f32.mrf.mxu0
        %1236 = vdwg.mxu0
        %v1239 = vunpack.c.l.b16 %v1010
        %v1240 = vunpack.c.l.b16 %v1011
        %v1241 = vpack.c.b16 %v1240, %v1239
        %v1244 = vsel %vm1122, %v1170, 0
        %1246 = vmatpush.bf16.msra.mxu0 0
        %1247 = vmatpush.bf16.msra.mxu0 0
        %1248 = vmatpush.bf16.msra.mxu0 0
        %1249 = vmatpush.bf16.msra.mxu0 0
        %1250 = vmatpush.bf16.msra.mxu0 0
        %1251 = vmatpush.bf16.msra.mxu0 0
        %1252 = vmatpush.bf16.msra.mxu0 0
        %1253 = vmatpush.bf16.msra.mxu0 %v1241
        %1254 = vmatmul.bf16.gmra.mxu0 %v1244
        %v1255 = vpop.f32.mrf.mxu0
        %v1256 = vadd.f32 0.0, %v1255
        %v1257 = vpop.f32.mrf.mxu0
        %1258 = vdwg.mxu0
        %1260 = vrot.lane.b32.xlu0 %v1212, 32
        %v1261 = vpop.permute.xlu0 %1260
        %1264 = vrot.lane.b32.xlu0 %v1234, 64
        %v1265 = vpop.permute.xlu0 %1264
        %1268 = vrot.lane.b32.xlu0 %v1256, 96
        %v1269 = vpop.permute.xlu0 %1268
        %v1271 = vsel %vm1017, %v1190, %v1261
        %vm1272 = vcmask 523264
        %v1273 = vsel %vm1272, %v1271, %v1265
        %vm1274 = vcmask 785408
        %v1275 = vsel %vm1274, %v1273, %v1269
        %v1276 = vpack.c.bf16 %v1275, %v1275
        %v1277 = vld [vmem:[#allocation13] sm:$0xf]
        %v1278 = vld [vmem:[#allocation13 + $0x4] sm:$0xf]
        %v1279 = vld [vmem:[#allocation13 + $0x8] sm:$0xf]
        %v1280 = vld [vmem:[#allocation13 + $0xc] sm:$0xf]
        %v1281 = vld [vmem:[#allocation13 + $0x10] sm:$0xf]
        %v1282 = vld [vmem:[#allocation13 + $0x14] sm:$0xf]
        %v1283 = vld [vmem:[#allocation13 + $0x18] sm:$0xf]
        %v1284 = vld [vmem:[#allocation13 + $0x1c] sm:$0xf]
        %v1285 = vld [vmem:[#allocation13 + $0x20] sm:$0xf]
        %v1286 = vld [vmem:[#allocation13 + $0x24] sm:$0xf]
        %v1287 = vld [vmem:[#allocation13 + $0x28] sm:$0xf]
        %v1288 = vld [vmem:[#allocation13 + $0x2c] sm:$0xf]
        %v1289 = vld [vmem:[#allocation13 + $0x30] sm:$0xf]
        %v1290 = vld [vmem:[#allocation13 + $0x34] sm:$0xf]
        %v1291 = vld [vmem:[#allocation13 + $0x38] sm:$0xf]
        %v1292 = vld [vmem:[#allocation13 + $0x3c] sm:$0xf]
        %v1293 = vld [vmem:[#allocation14] sm:$0x1]
        %v1295 = vperm.slane %v1293, 0
        %v1313 = vunpack.c.l.b16 %v1277
        %v1314 = vunpack.c.l.b16 %v1278
        %v1315 = vunpack.c.l.b16 %v1279
        %v1316 = vunpack.c.l.b16 %v1280
        %v1317 = vunpack.c.l.b16 %v1281
        %v1318 = vunpack.c.l.b16 %v1282
        %v1319 = vunpack.c.l.b16 %v1283
        %v1320 = vunpack.c.l.b16 %v1284
        %v1321 = vunpack.c.l.b16 %v1285
        %v1322 = vunpack.c.l.b16 %v1286
        %v1323 = vunpack.c.l.b16 %v1287
        %v1324 = vunpack.c.l.b16 %v1288
        %v1325 = vunpack.c.l.b16 %v1289
        %v1326 = vunpack.c.l.b16 %v1290
        %v1327 = vunpack.c.l.b16 %v1291
        %v1328 = vunpack.c.l.b16 %v1292
        %v1329 = vpack.c.b16 %v1314, %v1313
        %v1330 = vpack.c.b16 %v1316, %v1315
        %v1331 = vpack.c.b16 %v1318, %v1317
        %v1332 = vpack.c.b16 %v1320, %v1319
        %v1333 = vpack.c.b16 %v1322, %v1321
        %v1334 = vpack.c.b16 %v1324, %v1323
        %v1335 = vpack.c.b16 %v1326, %v1325
        %v1336 = vpack.c.b16 %v1328, %v1327
        %1345 = vmatpush.bf16.msra.mxu0 %v1336
        %1346 = vmatpush.bf16.msra.mxu0 %v1335
        %1347 = vmatpush.bf16.msra.mxu0 %v1334
        %1348 = vmatpush.bf16.msra.mxu0 %v1333
        %1349 = vmatpush.bf16.msra.mxu0 %v1332
        %1350 = vmatpush.bf16.msra.mxu0 %v1331
        %1351 = vmatpush.bf16.msra.mxu0 %v1330
        %1352 = vmatpush.bf16.msra.mxu0 %v1329
        %1353 = vmatmul.bf16.gmra.mxu0 %v1276
        %v1354 = vpop.f32.mrf.mxu0
        %v1355 = vadd.f32 %v1295, %v1354
        %v1356 = vpop.f32.mrf.mxu0
        %1357 = vdwg.mxu0
        %v1358 = vadd.f32 %v987, %v1355
        %v1359 = vld [vmem:[#allocation16] sm:$0x1]
        %v1360 = vld [vmem:[#allocation17] sm:$0x1]
        %1361 = vadd.xlane.f32.xlu0 %v1358
        %v1362 = vpop.xlane.xlu0 %1361
        %v1363 = vrcp.pop 128.0
        %v1364 = vmul.f32 128.0, %v1363
        %v1365 = vsub.f32 1.0, %v1364
        %v1366 = vmul.f32 %v1363, %v1365
        %v1367 = vadd.f32 %v1363, %v1366
        %vm1368 = vweird.f32 %v1363
        %v1369 = vsel %vm1368, %v1363, %v1367
        %v1370 = vmul.f32 %v1362, %v1369
        %v1371 = vsub.f32 %v1358, %v1370
        %v1372 = vmul.f32 %v1371, %v1371
        %1373 = vadd.xlane.f32.xlu0 %v1372
        %v1374 = vpop.xlane.xlu0 %1373
        %v1375 = vmul.f32 %v1374, %v1369
        %v1376 = vadd.f32 %v1375, 1e-05
        %v1377 = vrsqrt.pop %v1376
        %v1378 = vmul.f32 %v1377, %v1376
        %v1379 = vmul.f32 %v1378, %v1377
        %v1380 = vmul.f32 0.5, %v1379
        %v1381 = vsub.f32 1.5, %v1380
        %v1382 = vmul.f32 %v1377, %v1381
        %vm1383 = vweird.f32 %v1376
        %vm1384 = vweird.f32 %v1377
        %vm1385 = vmor %vm1383, %vm1384
        %v1386 = vsel %vm1385, %v1377, %v1382
        %v1387 = vmul.f32 %v1371, %v1386
        %v1389 = vperm.slane %v1359, 0
        %v1391 = vmul.f32 %v1387, %v1389
        %v1393 = vperm.slane %v1360, 0
        %v1395 = vadd.f32 %v1391, %v1393
        %v1396 = vpack.c.bf16 %v1395, %v1395
        %v1397 = vld [vmem:[#allocation19] sm:$0xff]
        %v1398 = vld [vmem:[#allocation19 + $0x8] sm:$0xff]
        %v1399 = vld [vmem:[#allocation19 + $0x10] sm:$0xff]
        %v1400 = vld [vmem:[#allocation19 + $0x18] sm:$0xff]
        %v1401 = vld [vmem:[#allocation19 + $0x20] sm:$0xff]
        %v1402 = vld [vmem:[#allocation19 + $0x28] sm:$0xff]
        %v1403 = vld [vmem:[#allocation19 + $0x30] sm:$0xff]
        %v1404 = vld [vmem:[#allocation19 + $0x38] sm:$0xff]
        %v1405 = vld [vmem:[#allocation19 + $0x40] sm:$0xff]
        %v1406 = vld [vmem:[#allocation19 + $0x48] sm:$0xff]
        %v1407 = vld [vmem:[#allocation19 + $0x50] sm:$0xff]
        %v1408 = vld [vmem:[#allocation19 + $0x58] sm:$0xff]
        %v1409 = vld [vmem:[#allocation19 + $0x60] sm:$0xff]
        %v1410 = vld [vmem:[#allocation19 + $0x68] sm:$0xff]
        %v1411 = vld [vmem:[#allocation19 + $0x70] sm:$0xff]
        %v1412 = vld [vmem:[#allocation19 + $0x78] sm:$0xff]
        %v1413 = vld [vmem:[#allocation19 + $0x80] sm:$0xff]
        %v1414 = vld [vmem:[#allocation19 + $0x88] sm:$0xff]
        %v1415 = vld [vmem:[#allocation19 + $0x90] sm:$0xff]
        %v1416 = vld [vmem:[#allocation19 + $0x98] sm:$0xff]
        %v1417 = vld [vmem:[#allocation19 + $0xa0] sm:$0xff]
        %v1418 = vld [vmem:[#allocation19 + $0xa8] sm:$0xff]
        %v1419 = vld [vmem:[#allocation19 + $0xb0] sm:$0xff]
        %v1420 = vld [vmem:[#allocation19 + $0xb8] sm:$0xff]
        %v1421 = vld [vmem:[#allocation19 + $0xc0] sm:$0xff]
        %v1422 = vld [vmem:[#allocation19 + $0xc8] sm:$0xff]
        %v1423 = vld [vmem:[#allocation19 + $0xd0] sm:$0xff]
        %v1424 = vld [vmem:[#allocation19 + $0xd8] sm:$0xff]
        %v1425 = vld [vmem:[#allocation19 + $0xe0] sm:$0xff]
        %v1426 = vld [vmem:[#allocation19 + $0xe8] sm:$0xff]
        %v1427 = vld [vmem:[#allocation19 + $0xf0] sm:$0xff]
        %v1428 = vld [vmem:[#allocation19 + $0xf8] sm:$0xff]
        %v1429 = vld [vmem:[%s10] sm:$0xf]
        %v1431 = vperm.slane %v1429, 0
        %v1432 = vperm.slane %v1429, 1
        %v1433 = vperm.slane %v1429, 2
        %v1434 = vperm.slane %v1429, 3
        %v1471 = vunpack.c.l.b16 %v1397
        %v1472 = vunpack.c.h.b16 %v1397
        %v1473 = vunpack.c.l.b16 %v1398
        %v1474 = vunpack.c.h.b16 %v1398
        %v1475 = vunpack.c.l.b16 %v1399
        %v1476 = vunpack.c.h.b16 %v1399
        %v1477 = vunpack.c.l.b16 %v1400
        %v1478 = vunpack.c.h.b16 %v1400
        %v1479 = vunpack.c.l.b16 %v1401
        %v1480 = vunpack.c.h.b16 %v1401
        %v1481 = vunpack.c.l.b16 %v1402
        %v1482 = vunpack.c.h.b16 %v1402
        %v1483 = vunpack.c.l.b16 %v1403
        %v1484 = vunpack.c.h.b16 %v1403
        %v1485 = vunpack.c.l.b16 %v1404
        %v1486 = vunpack.c.h.b16 %v1404
        %v1487 = vunpack.c.l.b16 %v1405
        %v1488 = vunpack.c.h.b16 %v1405
        %v1489 = vunpack.c.l.b16 %v1406
        %v1490 = vunpack.c.h.b16 %v1406
        %v1491 = vunpack.c.l.b16 %v1407
        %v1492 = vunpack.c.h.b16 %v1407
        %v1493 = vunpack.c.l.b16 %v1408
        %v1494 = vunpack.c.h.b16 %v1408
        %v1495 = vunpack.c.l.b16 %v1409
        %v1496 = vunpack.c.h.b16 %v1409
        %v1497 = vunpack.c.l.b16 %v1410
        %v1498 = vunpack.c.h.b16 %v1410
        %v1499 = vunpack.c.l.b16 %v1411
        %v1500 = vunpack.c.h.b16 %v1411
        %v1501 = vunpack.c.l.b16 %v1412
        %v1502 = vunpack.c.h.b16 %v1412
        %v1503 = vunpack.c.l.b16 %v1413
        %v1504 = vunpack.c.h.b16 %v1413
        %v1505 = vunpack.c.l.b16 %v1414
        %v1506 = vunpack.c.h.b16 %v1414
        %v1507 = vunpack.c.l.b16 %v1415
        %v1508 = vunpack.c.h.b16 %v1415
        %v1509 = vunpack.c.l.b16 %v1416
        %v1510 = vunpack.c.h.b16 %v1416
        %v1511 = vunpack.c.l.b16 %v1417
        %v1512 = vunpack.c.h.b16 %v1417
        %v1513 = vunpack.c.l.b16 %v1418
        %v1514 = vunpack.c.h.b16 %v1418
        %v1515 = vunpack.c.l.b16 %v1419
        %v1516 = vunpack.c.h.b16 %v1419
        %v1517 = vunpack.c.l.b16 %v1420
        %v1518 = vunpack.c.h.b16 %v1420
        %v1519 = vunpack.c.l.b16 %v1421
        %v1520 = vunpack.c.h.b16 %v1421
        %v1521 = vunpack.c.l.b16 %v1422
        %v1522 = vunpack.c.h.b16 %v1422
        %v1523 = vunpack.c.l.b16 %v1423
        %v1524 = vunpack.c.h.b16 %v1423
        %v1525 = vunpack.c.l.b16 %v1424
        %v1526 = vunpack.c.h.b16 %v1424
        %v1527 = vunpack.c.l.b16 %v1425
        %v1528 = vunpack.c.h.b16 %v1425
        %v1529 = vunpack.c.l.b16 %v1426
        %v1530 = vunpack.c.h.b16 %v1426
        %v1531 = vunpack.c.l.b16 %v1427
        %v1532 = vunpack.c.h.b16 %v1427
        %v1533 = vunpack.c.l.b16 %v1428
        %v1534 = vunpack.c.h.b16 %v1428
        %v1535 = vpack.c.b16 %v1475, %v1471
        %v1536 = vpack.c.b16 %v1476, %v1472
        %v1537 = vpack.c.b16 %v1477, %v1473
        %v1538 = vpack.c.b16 %v1478, %v1474
        %v1539 = vpack.c.b16 %v1483, %v1479
        %v1540 = vpack.c.b16 %v1484, %v1480
        %v1541 = vpack.c.b16 %v1485, %v1481
        %v1542 = vpack.c.b16 %v1486, %v1482
        %v1543 = vpack.c.b16 %v1491, %v1487
        %v1544 = vpack.c.b16 %v1492, %v1488
        %v1545 = vpack.c.b16 %v1493, %v1489
        %v1546 = vpack.c.b16 %v1494, %v1490
        %v1547 = vpack.c.b16 %v1499, %v1495
        %v1548 = vpack.c.b16 %v1500, %v1496
        %v1549 = vpack.c.b16 %v1501, %v1497
        %v1550 = vpack.c.b16 %v1502, %v1498
        %v1551 = vpack.c.b16 %v1507, %v1503
        %v1552 = vpack.c.b16 %v1508, %v1504
        %v1553 = vpack.c.b16 %v1509, %v1505
        %v1554 = vpack.c.b16 %v1510, %v1506
        %v1555 = vpack.c.b16 %v1515, %v1511
        %v1556 = vpack.c.b16 %v1516, %v1512
        %v1557 = vpack.c.b16 %v1517, %v1513
        %v1558 = vpack.c.b16 %v1518, %v1514
        %v1559 = vpack.c.b16 %v1523, %v1519
        %v1560 = vpack.c.b16 %v1524, %v1520
        %v1561 = vpack.c.b16 %v1525, %v1521
        %v1562 = vpack.c.b16 %v1526, %v1522
        %v1563 = vpack.c.b16 %v1531, %v1527
        %v1564 = vpack.c.b16 %v1532, %v1528
        %v1565 = vpack.c.b16 %v1533, %v1529
        %v1566 = vpack.c.b16 %v1534, %v1530
        %1599 = vmatpush.bf16.msra.mxu0 %v1563
        %1600 = vmatpush.bf16.msra.mxu0 %v1559
        %1601 = vmatpush.bf16.msra.mxu0 %v1555
        %1602 = vmatpush.bf16.msra.mxu0 %v1551
        %1603 = vmatpush.bf16.msra.mxu0 %v1547
        %1604 = vmatpush.bf16.msra.mxu0 %v1543
        %1605 = vmatpush.bf16.msra.mxu0 %v1539
        %1606 = vmatpush.bf16.msra.mxu0 %v1535
        %1607 = vmatmul.bf16.gmra.mxu0 %v1396
        %v1608 = vpop.f32.mrf.mxu0
        %v1609 = vadd.f32 %v1431, %v1608
        %v1610 = vpop.f32.mrf.mxu0
        %1611 = vdwg.mxu0
        %1612 = vmatpush.bf16.msra.mxu0 %v1564
        %1613 = vmatpush.bf16.msra.mxu0 %v1560
        %1614 = vmatpush.bf16.msra.mxu0 %v1556
        %1615 = vmatpush.bf16.msra.mxu0 %v1552
        %1616 = vmatpush.bf16.msra.mxu0 %v1548
        %1617 = vmatpush.bf16.msra.mxu0 %v1544
        %1618 = vmatpush.bf16.msra.mxu0 %v1540
        %1619 = vmatpush.bf16.msra.mxu0 %v1536
        %1620 = vmatmul.bf16.gmra.mxu0 %v1396
        %v1621 = vpop.f32.mrf.mxu0
        %v1622 = vadd.f32 %v1432, %v1621
        %v1623 = vpop.f32.mrf.mxu0
        %1624 = vdwg.mxu0
        %1625 = vmatpush.bf16.msra.mxu0 %v1565
        %1626 = vmatpush.bf16.msra.mxu0 %v1561
        %1627 = vmatpush.bf16.msra.mxu0 %v1557
        %1628 = vmatpush.bf16.msra.mxu0 %v1553
        %1629 = vmatpush.bf16.msra.mxu0 %v1549
        %1630 = vmatpush.bf16.msra.mxu0 %v1545
        %1631 = vmatpush.bf16.msra.mxu0 %v1541
        %1632 = vmatpush.bf16.msra.mxu0 %v1537
        %1633 = vmatmul.bf16.gmra.mxu0 %v1396
        %v1634 = vpop.f32.mrf.mxu0
        %v1635 = vadd.f32 %v1433, %v1634
        %v1636 = vpop.f32.mrf.mxu0
        %1637 = vdwg.mxu0
        %1638 = vmatpush.bf16.msra.mxu0 %v1566
        %1639 = vmatpush.bf16.msra.mxu0 %v1562
        %1640 = vmatpush.bf16.msra.mxu0 %v1558
        %1641 = vmatpush.bf16.msra.mxu0 %v1554
        %1642 = vmatpush.bf16.msra.mxu0 %v1550
        %1643 = vmatpush.bf16.msra.mxu0 %v1546
        %1644 = vmatpush.bf16.msra.mxu0 %v1542
        %1645 = vmatpush.bf16.msra.mxu0 %v1538
        %1646 = vmatmul.bf16.gmra.mxu0 %v1396
        %v1647 = vpop.f32.mrf.mxu0
        %v1648 = vadd.f32 %v1434, %v1647
        %v1649 = vpop.f32.mrf.mxu0
        %1650 = vdwg.mxu0
        %v1651 = vmul.f32 %v1609, 0.5
        %v1652 = vmul.f32 %v1622, 0.5
        %v1653 = vmul.f32 %v1635, 0.5
        %v1654 = vmul.f32 %v1648, 0.5
        %v1655 = vmul.f32 %v1609, 0.044715
        %v1656 = vmul.f32 %v1622, 0.044715
        %v1657 = vmul.f32 %v1635, 0.044715
        %v1658 = vmul.f32 %v1648, 0.044715
        %v1659 = vmul.f32 %v1655, %v1609
        %v1660 = vmul.f32 %v1656, %v1622
        %v1661 = vmul.f32 %v1657, %v1635
        %v1662 = vmul.f32 %v1658, %v1648
        %v1663 = vmul.f32 %v1659, %v1609
        %v1664 = vmul.f32 %v1660, %v1622
        %v1665 = vmul.f32 %v1661, %v1635
        %v1666 = vmul.f32 %v1662, %v1648
        %v1667 = vadd.f32 %v1609, %v1663
        %v1668 = vadd.f32 %v1622, %v1664
        %v1669 = vadd.f32 %v1635, %v1665
        %v1670 = vadd.f32 %v1648, %v1666
        %v1671 = vmul.f32 %v1667, 0.7978846
        %v1672 = vmul.f32 %v1668, 0.7978846
        %v1673 = vmul.f32 %v1669, 0.7978846
        %v1674 = vmul.f32 %v1670, 0.7978846
        %v1675 = vtanh.pop %v1671
        %v1676 = vtanh.pop %v1672
        %v1677 = vtanh.pop %v1673
        %v1678 = vtanh.pop %v1674
        %v1679 = vadd.f32 %v1675, 1.0
        %v1680 = vadd.f32 %v1676, 1.0
        %v1681 = vadd.f32 %v1677, 1.0
        %v1682 = vadd.f32 %v1678, 1.0
        %v1683 = vmul.f32 %v1651, %v1679
        %v1684 = vmul.f32 %v1652, %v1680
        %v1685 = vmul.f32 %v1653, %v1681
        %v1686 = vmul.f32 %v1654, %v1682
        %v1687 = vpack.c.bf16 %v1683, %v1683
        %v1688 = vpack.c.bf16 %v1684, %v1684
        %v1689 = vpack.c.bf16 %v1685, %v1685
        %v1690 = vpack.c.bf16 %v1686, %v1686
        %v1691 = vld [vmem:[#allocation20] sm:$0xf]
        %v1692 = vld [vmem:[#allocation20 + $0x4] sm:$0xf]
        %v1693 = vld [vmem:[#allocation20 + $0x8] sm:$0xf]
        %v1694 = vld [vmem:[#allocation20 + $0xc] sm:$0xf]
        %v1695 = vld [vmem:[#allocation20 + $0x10] sm:$0xf]
        %v1696 = vld [vmem:[#allocation20 + $0x14] sm:$0xf]
        %v1697 = vld [vmem:[#allocation20 + $0x18] sm:$0xf]
        %v1698 = vld [vmem:[#allocation20 + $0x1c] sm:$0xf]
        %v1699 = vld [vmem:[#allocation20 + $0x20] sm:$0xf]
        %v1700 = vld [vmem:[#allocation20 + $0x24] sm:$0xf]
        %v1701 = vld [vmem:[#allocation20 + $0x28] sm:$0xf]
        %v1702 = vld [vmem:[#allocation20 + $0x2c] sm:$0xf]
        %v1703 = vld [vmem:[#allocation20 + $0x30] sm:$0xf]
        %v1704 = vld [vmem:[#allocation20 + $0x34] sm:$0xf]
        %v1705 = vld [vmem:[#allocation20 + $0x38] sm:$0xf]
        %v1706 = vld [vmem:[#allocation20 + $0x3c] sm:$0xf]
        %v1707 = vld [vmem:[#allocation20 + $0x40] sm:$0xf]
        %v1708 = vld [vmem:[#allocation20 + $0x44] sm:$0xf]
        %v1709 = vld [vmem:[#allocation20 + $0x48] sm:$0xf]
        %v1710 = vld [vmem:[#allocation20 + $0x4c] sm:$0xf]
        %v1711 = vld [vmem:[#allocation20 + $0x50] sm:$0xf]
        %v1712 = vld [vmem:[#allocation20 + $0x54] sm:$0xf]
        %v1713 = vld [vmem:[#allocation20 + $0x58] sm:$0xf]
        %v1714 = vld [vmem:[#allocation20 + $0x5c] sm:$0xf]
        %v1715 = vld [vmem:[#allocation20 + $0x60] sm:$0xf]
        %v1716 = vld [vmem:[#allocation20 + $0x64] sm:$0xf]
        %v1717 = vld [vmem:[#allocation20 + $0x68] sm:$0xf]
        %v1718 = vld [vmem:[#allocation20 + $0x6c] sm:$0xf]
        %v1719 = vld [vmem:[#allocation20 + $0x70] sm:$0xf]
        %v1720 = vld [vmem:[#allocation20 + $0x74] sm:$0xf]
        %v1721 = vld [vmem:[#allocation20 + $0x78] sm:$0xf]
        %v1722 = vld [vmem:[#allocation20 + $0x7c] sm:$0xf]
        %v1723 = vld [vmem:[#allocation20 + $0x80] sm:$0xf]
        %v1724 = vld [vmem:[#allocation20 + $0x84] sm:$0xf]
        %v1725 = vld [vmem:[#allocation20 + $0x88] sm:$0xf]
        %v1726 = vld [vmem:[#allocation20 + $0x8c] sm:$0xf]
        %v1727 = vld [vmem:[#allocation20 + $0x90] sm:$0xf]
        %v1728 = vld [vmem:[#allocation20 + $0x94] sm:$0xf]
        %v1729 = vld [vmem:[#allocation20 + $0x98] sm:$0xf]
        %v1730 = vld [vmem:[#allocation20 + $0x9c] sm:$0xf]
        %v1731 = vld [vmem:[#allocation20 + $0xa0] sm:$0xf]
        %v1732 = vld [vmem:[#allocation20 + $0xa4] sm:$0xf]
        %v1733 = vld [vmem:[#allocation20 + $0xa8] sm:$0xf]
        %v1734 = vld [vmem:[#allocation20 + $0xac] sm:$0xf]
        %v1735 = vld [vmem:[#allocation20 + $0xb0] sm:$0xf]
        %v1736 = vld [vmem:[#allocation20 + $0xb4] sm:$0xf]
        %v1737 = vld [vmem:[#allocation20 + $0xb8] sm:$0xf]
        %v1738 = vld [vmem:[#allocation20 + $0xbc] sm:$0xf]
        %v1739 = vld [vmem:[#allocation20 + $0xc0] sm:$0xf]
        %v1740 = vld [vmem:[#allocation20 + $0xc4] sm:$0xf]
        %v1741 = vld [vmem:[#allocation20 + $0xc8] sm:$0xf]
        %v1742 = vld [vmem:[#allocation20 + $0xcc] sm:$0xf]
        %v1743 = vld [vmem:[#allocation20 + $0xd0] sm:$0xf]
        %v1744 = vld [vmem:[#allocation20 + $0xd4] sm:$0xf]
        %v1745 = vld [vmem:[#allocation20 + $0xd8] sm:$0xf]
        %v1746 = vld [vmem:[#allocation20 + $0xdc] sm:$0xf]
        %v1747 = vld [vmem:[#allocation20 + $0xe0] sm:$0xf]
        %v1748 = vld [vmem:[#allocation20 + $0xe4] sm:$0xf]
        %v1749 = vld [vmem:[#allocation20 + $0xe8] sm:$0xf]
        %v1750 = vld [vmem:[#allocation20 + $0xec] sm:$0xf]
        %v1751 = vld [vmem:[#allocation20 + $0xf0] sm:$0xf]
        %v1752 = vld [vmem:[#allocation20 + $0xf4] sm:$0xf]
        %v1753 = vld [vmem:[#allocation20 + $0xf8] sm:$0xf]
        %v1754 = vld [vmem:[#allocation20 + $0xfc] sm:$0xf]
        %v1755 = vld [vmem:[%s12] sm:$0x1]
        %v1757 = vperm.slane %v1755, 0
        %v1823 = vunpack.c.l.b16 %v1691
        %v1824 = vunpack.c.l.b16 %v1692
        %v1825 = vunpack.c.l.b16 %v1693
        %v1826 = vunpack.c.l.b16 %v1694
        %v1827 = vunpack.c.l.b16 %v1695
        %v1828 = vunpack.c.l.b16 %v1696
        %v1829 = vunpack.c.l.b16 %v1697
        %v1830 = vunpack.c.l.b16 %v1698
        %v1831 = vunpack.c.l.b16 %v1699
        %v1832 = vunpack.c.l.b16 %v1700
        %v1833 = vunpack.c.l.b16 %v1701
        %v1834 = vunpack.c.l.b16 %v1702
        %v1835 = vunpack.c.l.b16 %v1703
        %v1836 = vunpack.c.l.b16 %v1704
        %v1837 = vunpack.c.l.b16 %v1705
        %v1838 = vunpack.c.l.b16 %v1706
        %v1839 = vunpack.c.l.b16 %v1707
        %v1840 = vunpack.c.l.b16 %v1708
        %v1841 = vunpack.c.l.b16 %v1709
        %v1842 = vunpack.c.l.b16 %v1710
        %v1843 = vunpack.c.l.b16 %v1711
        %v1844 = vunpack.c.l.b16 %v1712
        %v1845 = vunpack.c.l.b16 %v1713
        %v1846 = vunpack.c.l.b16 %v1714
        %v1847 = vunpack.c.l.b16 %v1715
        %v1848 = vunpack.c.l.b16 %v1716
        %v1849 = vunpack.c.l.b16 %v1717
        %v1850 = vunpack.c.l.b16 %v1718
        %v1851 = vunpack.c.l.b16 %v1719
        %v1852 = vunpack.c.l.b16 %v1720
        %v1853 = vunpack.c.l.b16 %v1721
        %v1854 = vunpack.c.l.b16 %v1722
        %v1855 = vunpack.c.l.b16 %v1723
        %v1856 = vunpack.c.l.b16 %v1724
        %v1857 = vunpack.c.l.b16 %v1725
        %v1858 = vunpack.c.l.b16 %v1726
        %v1859 = vunpack.c.l.b16 %v1727
        %v1860 = vunpack.c.l.b16 %v1728
        %v1861 = vunpack.c.l.b16 %v1729
        %v1862 = vunpack.c.l.b16 %v1730
        %v1863 = vunpack.c.l.b16 %v1731
        %v1864 = vunpack.c.l.b16 %v1732
        %v1865 = vunpack.c.l.b16 %v1733
        %v1866 = vunpack.c.l.b16 %v1734
        %v1867 = vunpack.c.l.b16 %v1735
        %v1868 = vunpack.c.l.b16 %v1736
        %v1869 = vunpack.c.l.b16 %v1737
        %v1870 = vunpack.c.l.b16 %v1738
        %v1871 = vunpack.c.l.b16 %v1739
        %v1872 = vunpack.c.l.b16 %v1740
        %v1873 = vunpack.c.l.b16 %v1741
        %v1874 = vunpack.c.l.b16 %v1742
        %v1875 = vunpack.c.l.b16 %v1743
        %v1876 = vunpack.c.l.b16 %v1744
        %v1877 = vunpack.c.l.b16 %v1745
        %v1878 = vunpack.c.l.b16 %v1746
        %v1879 = vunpack.c.l.b16 %v1747
        %v1880 = vunpack.c.l.b16 %v1748
        %v1881 = vunpack.c.l.b16 %v1749
        %v1882 = vunpack.c.l.b16 %v1750
        %v1883 = vunpack.c.l.b16 %v1751
        %v1884 = vunpack.c.l.b16 %v1752
        %v1885 = vunpack.c.l.b16 %v1753
        %v1886 = vunpack.c.l.b16 %v1754
        %v1887 = vpack.c.b16 %v1824, %v1823
        %v1888 = vpack.c.b16 %v1826, %v1825
        %v1889 = vpack.c.b16 %v1828, %v1827
        %v1890 = vpack.c.b16 %v1830, %v1829
        %v1891 = vpack.c.b16 %v1832, %v1831
        %v1892 = vpack.c.b16 %v1834, %v1833
        %v1893 = vpack.c.b16 %v1836, %v1835
        %v1894 = vpack.c.b16 %v1838, %v1837
        %v1895 = vpack.c.b16 %v1840, %v1839
        %v1896 = vpack.c.b16 %v1842, %v1841
        %v1897 = vpack.c.b16 %v1844, %v1843
        %v1898 = vpack.c.b16 %v1846, %v1845
        %v1899 = vpack.c.b16 %v1848, %v1847
        %v1900 = vpack.c.b16 %v1850, %v1849
        %v1901 = vpack.c.b16 %v1852, %v1851
        %v1902 = vpack.c.b16 %v1854, %v1853
        %v1903 = vpack.c.b16 %v1856, %v1855
        %v1904 = vpack.c.b16 %v1858, %v1857
        %v1905 = vpack.c.b16 %v1860, %v1859
        %v1906 = vpack.c.b16 %v1862, %v1861
        %v1907 = vpack.c.b16 %v1864, %v1863
        %v1908 = vpack.c.b16 %v1866, %v1865
        %v1909 = vpack.c.b16 %v1868, %v1867
        %v1910 = vpack.c.b16 %v1870, %v1869
        %v1911 = vpack.c.b16 %v1872, %v1871
        %v1912 = vpack.c.b16 %v1874, %v1873
        %v1913 = vpack.c.b16 %v1876, %v1875
        %v1914 = vpack.c.b16 %v1878, %v1877
        %v1915 = vpack.c.b16 %v1880, %v1879
        %v1916 = vpack.c.b16 %v1882, %v1881
        %v1917 = vpack.c.b16 %v1884, %v1883
        %v1918 = vpack.c.b16 %v1886, %v1885
        %1951 = vmatpush.bf16.msra.mxu0 %v1894
        %1952 = vmatpush.bf16.msra.mxu0 %v1893
        %1953 = vmatpush.bf16.msra.mxu0 %v1892
        %1954 = vmatpush.bf16.msra.mxu0 %v1891
        %1955 = vmatpush.bf16.msra.mxu0 %v1890
        %1956 = vmatpush.bf16.msra.mxu0 %v1889
        %1957 = vmatpush.bf16.msra.mxu0 %v1888
        %1958 = vmatpush.bf16.msra.mxu0 %v1887
        %1959 = vmatmul.bf16.gmra.mxu0 %v1687
        %v1960 = vpop.f32.mrf.mxu0
        %v1961 = vadd.f32 %v1757, %v1960
        %v1962 = vpop.f32.mrf.mxu0
        %1963 = vdwg.mxu0
        %1964 = vmatpush.bf16.msra.mxu0 %v1902
        %1965 = vmatpush.bf16.msra.mxu0 %v1901
        %1966 = vmatpush.bf16.msra.mxu0 %v1900
        %1967 = vmatpush.bf16.msra.mxu0 %v1899
        %1968 = vmatpush.bf16.msra.mxu0 %v1898
        %1969 = vmatpush.bf16.msra.mxu0 %v1897
        %1970 = vmatpush.bf16.msra.mxu0 %v1896
        %1971 = vmatpush.bf16.msra.mxu0 %v1895
        %1972 = vmatmul.bf16.gmra.mxu0 %v1688
        %v1973 = vpop.f32.mrf.mxu0
        %v1974 = vadd.f32 %v1961, %v1973
        %v1975 = vpop.f32.mrf.mxu0
        %1976 = vdwg.mxu0
        %1977 = vmatpush.bf16.msra.mxu0 %v1910
        %1978 = vmatpush.bf16.msra.mxu0 %v1909
        %1979 = vmatpush.bf16.msra.mxu0 %v1908
        %1980 = vmatpush.bf16.msra.mxu0 %v1907
        %1981 = vmatpush.bf16.msra.mxu0 %v1906
        %1982 = vmatpush.bf16.msra.mxu0 %v1905
        %1983 = vmatpush.bf16.msra.mxu0 %v1904
        %1984 = vmatpush.bf16.msra.mxu0 %v1903
        %1985 = vmatmul.bf16.gmra.mxu0 %v1689
        %v1986 = vpop.f32.mrf.mxu0
        %v1987 = vadd.f32 %v1974, %v1986
        %v1988 = vpop.f32.mrf.mxu0
        %1989 = vdwg.mxu0
        %1990 = vmatpush.bf16.msra.mxu0 %v1918
        %1991 = vmatpush.bf16.msra.mxu0 %v1917
        %1992 = vmatpush.bf16.msra.mxu0 %v1916
        %1993 = vmatpush.bf16.msra.mxu0 %v1915
        %1994 = vmatpush.bf16.msra.mxu0 %v1914
        %1995 = vmatpush.bf16.msra.mxu0 %v1913
        %1996 = vmatpush.bf16.msra.mxu0 %v1912
        %1997 = vmatpush.bf16.msra.mxu0 %v1911
        %1998 = vmatmul.bf16.gmra.mxu0 %v1690
        %v1999 = vpop.f32.mrf.mxu0
        %v2000 = vadd.f32 %v1987, %v1999
        %v2001 = vpop.f32.mrf.mxu0
        %2002 = vdwg.mxu0
        %v2003 = vadd.f32 %v1358, %v2000
        %2004 = vst [vmem:[%s613] sm:$0xff] %v2003
        %s2005 = sand.u32 %s335, 1
        %s2006 = scalar_lea.sflag [#allocation7], %s2005
        %s2007 = sand.u32 %s335, 1
        %s2008 = smul.addr %s2007, 8
        %s2009 = scalar_lea.vmem [#allocation22], %s2008
        // Predicated region
        $region117: #{tpu_custom_call.1} parent=71 // pred_check
          %p2010 = pneg %p345
        $region118: #{tpu_custom_call.1} parent=71 // pred_check_branch
          %2012 = sbr.rel (%p2010) target = $region120
        $region119: #{tpu_custom_call.1} parent=71 // pred_region
          %2014 = vsyncadd %s2006, 0
          %s2015 = smul.addr %s39, 2
          %s2016 = sadd.s32 %s40, %s2015
          %s2017 = smul.addr %s2016, 8
          %s2018 = scalar_lea.hbm %s13, %s2017
          %s2020 = sshll.u32 %s2009, 4
          %s2021 = int_to_ptr.vmem [resolvable:$true] %s2020
          %s2022 = sshll.u32 %s2018, 4
          %s2023 = int_to_ptr.hbm [resolvable:$true] %s2022
          %2025 = dma.vmem_to_hbm [thread:$0]  %s2021, 128, %s2023, %s2006
        $region120: #{tpu_custom_call.1} parent=71 // pred_fallthru
          _
      $region72: #{tpu_custom_call.1} parent=5 // pred_fallthru
        _
      %p2026 = scmp.le.s32.totalorder 2, %s30
      // Predicated region
      $region121: #{tpu_custom_call.1} parent=5 // pred_check
        %p2027 = pneg %p2026
      $region122: #{tpu_custom_call.1} parent=5 // pred_check_branch
        %2029 = sbr.rel (%p2027) target = $region124
      $region123: #{tpu_custom_call.1} parent=5 // pred_region
        %s2030 = ssub.s32 %s30, 2
        // Predicated region
        $region125: #{tpu_custom_call.1} parent=123 // pred_check
          %p2031 = pneg %p351
        $region126: #{tpu_custom_call.1} parent=123 // pred_check_branch
          %2033 = sbr.rel (%p2031) target = $region128
        $region127: #{tpu_custom_call.1} parent=123 // pred_region
          %s2034 = sand.u32 %s336, 1
          %s2035 = scalar_lea.sflag [#allocation7], %s2034
          %s2036 = sand.u32 %s336, 1
          %s2037 = smul.addr %s2036, 8
          %s2038 = scalar_lea.vmem [#allocation22], %s2037
          %2040 = dma.done %s2035, 128
        $region128: #{tpu_custom_call.1} parent=123 // pred_fallthru
          _
      $region124: #{tpu_custom_call.1} parent=5 // pred_fallthru
        _
    $region6: #{tpu_custom_call.1} parent=1 // loop_footer
      %s34 = sadd.s32 1, %s30
    $region7: #{tpu_custom_call.1} parent=1 // loop_footer_branch
      %29 = sbr.rel target = $region3
    $region8: #{tpu_custom_call.1} parent=1 // loop_exit
      _
    %2041 = vsyncpa [#allocation6], 1
    %s2042 = scalar_lea.sflag [#allocation6], 1
    %2043 = vsyncpa %s2042, 1
    %2044 = vsyncpa [#allocation9], 1
    %2045 = vsyncpa [#allocation12], 1
    %2046 = vsyncpa [#allocation15], 1
    %2047 = vsyncpa [#allocation18], 1
    %2048 = vsyncpa [#allocation21], 1
    %2049 = vsyncpa [#allocation7], 1
    %s2050 = scalar_lea.sflag [#allocation7], 1
    %2051 = vsyncpa %s2050, 1

// kernel: tpu_custom_call.1
$region0: #{tpu_custom_call.1}
  #allocation0 [shape = 'u32[]', space=smem, size = 0x4, offset = 0x4, fixed_abs, tag = 'smem constant byte address 0x4 - core index']
  #allocation1 [shape = 'u32[72,128]{1,0:T(1,128)}', space=vmem, size = 0x9000, scoped, tag = 'internal scratch']
  #allocation2 [shape = 'bf16[4,16,32]{2,1,0:T(8,128)(2,1)}', space=vmem, size = 0x4000, scoped, tag = 'scratch operand']
  #allocation3 [shape = 'bf16[4,16,32]{2,1,0:T(8,128)(2,1)}', space=vmem, size = 0x4000, scoped, tag = 'scratch operand']
  #allocation4 [shape = 'bf16[4,16,32]{2,1,0:T(8,128)(2,1)}', space=vmem, size = 0x4000, scoped, tag = 'scratch operand']
  %s0 = inlined_call_operand.hbm [shape: f32[2,16,128], index: 0, kind: input, shape index: {}]
  %s1 = inlined_call_operand.hbm [shape: f32[1,128], index: 1, kind: input, shape index: {}]
  %s2 = inlined_call_operand.hbm [shape: f32[1,128], index: 2, kind: input, shape index: {}]
  %s3 = inlined_call_operand.hbm [shape: bf16[128,384], index: 3, kind: input, shape index: {}]
  %s4 = inlined_call_operand.vmem [shape: f32[1,384], index: 4, kind: input, shape index: {}]
  %s5 = inlined_call_operand.hbm [shape: bf16[128,128], index: 5, kind: input, shape index: {}]
  %s6 = inlined_call_operand.hbm [shape: f32[1,128], index: 6, kind: input, shape index: {}]
  %s7 = inlined_call_operand.hbm [shape: f32[1,128], index: 7, kind: input, shape index: {}]
  %s8 = inlined_call_operand.hbm [shape: f32[1,128], index: 8, kind: input, shape index: {}]
  %s9 = inlined_call_operand.hbm [shape: bf16[128,512], index: 9, kind: input, shape index: {}]
  %s10 = inlined_call_operand.vmem [shape: f32[1,512], index: 10, kind: input, shape index: {}]
  %s11 = inlined_call_operand.hbm [shape: bf16[512,128], index: 11, kind: input, shape index: {}]
  %s12 = inlined_call_operand.vmem [shape: f32[1,128], index: 12, kind: input, shape index: {}]
  %s13 = inlined_call_operand.hbm [shape: f32[2,16,128], index: 13, kind: output, shape index: {}]
  %s14 = sld [smem:[#allocation0]]
  $region129: #{tpu_custom_call.1} parent=0
    _
  %s16 = ssub.s32 1, %s14
  %s17 = scalar_select 0, %s16, %s14
  $region1: #{tpu_custom_call.1} parent=0
    #allocation5 [shape = 'u8[16384]{0}', space=vmem, size = 0x4000, scoped, tag = 'input window, operand 0']
    #allocation6 [shape = 's32[2]{0}', space=sflag, size = 0x8, scoped, tag = 'scoped memory for tpu_custom_call.1']
    #allocation7 [shape = 's32[2]{0}', space=sflag, size = 0x8, scoped, tag = 'scoped memory for tpu_custom_call.1']
    #allocation8 [shape = 'u8[512]{0}', space=vmem, size = 0x400, scoped, tag = 'input window, operand 1, single buffered']
    #allocation9 [shape = 's32[1]{0}', space=sflag, size = 0x4, scoped, tag = 'scoped memory for tpu_custom_call.1']
    #allocation10 [shape = 'u8[512]{0}', space=vmem, size = 0x400, scoped, tag = 'input window, operand 2, single buffered']
    #allocation11 [shape = 'u8[98304]{0}', space=vmem, size = 0x18000, scoped, tag = 'input window, operand 3, single buffered']
    #allocation12 [shape = 's32[1]{0}', space=sflag, size = 0x4, scoped, tag = 'scoped memory for tpu_custom_call.1']
    #allocation13 [shape = 'u8[32768]{0}', space=vmem, size = 0x8000, scoped, tag = 'input window, operand 5, single buffered']
    #allocation14 [shape = 'u8[512]{0}', space=vmem, size = 0x400, scoped, tag = 'input window, operand 6, single buffered']
    #allocation15 [shape = 's32[1]{0}', space=sflag, size = 0x4, scoped, tag = 'scoped memory for tpu_custom_call.1']
    #allocation16 [shape = 'u8[512]{0}', space=vmem, size = 0x400, scoped, tag = 'input window, operand 7, single buffered']
    #allocation17 [shape = 'u8[512]{0}', space=vmem, size = 0x400, scoped, tag = 'input window, operand 8, single buffered']
    #allocation18 [shape = 's32[1]{0}', space=sflag, size = 0x4, scoped, tag = 'scoped memory for tpu_custom_call.1']
    #allocation19 [shape = 'u8[131072]{0}', space=vmem, size = 0x20000, scoped, tag = 'input window, operand 9, single buffered']
    #allocation20 [shape = 'u8[131072]{0}', space=vmem, size = 0x20000, scoped, tag = 'input window, operand 11, single buffered']
    #allocation21 [shape = 's32[1]{0}', space=sflag, size = 0x4, scoped, tag = 'scoped memory for tpu_custom_call.1']
    #allocation22 [shape = 'u8[8192]{0}', space=vmem, size = 0x2000, scoped, tag = 'output window, operand 0']
    %18 = vsyncpa [#allocation6], 0
    %s19 = scalar_lea.sflag [#allocation6], 1
    %20 = vsyncpa %s19, 0
    %21 = vsyncpa [#allocation9], 0
    %22 = vsyncpa [#allocation12], 0
    %23 = vsyncpa [#allocation15], 0
    %24 = vsyncpa [#allocation18], 0
    %25 = vsyncpa [#allocation21], 0
    %26 = vsyncpa [#allocation7], 0
    %s27 = scalar_lea.sflag [#allocation7], 1
    %28 = vsyncpa %s27, 0
    loop: start=0, step=1, limit=6
    $region2: #{tpu_custom_call.1} parent=1 // loop_pre_header
      _
    $region3: #{tpu_custom_call.1} parent=1 // loop_header
      %s30 = sphi 0, %s34
      %p31 = scmp.ge.s32.totalorder %s30, 6
      %s37 = sphi 0, %s49
      %s38 = sphi 0, %s45
      %s39 = sphi 0, %s37
      %s40 = sphi 0, %s38
      %s41 = sphi 0, %s39
      %s42 = sphi 0, %s40
      %s52 = sphi 0, %s54
      %s55 = sphi 0, %s52
      %s56 = sphi 0, %s55
      %s72 = sphi 0, %s56
      %s76 = sphi 0, %s76
      %s78 = sphi 0, %s76
      %s79 = sphi 0, %s78
      %s93 = sphi 0, %s79
      %s97 = sphi 0, %s97
      %s99 = sphi 0, %s97
      %s100 = sphi 0, %s99
      %s114 = sphi 0, %s100
      %s118 = sphi 0, %s118
      %s120 = sphi 0, %s118
      %s121 = sphi 0, %s120
      %s135 = sphi 0, %s121
      %s139 = sphi 0, %s139
      %s141 = sphi 0, %s139
      %s142 = sphi 0, %s141
      %s156 = sphi 0, %s142
      %s160 = sphi 0, %s160
      %s162 = sphi 0, %s160
      %s163 = sphi 0, %s162
      %s177 = sphi 0, %s163
      %s181 = sphi 0, %s181
      %s183 = sphi 0, %s181
      %s184 = sphi 0, %s183
      %s198 = sphi 0, %s184
      %s202 = sphi 0, %s202
      %s204 = sphi 0, %s202
      %s205 = sphi 0, %s204
      %s219 = sphi 0, %s205
      %s223 = sphi 0, %s223
      %s225 = sphi 0, %s223
      %s226 = sphi 0, %s225
      %s240 = sphi 0, %s226
      %s244 = sphi 0, %s244
      %s246 = sphi 0, %s244
      %s247 = sphi 0, %s246
      %s261 = sphi 0, %s247
      %s265 = sphi 0, %s265
      %s267 = sphi 0, %s265
      %s268 = sphi 0, %s267
      %s282 = sphi 0, %s268
      %s286 = sphi 0, %s286
      %s288 = sphi 0, %s286
      %s289 = sphi 0, %s288
      %s303 = sphi 0, %s289
      %s307 = sphi 0, %s307
      %s309 = sphi 0, %s307
      %s310 = sphi 0, %s309
      %s324 = sphi 0, %s310
      %s332 = sphi 0, %s334
      %s335 = sphi 0, %s332
      %s336 = sphi 0, %s335
      %s352 = sphi 0, %s336
    $region4: #{tpu_custom_call.1} parent=1 // loop_header_branch
      %33 = sbr.rel (%p31) target = $region8
    $region5: #{tpu_custom_call.1} parent=1 // loop_body
      %s35 = ssub.s32 %s30, 1
      %s36 = ssub.s32 %s30, 2
      %s43 = sadd.s32 1, %s38
      %p44 = scmp.ge.s32.totalorder %s43, 2
      %s45 = scalar_select %p44, 0, %s43
      %s46 = sadd.s32 1, %s37
      %s47 = scalar_select %p44, %s46, %s37
      %p48 = scmp.ge.s32.totalorder %s47, 2
      %s49 = scalar_select %p48, 0, %s47
      %s50 = ssub.s32 %s37, %s49
      %p51 = scmp.eq.s32.totalorder %s50, 0
      %s53 = sadd.s32 %s52, 1
      %s54 = scalar_select %p51, %s52, %s53
      %p57 = pneg %p51
      %p58 = scmp.eq.s32.totalorder %s30, 3
      %p59 = por %p57, %p58
      %p60 = scmp.ne.s32.totalorder %s52, %s55
      %p61 = scmp.eq.s32.totalorder %s30, 0
      %p62 = por %p60, %p61
      %p63 = scmp.ne.s32.totalorder %s52, %s55
      %p64 = scmp.eq.s32.totalorder %s35, 3
      %p65 = por %p63, %p64
      %p66 = scmp.ne.s32.totalorder %s55, %s56
      %p67 = scmp.eq.s32.totalorder %s35, 0
      %p68 = por %p66, %p67
      %p69 = scmp.ne.s32.totalorder %s55, %s56
      %p70 = scmp.eq.s32.totalorder %s36, 3
      %p71 = por %p69, %p70
      %p73 = scmp.ne.s32.totalorder %s56, %s72
      %p74 = scmp.eq.s32.totalorder %s36, 0
      %p75 = por %p73, %p74
      %s77 = sadd.s32 %s76, 1
      %p80 = scmp.eq.s32.totalorder %s30, 3
      %p81 = scmp.ne.s32.totalorder %s76, %s78
      %p82 = scmp.eq.s32.totalorder %s30, 0
      %p83 = por %p81, %p82
      %p84 = scmp.ne.s32.totalorder %s76, %s78
      %p85 = scmp.eq.s32.totalorder %s35, 3
      %p86 = por %p84, %p85
      %p87 = scmp.ne.s32.totalorder %s78, %s79
      %p88 = scmp.eq.s32.totalorder %s35, 0
      %p89 = por %p87, %p88
      %p90 = scmp.ne.s32.totalorder %s78, %s79
      %p91 = scmp.eq.s32.totalorder %s36, 3
      %p92 = por %p90, %p91
      %p94 = scmp.ne.s32.totalorder %s79, %s93
      %p95 = scmp.eq.s32.totalorder %s36, 0
      %p96 = por %p94, %p95
      %s98 = sadd.s32 %s97, 1
      %p101 = scmp.eq.s32.totalorder %s30, 3
      %p102 = scmp.ne.s32.totalorder %s97, %s99
      %p103 = scmp.eq.s32.totalorder %s30, 0
      %p104 = por %p102, %p103
      %p105 = scmp.ne.s32.totalorder %s97, %s99
      %p106 = scmp.eq.s32.totalorder %s35, 3
      %p107 = por %p105, %p106
      %p108 = scmp.ne.s32.totalorder %s99, %s100
      %p109 = scmp.eq.s32.totalorder %s35, 0
      %p110 = por %p108, %p109
      %p111 = scmp.ne.s32.totalorder %s99, %s100
      %p112 = scmp.eq.s32.totalorder %s36, 3
      %p113 = por %p111, %p112
      %p115 = scmp.ne.s32.totalorder %s100, %s114
      %p116 = scmp.eq.s32.totalorder %s36, 0
      %p117 = por %p115, %p116
      %s119 = sadd.s32 %s118, 1
      %p122 = scmp.eq.s32.totalorder %s30, 3
      %p123 = scmp.ne.s32.totalorder %s118, %s120
      %p124 = scmp.eq.s32.totalorder %s30, 0
      %p125 = por %p123, %p124
      %p126 = scmp.ne.s32.totalorder %s118, %s120
      %p127 = scmp.eq.s32.totalorder %s35, 3
      %p128 = por %p126, %p127
      %p129 = scmp.ne.s32.totalorder %s120, %s121
      %p130 = scmp.eq.s32.totalorder %s35, 0
      %p131 = por %p129, %p130
      %p132 = scmp.ne.s32.totalorder %s120, %s121
      %p133 = scmp.eq.s32.totalorder %s36, 3
      %p134 = por %p132, %p133
      %p136 = scmp.ne.s32.totalorder %s121, %s135
      %p137 = scmp.eq.s32.totalorder %s36, 0
      %p138 = por %p136, %p137
      %s140 = sadd.s32 %s139, 1
      %p143 = scmp.eq.s32.totalorder %s30, 3
      %p144 = scmp.ne.s32.totalorder %s139, %s141
      %p145 = scmp.eq.s32.totalorder %s30, 0
      %p146 = por %p144, %p145
      %p147 = scmp.ne.s32.totalorder %s139, %s141
      %p148 = scmp.eq.s32.totalorder %s35, 3
      %p149 = por %p147, %p148
      %p150 = scmp.ne.s32.totalorder %s141, %s142
      %p151 = scmp.eq.s32.totalorder %s35, 0
      %p152 = por %p150, %p151
      %p153 = scmp.ne.s32.totalorder %s141, %s142
      %p154 = scmp.eq.s32.totalorder %s36, 3
      %p155 = por %p153, %p154
      %p157 = scmp.ne.s32.totalorder %s142, %s156
      %p158 = scmp.eq.s32.totalorder %s36, 0
      %p159 = por %p157, %p158
      %s161 = sadd.s32 %s160, 1
      %p164 = scmp.eq.s32.totalorder %s30, 3
      %p165 = scmp.ne.s32.totalorder %s160, %s162
      %p166 = scmp.eq.s32.totalorder %s30, 0
      %p167 = por %p165, %p166
      %p168 = scmp.ne.s32.totalorder %s160, %s162
      %p169 = scmp.eq.s32.totalorder %s35, 3
      %p170 = por %p168, %p169
      %p171 = scmp.ne.s32.totalorder %s162, %s163
      %p172 = scmp.eq.s32.totalorder %s35, 0
      %p173 = por %p171, %p172
      %p174 = scmp.ne.s32.totalorder %s162, %s163
      %p175 = scmp.eq.s32.totalorder %s36, 3
      %p176 = por %p174, %p175
      %p178 = scmp.ne.s32.totalorder %s163, %s177
      %p179 = scmp.eq.s32.totalorder %s36, 0
      %p180 = por %p178, %p179
      %s182 = sadd.s32 %s181, 1
      %p185 = scmp.eq.s32.totalorder %s30, 3
      %p186 = scmp.ne.s32.totalorder %s181, %s183
      %p187 = scmp.eq.s32.totalorder %s30, 0
      %p188 = por %p186, %p187
      %p189 = scmp.ne.s32.totalorder %s181, %s183
      %p190 = scmp.eq.s32.totalorder %s35, 3
      %p191 = por %p189, %p190
      %p192 = scmp.ne.s32.totalorder %s183, %s184
      %p193 = scmp.eq.s32.totalorder %s35, 0
      %p194 = por %p192, %p193
      %p195 = scmp.ne.s32.totalorder %s183, %s184
      %p196 = scmp.eq.s32.totalorder %s36, 3
      %p197 = por %p195, %p196
      %p199 = scmp.ne.s32.totalorder %s184, %s198
      %p200 = scmp.eq.s32.totalorder %s36, 0
      %p201 = por %p199, %p200
      %s203 = sadd.s32 %s202, 1
      %p206 = scmp.eq.s32.totalorder %s30, 3
      %p207 = scmp.ne.s32.totalorder %s202, %s204
      %p208 = scmp.eq.s32.totalorder %s30, 0
      %p209 = por %p207, %p208
      %p210 = scmp.ne.s32.totalorder %s202, %s204
      %p211 = scmp.eq.s32.totalorder %s35, 3
      %p212 = por %p210, %p211
      %p213 = scmp.ne.s32.totalorder %s204, %s205
      %p214 = scmp.eq.s32.totalorder %s35, 0
      %p215 = por %p213, %p214
      %p216 = scmp.ne.s32.totalorder %s204, %s205
      %p217 = scmp.eq.s32.totalorder %s36, 3
      %p218 = por %p216, %p217
      %p220 = scmp.ne.s32.totalorder %s205, %s219
      %p221 = scmp.eq.s32.totalorder %s36, 0
      %p222 = por %p220, %p221
      %s224 = sadd.s32 %s223, 1
      %p227 = scmp.eq.s32.totalorder %s30, 3
      %p228 = scmp.ne.s32.totalorder %s223, %s225
      %p229 = scmp.eq.s32.totalorder %s30, 0
      %p230 = por %p228, %p229
      %p231 = scmp.ne.s32.totalorder %s223, %s225
      %p232 = scmp.eq.s32.totalorder %s35, 3
      %p233 = por %p231, %p232
      %p234 = scmp.ne.s32.totalorder %s225, %s226
      %p235 = scmp.eq.s32.totalorder %s35, 0
      %p236 = por %p234, %p235
      %p237 = scmp.ne.s32.totalorder %s225, %s226
      %p238 = scmp.eq.s32.totalorder %s36, 3
      %p239 = por %p237, %p238
      %p241 = scmp.ne.s32.totalorder %s226, %s240
      %p242 = scmp.eq.s32.totalorder %s36, 0
      %p243 = por %p241, %p242
      %s245 = sadd.s32 %s244, 1
      %p248 = scmp.eq.s32.totalorder %s30, 3
      %p249 = scmp.ne.s32.totalorder %s244, %s246
      %p250 = scmp.eq.s32.totalorder %s30, 0
      %p251 = por %p249, %p250
      %p252 = scmp.ne.s32.totalorder %s244, %s246
      %p253 = scmp.eq.s32.totalorder %s35, 3
      %p254 = por %p252, %p253
      %p255 = scmp.ne.s32.totalorder %s246, %s247
      %p256 = scmp.eq.s32.totalorder %s35, 0
      %p257 = por %p255, %p256
      %p258 = scmp.ne.s32.totalorder %s246, %s247
      %p259 = scmp.eq.s32.totalorder %s36, 3
      %p260 = por %p258, %p259
      %p262 = scmp.ne.s32.totalorder %s247, %s261
      %p263 = scmp.eq.s32.totalorder %s36, 0
      %p264 = por %p262, %p263
      %s266 = sadd.s32 %s265, 1
      %p269 = scmp.eq.s32.totalorder %s30, 3
      %p270 = scmp.ne.s32.totalorder %s265, %s267
      %p271 = scmp.eq.s32.totalorder %s30, 0
      %p272 = por %p270, %p271
      %p273 = scmp.ne.s32.totalorder %s265, %s267
      %p274 = scmp.eq.s32.totalorder %s35, 3
      %p275 = por %p273, %p274
      %p276 = scmp.ne.s32.totalorder %s267, %s268
      %p277 = scmp.eq.s32.totalorder %s35, 0
      %p278 = por %p276, %p277
      %p279 = scmp.ne.s32.totalorder %s267, %s268
      %p280 = scmp.eq.s32.totalorder %s36, 3
      %p281 = por %p279, %p280
      %p283 = scmp.ne.s32.totalorder %s268, %s282
      %p284 = scmp.eq.s32.totalorder %s36, 0
      %p285 = por %p283, %p284
      %s287 = sadd.s32 %s286, 1
      %p290 = scmp.eq.s32.totalorder %s30, 3
      %p291 = scmp.ne.s32.totalorder %s286, %s288
      %p292 = scmp.eq.s32.totalorder %s30, 0
      %p293 = por %p291, %p292
      %p294 = scmp.ne.s32.totalorder %s286, %s288
      %p295 = scmp.eq.s32.totalorder %s35, 3
      %p296 = por %p294, %p295
      %p297 = scmp.ne.s32.totalorder %s288, %s289
      %p298 = scmp.eq.s32.totalorder %s35, 0
      %p299 = por %p297, %p298
      %p300 = scmp.ne.s32.totalorder %s288, %s289
      %p301 = scmp.eq.s32.totalorder %s36, 3
      %p302 = por %p300, %p301
      %p304 = scmp.ne.s32.totalorder %s289, %s303
      %p305 = scmp.eq.s32.totalorder %s36, 0
      %p306 = por %p304, %p305
      %s308 = sadd.s32 %s307, 1
      %p311 = scmp.eq.s32.totalorder %s30, 3
      %p312 = scmp.ne.s32.totalorder %s307, %s309
      %p313 = scmp.eq.s32.totalorder %s30, 0
      %p314 = por %p312, %p313
      %p315 = scmp.ne.s32.totalorder %s307, %s309
      %p316 = scmp.eq.s32.totalorder %s35, 3
      %p317 = por %p315, %p316
      %p318 = scmp.ne.s32.totalorder %s309, %s310
      %p319 = scmp.eq.s32.totalorder %s35, 0
      %p320 = por %p318, %p319
      %p321 = scmp.ne.s32.totalorder %s309, %s310
      %p322 = scmp.eq.s32.totalorder %s36, 3
      %p323 = por %p321, %p322
      %p325 = scmp.ne.s32.totalorder %s310, %s324
      %p326 = scmp.eq.s32.totalorder %s36, 0
      %p327 = por %p325, %p326
      %s328 = ssub.s32 %s37, %s49
      %s329 = ssub.s32 %s38, %s45
      %s330 = sor.u32 %s328, %s329
      %p331 = scmp.eq.s32.totalorder %s330, 0
      %s333 = sadd.s32 %s332, 1
      %s334 = scalar_select %p331, %s332, %s333
      %p337 = pneg %p331
      %p338 = scmp.eq.s32.totalorder %s30, 3
      %p339 = por %p337, %p338
      %p340 = scmp.ne.s32.totalorder %s332, %s335
      %p341 = scmp.eq.s32.totalorder %s30, 0
      %p342 = por %p340, %p341
      %p343 = scmp.ne.s32.totalorder %s332, %s335
      %p344 = scmp.eq.s32.totalorder %s35, 3
      %p345 = por %p343, %p344
      %p346 = scmp.ne.s32.totalorder %s335, %s336
      %p347 = scmp.eq.s32.totalorder %s35, 0
      %p348 = por %p346, %p347
      %p349 = scmp.ne.s32.totalorder %s335, %s336
      %p350 = scmp.eq.s32.totalorder %s36, 3
      %p351 = por %p349, %p350
      %p353 = scmp.ne.s32.totalorder %s336, %s352
      %p354 = scmp.eq.s32.totalorder %s36, 0
      %p355 = por %p353, %p354
      %p356 = scmp.le.s32.totalorder 1, %s30
      %p357 = scmp.lt.s32.totalorder %s30, 5
      %p358 = pnand %p356, %p357
      %p359 = pneg %p358
      // Predicated region
      $region9: #{tpu_custom_call.1} parent=5 // pred_check
        _
      $region10: #{tpu_custom_call.1} parent=5 // pred_check_branch
        %361 = sbr.rel (%p358) target = $region12
      $region11: #{tpu_custom_call.1} parent=5 // pred_region
        %s362 = ssub.s32 %s30, 1
        // Predicated region
        $region13: #{tpu_custom_call.1} parent=11 // pred_check
          %p363 = pneg %p89
        $region14: #{tpu_custom_call.1} parent=11 // pred_check_branch
          %365 = sbr.rel (%p363) target = $region16
        $region15: #{tpu_custom_call.1} parent=11 // pred_region
          %367 = vsyncadd [#allocation9], 0
          %s369 = sshll.u32 %s1, 4
          %s370 = int_to_ptr.hbm [resolvable:$true] %s369
          %s371 = sshll.u32 [#allocation8], 4
          %s372 = int_to_ptr.vmem [resolvable:$true] %s371
          %374 = dma.hbm_to_vmem [thread:$0]  %s370, 16, %s372, [#allocation9]
        $region16: #{tpu_custom_call.1} parent=11 // pred_fallthru
          _
        // Predicated region
        $region17: #{tpu_custom_call.1} parent=11 // pred_check
          %p375 = pneg %p110
        $region18: #{tpu_custom_call.1} parent=11 // pred_check_branch
          %377 = sbr.rel (%p375) target = $region20
        $region19: #{tpu_custom_call.1} parent=11 // pred_region
          %379 = vsyncadd [#allocation9], 0
          %s381 = sshll.u32 %s2, 4
          %s382 = int_to_ptr.hbm [resolvable:$true] %s381
          %s383 = sshll.u32 [#allocation10], 4
          %s384 = int_to_ptr.vmem [resolvable:$true] %s383
          %386 = dma.hbm_to_vmem [thread:$0]  %s382, 16, %s384, [#allocation9]
        $region20: #{tpu_custom_call.1} parent=11 // pred_fallthru
          _
        // Predicated region
        $region21: #{tpu_custom_call.1} parent=11 // pred_check
          %p387 = pneg %p131
        $region22: #{tpu_custom_call.1} parent=11 // pred_check_branch
          %389 = sbr.rel (%p387) target = $region24
        $region23: #{tpu_custom_call.1} parent=11 // pred_region
          %391 = vsyncadd [#allocation12], 0
          %s392 = sshll.u32 %s3, 4
          %s393 = int_to_ptr.hbm [resolvable:$true] %s392
          %s394 = sshll.u32 [#allocation11], 4
          %s395 = int_to_ptr.vmem [resolvable:$true] %s394
          %400 = dma.hbm_to_vmem [thread:$0]  %s393, 3072, %s395, [#allocation12], 192, 192, 12
        $region24: #{tpu_custom_call.1} parent=11 // pred_fallthru
          _
        // Predicated region
        $region25: #{tpu_custom_call.1} parent=11 // pred_check
          %p401 = pneg %p152
        $region26: #{tpu_custom_call.1} parent=11 // pred_check_branch
          %403 = sbr.rel (%p401) target = $region28
        $region27: #{tpu_custom_call.1} parent=11 // pred_region
          _
        $region28: #{tpu_custom_call.1} parent=11 // pred_fallthru
          _
        // Predicated region
        $region29: #{tpu_custom_call.1} parent=11 // pred_check
          %p404 = pneg %p173
        $region30: #{tpu_custom_call.1} parent=11 // pred_check_branch
          %406 = sbr.rel (%p404) target = $region32
        $region31: #{tpu_custom_call.1} parent=11 // pred_region
          %408 = vsyncadd [#allocation12], 0
          %s409 = sshll.u32 %s5, 4
          %s410 = int_to_ptr.hbm [resolvable:$true] %s409
          %s411 = sshll.u32 [#allocation13], 4
          %s412 = int_to_ptr.vmem [resolvable:$true] %s411
          %417 = dma.hbm_to_vmem [thread:$0]  %s410, 1024, %s412, [#allocation12], 64, 64, 4
        $region32: #{tpu_custom_call.1} parent=11 // pred_fallthru
          _
        // Predicated region
        $region33: #{tpu_custom_call.1} parent=11 // pred_check
          %p418 = pneg %p194
        $region34: #{tpu_custom_call.1} parent=11 // pred_check_branch
          %420 = sbr.rel (%p418) target = $region36
        $region35: #{tpu_custom_call.1} parent=11 // pred_region
          %422 = vsyncadd [#allocation15], 0
          %s424 = sshll.u32 %s6, 4
          %s425 = int_to_ptr.hbm [resolvable:$true] %s424
          %s426 = sshll.u32 [#allocation14], 4
          %s427 = int_to_ptr.vmem [resolvable:$true] %s426
          %429 = dma.hbm_to_vmem [thread:$0]  %s425, 16, %s427, [#allocation15]
        $region36: #{tpu_custom_call.1} parent=11 // pred_fallthru
          _
        // Predicated region
        $region37: #{tpu_custom_call.1} parent=11 // pred_check
          %p430 = pneg %p215
        $region38: #{tpu_custom_call.1} parent=11 // pred_check_branch
          %432 = sbr.rel (%p430) target = $region40
        $region39: #{tpu_custom_call.1} parent=11 // pred_region
          %434 = vsyncadd [#allocation15], 0
          %s436 = sshll.u32 %s7, 4
          %s437 = int_to_ptr.hbm [resolvable:$true] %s436
          %s438 = sshll.u32 [#allocation16], 4
          %s439 = int_to_ptr.vmem [resolvable:$true] %s438
          %441 = dma.hbm_to_vmem [thread:$0]  %s437, 16, %s439, [#allocation15]
        $region40: #{tpu_custom_call.1} parent=11 // pred_fallthru
          _
        // Predicated region
        $region41: #{tpu_custom_call.1} parent=11 // pred_check
          %p442 = pneg %p236
        $region42: #{tpu_custom_call.1} parent=11 // pred_check_branch
          %444 = sbr.rel (%p442) target = $region44
        $region43: #{tpu_custom_call.1} parent=11 // pred_region
          %446 = vsyncadd [#allocation18], 0
          %s448 = sshll.u32 %s8, 4
          %s449 = int_to_ptr.hbm [resolvable:$true] %s448
          %s450 = sshll.u32 [#allocation17], 4
          %s451 = int_to_ptr.vmem [resolvable:$true] %s450
          %453 = dma.hbm_to_vmem [thread:$0]  %s449, 16, %s451, [#allocation18]
        $region44: #{tpu_custom_call.1} parent=11 // pred_fallthru
          _
        // Predicated region
        $region45: #{tpu_custom_call.1} parent=11 // pred_check
          %p454 = pneg %p257
        $region46: #{tpu_custom_call.1} parent=11 // pred_check_branch
          %456 = sbr.rel (%p454) target = $region48
        $region47: #{tpu_custom_call.1} parent=11 // pred_region
          %458 = vsyncadd [#allocation18], 0
          %s459 = sshll.u32 %s9, 4
          %s460 = int_to_ptr.hbm [resolvable:$true] %s459
          %s461 = sshll.u32 [#allocation19], 4
          %s462 = int_to_ptr.vmem [resolvable:$true] %s461
          %467 = dma.hbm_to_vmem [thread:$0]  %s460, 4096, %s462, [#allocation18], 256, 256, 16
        $region48: #{tpu_custom_call.1} parent=11 // pred_fallthru
          _
        // Predicated region
        $region49: #{tpu_custom_call.1} parent=11 // pred_check
          %p468 = pneg %p278
        $region50: #{tpu_custom_call.1} parent=11 // pred_check_branch
          %470 = sbr.rel (%p468) target = $region52
        $region51: #{tpu_custom_call.1} parent=11 // pred_region
          _
        $region52: #{tpu_custom_call.1} parent=11 // pred_fallthru
          _
        // Predicated region
        $region53: #{tpu_custom_call.1} parent=11 // pred_check
          %p471 = pneg %p299
        $region54: #{tpu_custom_call.1} parent=11 // pred_check_branch
          %473 = sbr.rel (%p471) target = $region56
        $region55: #{tpu_custom_call.1} parent=11 // pred_region
          %475 = vsyncadd [#allocation21], 0
          %s476 = sshll.u32 %s11, 4
          %s477 = int_to_ptr.hbm [resolvable:$true] %s476
          %s478 = sshll.u32 [#allocation20], 4
          %s479 = int_to_ptr.vmem [resolvable:$true] %s478
          %484 = dma.hbm_to_vmem [thread:$0]  %s477, 4096, %s479, [#allocation21], 64, 64, 4
        $region56: #{tpu_custom_call.1} parent=11 // pred_fallthru
          _
        // Predicated region
        $region57: #{tpu_custom_call.1} parent=11 // pred_check
          %p485 = pneg %p320
        $region58: #{tpu_custom_call.1} parent=11 // pred_check_branch
          %487 = sbr.rel (%p485) target = $region60
        $region59: #{tpu_custom_call.1} parent=11 // pred_region
          _
        $region60: #{tpu_custom_call.1} parent=11 // pred_fallthru
          _
      $region12: #{tpu_custom_call.1} parent=5 // pred_fallthru
        _
      %p488 = scmp.lt.s32.totalorder %s30, 4
      // Predicated region
      $region61: #{tpu_custom_call.1} parent=5 // pred_check
        %p489 = pneg %p488
      $region62: #{tpu_custom_call.1} parent=5 // pred_check_branch
        %491 = sbr.rel (%p489) target = $region64
      $region63: #{tpu_custom_call.1} parent=5 // pred_region
        // Predicated region
        $region65: #{tpu_custom_call.1} parent=63 // pred_check
          %p492 = pneg %p62
        $region66: #{tpu_custom_call.1} parent=63 // pred_check_branch
          %494 = sbr.rel (%p492) target = $region68
        $region67: #{tpu_custom_call.1} parent=63 // pred_region
          %s495 = sand.u32 %s52, 1
          %s496 = scalar_lea.sflag [#allocation6], %s495
          %s497 = sand.u32 %s52, 1
          %s498 = smul.addr %s497, 16
          %s499 = scalar_lea.vmem [#allocation5], %s498
          %501 = vsyncadd %s496, 0
          %s502 = smul.addr %s37, 2
          %s503 = smul.addr %s502, 8
          %s504 = scalar_lea.hbm %s0, %s503
          %s505 = sshll.u32 %s504, 4
          %s506 = int_to_ptr.hbm [resolvable:$true] %s505
          %s507 = sshll.u32 %s499, 4
          %s508 = int_to_ptr.vmem [resolvable:$true] %s507
          %513 = dma.hbm_to_vmem [thread:$0]  %s506, 256, %s508, %s496, 128, 128, 8
        $region68: #{tpu_custom_call.1} parent=63 // pred_fallthru
          _
      $region64: #{tpu_custom_call.1} parent=5 // pred_fallthru
        _
      %p514 = scmp.le.s32.totalorder 1, %s30
      %p515 = scmp.lt.s32.totalorder %s30, 5
      %p516 = pnand %p514, %p515
      %p517 = pneg %p516
      // Predicated region
      $region69: #{tpu_custom_call.1} parent=5 // pred_check
        _
      $region70: #{tpu_custom_call.1} parent=5 // pred_check_branch
        %519 = sbr.rel (%p516) target = $region72
      $region71: #{tpu_custom_call.1} parent=5 // pred_region
        %s520 = ssub.s32 %s30, 1
        %s521 = sand.u32 %s55, 1
        %s522 = scalar_lea.sflag [#allocation6], %s521
        %s523 = sand.u32 %s55, 1
        %s524 = smul.addr %s523, 16
        %s525 = scalar_lea.vmem [#allocation5], %s524
        // Predicated region
        $region73: #{tpu_custom_call.1} parent=71 // pred_check
          %p526 = pneg %p68
        $region74: #{tpu_custom_call.1} parent=71 // pred_check_branch
          %528 = sbr.rel (%p526) target = $region76
        $region75: #{tpu_custom_call.1} parent=71 // pred_region
          %530 = dma.done %s522, 256
        $region76: #{tpu_custom_call.1} parent=71 // pred_fallthru
          _
        // Predicated region
        $region77: #{tpu_custom_call.1} parent=71 // pred_check
          %p531 = pneg %p89
        $region78: #{tpu_custom_call.1} parent=71 // pred_check_branch
          %533 = sbr.rel (%p531) target = $region80
        $region79: #{tpu_custom_call.1} parent=71 // pred_region
          %535 = dma.done [#allocation9], 16
        $region80: #{tpu_custom_call.1} parent=71 // pred_fallthru
          _
        // Predicated region
        $region81: #{tpu_custom_call.1} parent=71 // pred_check
          %p536 = pneg %p110
        $region82: #{tpu_custom_call.1} parent=71 // pred_check_branch
          %538 = sbr.rel (%p536) target = $region84
        $region83: #{tpu_custom_call.1} parent=71 // pred_region
          %540 = dma.done [#allocation9], 16
        $region84: #{tpu_custom_call.1} parent=71 // pred_fallthru
          _
        // Predicated region
        $region85: #{tpu_custom_call.1} parent=71 // pred_check
          %p541 = pneg %p131
        $region86: #{tpu_custom_call.1} parent=71 // pred_check_branch
          %543 = sbr.rel (%p541) target = $region88
        $region87: #{tpu_custom_call.1} parent=71 // pred_region
          %545 = dma.done [#allocation12], 3072
        $region88: #{tpu_custom_call.1} parent=71 // pred_fallthru
          _
        // Predicated region
        $region89: #{tpu_custom_call.1} parent=71 // pred_check
          %p546 = pneg %p173
        $region90: #{tpu_custom_call.1} parent=71 // pred_check_branch
          %548 = sbr.rel (%p546) target = $region92
        $region91: #{tpu_custom_call.1} parent=71 // pred_region
          %550 = dma.done [#allocation12], 1024
        $region92: #{tpu_custom_call.1} parent=71 // pred_fallthru
          _
        // Predicated region
        $region93: #{tpu_custom_call.1} parent=71 // pred_check
          %p551 = pneg %p194
        $region94: #{tpu_custom_call.1} parent=71 // pred_check_branch
          %553 = sbr.rel (%p551) target = $region96
        $region95: #{tpu_custom_call.1} parent=71 // pred_region
          %555 = dma.done [#allocation15], 16
        $region96: #{tpu_custom_call.1} parent=71 // pred_fallthru
          _
        // Predicated region
        $region97: #{tpu_custom_call.1} parent=71 // pred_check
          %p556 = pneg %p215
        $region98: #{tpu_custom_call.1} parent=71 // pred_check_branch
          %558 = sbr.rel (%p556) target = $region100
        $region99: #{tpu_custom_call.1} parent=71 // pred_region
          %560 = dma.done [#allocation15], 16
        $region100: #{tpu_custom_call.1} parent=71 // pred_fallthru
          _
        // Predicated region
        $region101: #{tpu_custom_call.1} parent=71 // pred_check
          %p561 = pneg %p236
        $region102: #{tpu_custom_call.1} parent=71 // pred_check_branch
          %563 = sbr.rel (%p561) target = $region104
        $region103: #{tpu_custom_call.1} parent=71 // pred_region
          %565 = dma.done [#allocation18], 16
        $region104: #{tpu_custom_call.1} parent=71 // pred_fallthru
          _
        // Predicated region
        $region105: #{tpu_custom_call.1} parent=71 // pred_check
          %p566 = pneg %p257
        $region106: #{tpu_custom_call.1} parent=71 // pred_check_branch
          %568 = sbr.rel (%p566) target = $region108
        $region107: #{tpu_custom_call.1} parent=71 // pred_region
          %570 = dma.done [#allocation18], 4096
        $region108: #{tpu_custom_call.1} parent=71 // pred_fallthru
          _
        // Predicated region
        $region109: #{tpu_custom_call.1} parent=71 // pred_check
          %p571 = pneg %p299
        $region110: #{tpu_custom_call.1} parent=71 // pred_check_branch
          %573 = sbr.rel (%p571) target = $region112
        $region111: #{tpu_custom_call.1} parent=71 // pred_region
          %575 = dma.done [#allocation21], 4096
        $region112: #{tpu_custom_call.1} parent=71 // pred_fallthru
          _
        %s576 = sand.u32 %s55, 1
        %s577 = scalar_lea.sflag [#allocation6], %s576
        %s578 = sand.u32 %s55, 1
        %s579 = smul.addr %s578, 16
        %s580 = scalar_lea.vmem [#allocation5], %s579
        %p581 = pneg %p68
        %p582 = pneg %p65
        %p583 = pneg %p89
        %p584 = pneg %p86
        %p585 = pneg %p110
        %p586 = pneg %p107
        %p587 = pneg %p131
        %p588 = pneg %p128
        %p589 = pneg %p152
        %p590 = pneg %p149
        %p591 = pneg %p173
        %p592 = pneg %p170
        %p593 = pneg %p194
        %p594 = pneg %p191
        %p595 = pneg %p215
        %p596 = pneg %p212
        %p597 = pneg %p236
        %p598 = pneg %p233
        %p599 = pneg %p257
        %p600 = pneg %p254
        %p601 = pneg %p278
        %p602 = pneg %p275
        %p603 = pneg %p299
        %p604 = pneg %p296
        %p605 = pneg %p320
        %p606 = pneg %p317
        %p607 = pneg %p348
        %p608 = pneg %p345
        %s609 = sand.u32 %s335, 1
        %s610 = scalar_lea.sflag [#allocation7], %s609
        %s611 = sand.u32 %s335, 1
        %s612 = smul.addr %s611, 8
        %s613 = scalar_lea.vmem [#allocation22], %s612
        %p615 = scmp.eq.s32.totalorder %s40, 0
        // Predicated region
        $region113: #{tpu_custom_call.1} parent=71 // pred_check
          %p616 = pneg %p615
        $region114: #{tpu_custom_call.1} parent=71 // pred_check_branch
          %618 = sbr.rel (%p616) target = $region116
        $region115: #{tpu_custom_call.1} parent=71 // pred_region
          %v619 = vld [vmem:[%s525] sm:$0xff]
          %v620 = vld [vmem:[%s525 + $0x8] sm:$0xff]
          %v621 = vld [vmem:[#allocation8] sm:$0x1]
          %v622 = vld [vmem:[#allocation10] sm:$0x1]
          %623 = vadd.xlane.f32.xlu0 %v619
          %v624 = vpop.xlane.xlu0 %623
          %625 = vadd.xlane.f32.xlu0 %v620
          %v626 = vpop.xlane.xlu0 %625
          %v627 = vrcp.pop 128.0
          %v628 = vmul.f32 128.0, %v627
          %v629 = vsub.f32 1.0, %v628
          %v630 = vmul.f32 %v627, %v629
          %v631 = vadd.f32 %v627, %v630
          %vm632 = vweird.f32 %v627
          %v633 = vsel %vm632, %v627, %v631
          %v634 = vmul.f32 %v624, %v633
          %v635 = vmul.f32 %v626, %v633
          %v636 = vsub.f32 %v619, %v634
          %v637 = vsub.f32 %v620, %v635
          %v638 = vmul.f32 %v636, %v636
          %v639 = vmul.f32 %v637, %v637
          %640 = vadd.xlane.f32.xlu0 %v638
          %v641 = vpop.xlane.xlu0 %640
          %642 = vadd.xlane.f32.xlu0 %v639
          %v643 = vpop.xlane.xlu0 %642
          %v644 = vmul.f32 %v641, %v633
          %v645 = vmul.f32 %v643, %v633
          %v646 = vadd.f32 %v644, 1e-05
          %v647 = vadd.f32 %v645, 1e-05
          %v648 = vrsqrt.pop %v646
          %v649 = vmul.f32 %v648, %v646
          %v650 = vmul.f32 %v649, %v648
          %v651 = vmul.f32 0.5, %v650
          %v652 = vsub.f32 1.5, %v651
          %v653 = vmul.f32 %v648, %v652
          %vm654 = vweird.f32 %v646
          %vm655 = vweird.f32 %v648
          %vm656 = vmor %vm654, %vm655
          %v657 = vsel %vm656, %v648, %v653
          %v658 = vrsqrt.pop %v647
          %v659 = vmul.f32 %v658, %v647
          %v660 = vmul.f32 %v659, %v658
          %v661 = vmul.f32 0.5, %v660
          %v662 = vsub.f32 1.5, %v661
          %v663 = vmul.f32 %v658, %v662
          %vm664 = vweird.f32 %v647
          %vm665 = vweird.f32 %v658
          %vm666 = vmor %vm664, %vm665
          %v667 = vsel %vm666, %v658, %v663
          %v668 = vmul.f32 %v636, %v657
          %v669 = vmul.f32 %v637, %v667
          %v671 = vperm.slane %v621, 0
          %v673 = vmul.f32 %v668, %v671
          %v674 = vmul.f32 %v669, %v671
          %v676 = vperm.slane %v622, 0
          %v678 = vadd.f32 %v673, %v676
          %v679 = vadd.f32 %v674, %v676
          %v680 = vpack.c.bf16 %v679, %v678
          %v681 = vld [vmem:[#allocation11] sm:$0xff]
          %v682 = vld [vmem:[#allocation11 + $0x8] sm:$0xf]
          %v683 = vld [vmem:[#allocation11 + $0xc] sm:$0xff]
          %v684 = vld [vmem:[#allocation11 + $0x14] sm:$0xf]
          %v685 = vld [vmem:[#allocation11 + $0x18] sm:$0xff]
          %v686 = vld [vmem:[#allocation11 + $0x20] sm:$0xf]
          %v687 = vld [vmem:[#allocation11 + $0x24] sm:$0xff]
          %v688 = vld [vmem:[#allocation11 + $0x2c] sm:$0xf]
          %v689 = vld [vmem:[#allocation11 + $0x30] sm:$0xff]
          %v690 = vld [vmem:[#allocation11 + $0x38] sm:$0xf]
          %v691 = vld [vmem:[#allocation11 + $0x3c] sm:$0xff]
          %v692 = vld [vmem:[#allocation11 + $0x44] sm:$0xf]
          %v693 = vld [vmem:[#allocation11 + $0x48] sm:$0xff]
          %v694 = vld [vmem:[#allocation11 + $0x50] sm:$0xf]
          %v695 = vld [vmem:[#allocation11 + $0x54] sm:$0xff]
          %v696 = vld [vmem:[#allocation11 + $0x5c] sm:$0xf]
          %v697 = vld [vmem:[#allocation11 + $0x60] sm:$0xff]
          %v698 = vld [vmem:[#allocation11 + $0x68] sm:$0xf]
          %v699 = vld [vmem:[#allocation11 + $0x6c] sm:$0xff]
          %v700 = vld [vmem:[#allocation11 + $0x74] sm:$0xf]
          %v701 = vld [vmem:[#allocation11 + $0x78] sm:$0xff]
          %v702 = vld [vmem:[#allocation11 + $0x80] sm:$0xf]
          %v703 = vld [vmem:[#allocation11 + $0x84] sm:$0xff]
          %v704 = vld [vmem:[#allocation11 + $0x8c] sm:$0xf]
          %v705 = vld [vmem:[#allocation11 + $0x90] sm:$0xff]
          %v706 = vld [vmem:[#allocation11 + $0x98] sm:$0xf]
          %v707 = vld [vmem:[#allocation11 + $0x9c] sm:$0xff]
          %v708 = vld [vmem:[#allocation11 + $0xa4] sm:$0xf]
          %v709 = vld [vmem:[#allocation11 + $0xa8] sm:$0xff]
          %v710 = vld [vmem:[#allocation11 + $0xb0] sm:$0xf]
          %v711 = vld [vmem:[#allocation11 + $0xb4] sm:$0xff]
          %v712 = vld [vmem:[#allocation11 + $0xbc] sm:$0xf]
          %v713 = vld [vmem:[%s4] sm:$0x7]
          %v715 = vperm.slane %v713, 0
          %v716 = vperm.slane %v713, 1
          %v717 = vperm.slane %v713, 2
          %v753 = vunpack.c.l.b16 %v681
          %v754 = vunpack.c.h.b16 %v681
          %v755 = vunpack.c.l.b16 %v682
          %v756 = vunpack.c.l.b16 %v683
          %v757 = vunpack.c.h.b16 %v683
          %v758 = vunpack.c.l.b16 %v684
          %v759 = vunpack.c.l.b16 %v685
          %v760 = vunpack.c.h.b16 %v685
          %v761 = vunpack.c.l.b16 %v686
          %v762 = vunpack.c.l.b16 %v687
          %v763 = vunpack.c.h.b16 %v687
          %v764 = vunpack.c.l.b16 %v688
          %v765 = vunpack.c.l.b16 %v689
          %v766 = vunpack.c.h.b16 %v689
          %v767 = vunpack.c.l.b16 %v690
          %v768 = vunpack.c.l.b16 %v691
          %v769 = vunpack.c.h.b16 %v691
          %v770 = vunpack.c.l.b16 %v692
          %v771 = vunpack.c.l.b16 %v693
          %v772 = vunpack.c.h.b16 %v693
          %v773 = vunpack.c.l.b16 %v694
          %v774 = vunpack.c.l.b16 %v695
          %v775 = vunpack.c.h.b16 %v695
          %v776 = vunpack.c.l.b16 %v696
          %v777 = vunpack.c.l.b16 %v697
          %v778 = vunpack.c.h.b16 %v697
          %v779 = vunpack.c.l.b16 %v698
          %v780 = vunpack.c.l.b16 %v699
          %v781 = vunpack.c.h.b16 %v699
          %v782 = vunpack.c.l.b16 %v700
          %v783 = vunpack.c.l.b16 %v701
          %v784 = vunpack.c.h.b16 %v701
          %v785 = vunpack.c.l.b16 %v702
          %v786 = vunpack.c.l.b16 %v703
          %v787 = vunpack.c.h.b16 %v703
          %v788 = vunpack.c.l.b16 %v704
          %v789 = vunpack.c.l.b16 %v705
          %v790 = vunpack.c.h.b16 %v705
          %v791 = vunpack.c.l.b16 %v706
          %v792 = vunpack.c.l.b16 %v707
          %v793 = vunpack.c.h.b16 %v707
          %v794 = vunpack.c.l.b16 %v708
          %v795 = vunpack.c.l.b16 %v709
          %v796 = vunpack.c.h.b16 %v709
          %v797 = vunpack.c.l.b16 %v710
          %v798 = vunpack.c.l.b16 %v711
          %v799 = vunpack.c.h.b16 %v711
          %v800 = vunpack.c.l.b16 %v712
          %v801 = vpack.c.b16 %v756, %v753
          %v802 = vpack.c.b16 %v757, %v754
          %v803 = vpack.c.b16 %v758, %v755
          %v804 = vpack.c.b16 %v762, %v759
          %v805 = vpack.c.b16 %v763, %v760
          %v806 = vpack.c.b16 %v764, %v761
          %v807 = vpack.c.b16 %v768, %v765
          %v808 = vpack.c.b16 %v769, %v766
          %v809 = vpack.c.b16 %v770, %v767
          %v810 = vpack.c.b16 %v774, %v771
          %v811 = vpack.c.b16 %v775, %v772
          %v812 = vpack.c.b16 %v776, %v773
          %v813 = vpack.c.b16 %v780, %v777
          %v814 = vpack.c.b16 %v781, %v778
          %v815 = vpack.c.b16 %v782, %v779
          %v816 = vpack.c.b16 %v786, %v783
          %v817 = vpack.c.b16 %v787, %v784
          %v818 = vpack.c.b16 %v788, %v785
          %v819 = vpack.c.b16 %v792, %v789
          %v820 = vpack.c.b16 %v793, %v790
          %v821 = vpack.c.b16 %v794, %v791
          %v822 = vpack.c.b16 %v798, %v795
          %v823 = vpack.c.b16 %v799, %v796
          %v824 = vpack.c.b16 %v800, %v797
          %849 = vmatpush.bf16.msra.mxu0 %v822
          %850 = vmatpush.bf16.msra.mxu0 %v819
          %851 = vmatpush.bf16.msra.mxu0 %v816
          %852 = vmatpush.bf16.msra.mxu0 %v813
          %853 = vmatpush.bf16.msra.mxu0 %v810
          %854 = vmatpush.bf16.msra.mxu0 %v807
          %855 = vmatpush.bf16.msra.mxu0 %v804
          %856 = vmatpush.bf16.msra.mxu0 %v801
          %857 = vmatmul.bf16.gmra.mxu0 %v680
          %v858 = vpop.f32.mrf.mxu0
          %v859 = vadd.f32 %v715, %v858
          %v860 = vpop.f32.mrf.mxu0
          %v861 = vadd.f32 %v715, %v860
          %862 = vdwg.mxu0
          %863 = vmatpush.bf16.msra.mxu0 %v823
          %864 = vmatpush.bf16.msra.mxu0 %v820
          %865 = vmatpush.bf16.msra.mxu0 %v817
          %866 = vmatpush.bf16.msra.mxu0 %v814
          %867 = vmatpush.bf16.msra.mxu0 %v811
          %868 = vmatpush.bf16.msra.mxu0 %v808
          %869 = vmatpush.bf16.msra.mxu0 %v805
          %870 = vmatpush.bf16.msra.mxu0 %v802
          %871 = vmatmul.bf16.gmra.mxu0 %v680
          %v872 = vpop.f32.mrf.mxu0
          %v873 = vadd.f32 %v716, %v872
          %v874 = vpop.f32.mrf.mxu0
          %v875 = vadd.f32 %v716, %v874
          %876 = vdwg.mxu0
          %877 = vmatpush.bf16.msra.mxu0 %v824
          %878 = vmatpush.bf16.msra.mxu0 %v821
          %879 = vmatpush.bf16.msra.mxu0 %v818
          %880 = vmatpush.bf16.msra.mxu0 %v815
          %881 = vmatpush.bf16.msra.mxu0 %v812
          %882 = vmatpush.bf16.msra.mxu0 %v809
          %883 = vmatpush.bf16.msra.mxu0 %v806
          %884 = vmatpush.bf16.msra.mxu0 %v803
          %885 = vmatmul.bf16.gmra.mxu0 %v680
          %v886 = vpop.f32.mrf.mxu0
          %v887 = vadd.f32 %v717, %v886
          %v888 = vpop.f32.mrf.mxu0
          %v889 = vadd.f32 %v717, %v888
          %890 = vdwg.mxu0
          %v891 = vpack.c.bf16 %v873, %v859
          %v892 = vpack.c.bf16 %v887, %v887
          %v893 = vpack.c.bf16 %v875, %v861
          %v894 = vpack.c.bf16 %v889, %v889
          %vm895 = vcmask 257024
          %896 = vst.msk [vmem:[#allocation2] sm:$0xf] %vm895, %v891
          %897 = vst.msk [vmem:[#allocation2 + $0x4] sm:$0xf] %vm895, %v893
          %v900 = vrot.slane %v891, 4
          %v901 = vrot.slane %v893, 4
          %904 = vst.msk [vmem:[#allocation3] sm:$0xf] %vm895, %v900
          %905 = vst.msk [vmem:[#allocation3 + $0x4] sm:$0xf] %vm895, %v901
          %906 = vst.msk [vmem:[#allocation4] sm:$0xf] %vm895, %v892
          %907 = vst.msk [vmem:[#allocation4 + $0x4] sm:$0xf] %vm895, %v894
          %908 = vrot.lane.b32.xlu0 %v891, 96
          %v909 = vpop.permute.xlu0 %908
          %910 = vrot.lane.b32.xlu0 %v893, 96
          %v911 = vpop.permute.xlu0 %910
          %s914 = scalar_lea.vmem [#allocation2], 8
          %915 = vst.msk [vmem:[%s914] sm:$0xf] %vm895, %v909
          %916 = vst.msk [vmem:[%s914 + $0x4] sm:$0xf] %vm895, %v911
          %v917 = vrot.slane %v909, 4
          %v918 = vrot.slane %v911, 4
          %s921 = scalar_lea.vmem [#allocation3], 8
          %922 = vst.msk [vmem:[%s921] sm:$0xf] %vm895, %v917
          %923 = vst.msk [vmem:[%s921 + $0x4] sm:$0xf] %vm895, %v918
          %926 = vrot.lane.b32.xlu0 %v892, 96
          %v927 = vpop.permute.xlu0 %926
          %928 = vrot.lane.b32.xlu0 %v894, 96
          %v929 = vpop.permute.xlu0 %928
          %s932 = scalar_lea.vmem [#allocation4], 8
          %933 = vst.msk [vmem:[%s932] sm:$0xf] %vm895, %v927
          %934 = vst.msk [vmem:[%s932 + $0x4] sm:$0xf] %vm895, %v929
          %935 = vrot.lane.b32.xlu0 %v891, 64
          %v936 = vpop.permute.xlu0 %935
          %937 = vrot.lane.b32.xlu0 %v893, 64
          %v938 = vpop.permute.xlu0 %937
          %s941 = scalar_lea.vmem [#allocation2], 16
          %942 = vst.msk [vmem:[%s941] sm:$0xf] %vm895, %v936
          %943 = vst.msk [vmem:[%s941 + $0x4] sm:$0xf] %vm895, %v938
          %v944 = vrot.slane %v936, 4
          %v945 = vrot.slane %v938, 4
          %s948 = scalar_lea.vmem [#allocation3], 16
          %949 = vst.msk [vmem:[%s948] sm:$0xf] %vm895, %v944
          %950 = vst.msk [vmem:[%s948 + $0x4] sm:$0xf] %vm895, %v945
          %951 = vrot.lane.b32.xlu0 %v892, 64
          %v952 = vpop.permute.xlu0 %951
          %953 = vrot.lane.b32.xlu0 %v894, 64
          %v954 = vpop.permute.xlu0 %953
          %s957 = scalar_lea.vmem [#allocation4], 16
          %958 = vst.msk [vmem:[%s957] sm:$0xf] %vm895, %v952
          %959 = vst.msk [vmem:[%s957 + $0x4] sm:$0xf] %vm895, %v954
          %960 = vrot.lane.b32.xlu0 %v891, 32
          %v961 = vpop.permute.xlu0 %960
          %962 = vrot.lane.b32.xlu0 %v893, 32
          %v963 = vpop.permute.xlu0 %962
          %s966 = scalar_lea.vmem [#allocation2], 24
          %967 = vst.msk [vmem:[%s966] sm:$0xf] %vm895, %v961
          %968 = vst.msk [vmem:[%s966 + $0x4] sm:$0xf] %vm895, %v963
          %v969 = vrot.slane %v961, 4
          %v970 = vrot.slane %v963, 4
          %s973 = scalar_lea.vmem [#allocation3], 24
          %974 = vst.msk [vmem:[%s973] sm:$0xf] %vm895, %v969
          %975 = vst.msk [vmem:[%s973 + $0x4] sm:$0xf] %vm895, %v970
          %976 = vrot.lane.b32.xlu0 %v892, 32
          %v977 = vpop.permute.xlu0 %976
          %978 = vrot.lane.b32.xlu0 %v894, 32
          %v979 = vpop.permute.xlu0 %978
          %s982 = scalar_lea.vmem [#allocation4], 24
          %983 = vst.msk [vmem:[%s982] sm:$0xf] %vm895, %v977
          %984 = vst.msk [vmem:[%s982 + $0x4] sm:$0xf] %vm895, %v979
        $region116: #{tpu_custom_call.1} parent=71 // pred_fallthru
          _
        %s985 = smul.u32 %s40, 8
        %s986 = scalar_lea.vmem %s525, %s985 [#allocation5]
        %v987 = vld [vmem:[%s986] sm:$0xff]
        %s988 = sshra.s32 %s985, 3
        %s989 = sand.u32 %s985, 7
        %s990 = smul.addr %s988, 4
        %s991 = scalar_lea.vmem [#allocation2], %s990
        %v992 = vld [vmem:[%s991] sm:$0xf]
        %v993 = vld [vmem:[%s991 + $0x8] sm:$0xf]
        %v994 = vld [vmem:[%s991 + $0x10] sm:$0xf]
        %v995 = vld [vmem:[%s991 + $0x18] sm:$0xf]
        %v996 = vld [vmem:[#allocation3] sm:$0xf]
        %v997 = vld [vmem:[#allocation3 + $0x4] sm:$0xf]
        %v998 = vld [vmem:[#allocation3 + $0x8] sm:$0xf]
        %v999 = vld [vmem:[#allocation3 + $0xc] sm:$0xf]
        %v1000 = vld [vmem:[#allocation3 + $0x10] sm:$0xf]
        %v1001 = vld [vmem:[#allocation3 + $0x14] sm:$0xf]
        %v1002 = vld [vmem:[#allocation3 + $0x18] sm:$0xf]
        %v1003 = vld [vmem:[#allocation3 + $0x1c] sm:$0xf]
        %v1004 = vld [vmem:[#allocation4] sm:$0xf]
        %v1005 = vld [vmem:[#allocation4 + $0x4] sm:$0xf]
        %v1006 = vld [vmem:[#allocation4 + $0x8] sm:$0xf]
        %v1007 = vld [vmem:[#allocation4 + $0xc] sm:$0xf]
        %v1008 = vld [vmem:[#allocation4 + $0x10] sm:$0xf]
        %v1009 = vld [vmem:[#allocation4 + $0x14] sm:$0xf]
        %v1010 = vld [vmem:[#allocation4 + $0x18] sm:$0xf]
        %v1011 = vld [vmem:[#allocation4 + $0x1c] sm:$0xf]
        %v1014 = vunpack.c.l.b16 %v996
        %v1015 = vunpack.c.l.b16 %v997
        %v1016 = vpack.c.b16 %v1015, %v1014
        %vm1017 = vcmask 261120
        %v1019 = vsel %vm1017, %v992, 0
        %v1022 = vsel %vm1017, %v1016, 0
        %1024 = vmatpush.bf16.xpose.msra.mxu0 0
        %1025 = vmatpush.bf16.xpose.msra.mxu0 0
        %1026 = vmatpush.bf16.xpose.msra.mxu0 0
        %1027 = vmatpush.bf16.xpose.msra.mxu0 0
        %1028 = vmatpush.bf16.xpose.msra.mxu0 0
        %1029 = vmatpush.bf16.xpose.msra.mxu0 0
        %1030 = vmatpush.bf16.xpose.msra.mxu0 0
        %1031 = vmatpush.bf16.xpose.msra.mxu0 %v1022
        %1032 = vmatmul.bf16.gmra.mxu0 %v1019
        %v1033 = vpop.f32.mrf.mxu0
        %v1034 = vadd.f32 0.0, %v1033
        %v1035 = vpop.f32.mrf.mxu0
        %1036 = vdwg.mxu0
        %v1039 = vunpack.c.l.b16 %v998
        %v1040 = vunpack.c.l.b16 %v999
        %v1041 = vpack.c.b16 %v1040, %v1039
        %v1043 = vsel %vm1017, %v993, 0
        %v1046 = vsel %vm1017, %v1041, 0
        %1048 = vmatpush.bf16.xpose.msra.mxu0 0
        %1049 = vmatpush.bf16.xpose.msra.mxu0 0
        %1050 = vmatpush.bf16.xpose.msra.mxu0 0
        %1051 = vmatpush.bf16.xpose.msra.mxu0 0
        %1052 = vmatpush.bf16.xpose.msra.mxu0 0
        %1053 = vmatpush.bf16.xpose.msra.mxu0 0
        %1054 = vmatpush.bf16.xpose.msra.mxu0 0
        %1055 = vmatpush.bf16.xpose.msra.mxu0 %v1046
        %1056 = vmatmul.bf16.gmra.mxu0 %v1043
        %v1057 = vpop.f32.mrf.mxu0
        %v1058 = vadd.f32 0.0, %v1057
        %v1059 = vpop.f32.mrf.mxu0
        %1060 = vdwg.mxu0
        %v1063 = vunpack.c.l.b16 %v1000
        %v1064 = vunpack.c.l.b16 %v1001
        %v1065 = vpack.c.b16 %v1064, %v1063
        %v1067 = vsel %vm1017, %v994, 0
        %v1070 = vsel %vm1017, %v1065, 0
        %1072 = vmatpush.bf16.xpose.msra.mxu0 0
        %1073 = vmatpush.bf16.xpose.msra.mxu0 0
        %1074 = vmatpush.bf16.xpose.msra.mxu0 0
        %1075 = vmatpush.bf16.xpose.msra.mxu0 0
        %1076 = vmatpush.bf16.xpose.msra.mxu0 0
        %1077 = vmatpush.bf16.xpose.msra.mxu0 0
        %1078 = vmatpush.bf16.xpose.msra.mxu0 0
        %1079 = vmatpush.bf16.xpose.msra.mxu0 %v1070
        %1080 = vmatmul.bf16.gmra.mxu0 %v1067
        %v1081 = vpop.f32.mrf.mxu0
        %v1082 = vadd.f32 0.0, %v1081
        %v1083 = vpop.f32.mrf.mxu0
        %1084 = vdwg.mxu0
        %v1087 = vunpack.c.l.b16 %v1002
        %v1088 = vunpack.c.l.b16 %v1003
        %v1089 = vpack.c.b16 %v1088, %v1087
        %v1091 = vsel %vm1017, %v995, 0
        %v1094 = vsel %vm1017, %v1089, 0
        %1096 = vmatpush.bf16.xpose.msra.mxu0 0
        %1097 = vmatpush.bf16.xpose.msra.mxu0 0
        %1098 = vmatpush.bf16.xpose.msra.mxu0 0
        %1099 = vmatpush.bf16.xpose.msra.mxu0 0
        %1100 = vmatpush.bf16.xpose.msra.mxu0 0
        %1101 = vmatpush.bf16.xpose.msra.mxu0 0
        %1102 = vmatpush.bf16.xpose.msra.mxu0 0
        %1103 = vmatpush.bf16.xpose.msra.mxu0 %v1094
        %1104 = vmatmul.bf16.gmra.mxu0 %v1091
        %v1105 = vpop.f32.mrf.mxu0
        %v1106 = vadd.f32 0.0, %v1105
        %v1107 = vpop.f32.mrf.mxu0
        %1108 = vdwg.mxu0
        %v1109 = vlaneseq
        %v1110 = vshrl.u32 %v1109, 7
        %v1111 = vstv %s985
        %v1112 = vadd.s32 %v1111, %v1110
        %v1113 = vlaneseq
        %v1114 = vand.u32 %v1113, 127
        %vm1115 = vcmp.le.s32.totalorder %v1114, %v1112
        %v1116 = vsel %vm1115, 1, 0
        %vm1117 = vcmp.eq.s32.totalorder %v1116, 1
        %v1118 = vsel %vm1117, %v1034, -1e+30
        %v1119 = vsel %vm1117, %v1058, -1e+30
        %v1120 = vsel %vm1117, %v1082, -1e+30
        %v1121 = vsel %vm1117, %v1106, -1e+30
        %vm1122 = vcmask 130048
        %v1123 = vsel %vm1122, %v1118, -inf
        %1124 = vmax.xlane.f32.xlu0 %v1123
        %v1125 = vpop.xlane.xlu0 %1124
        %v1126 = vsel %vm1122, %v1119, -inf
        %1127 = vmax.xlane.f32.xlu0 %v1126
        %v1128 = vpop.xlane.xlu0 %1127
        %v1129 = vsel %vm1122, %v1120, -inf
        %1130 = vmax.xlane.f32.xlu0 %v1129
        %v1131 = vpop.xlane.xlu0 %1130
        %v1132 = vsel %vm1122, %v1121, -inf
        %1133 = vmax.xlane.f32.xlu0 %v1132
        %v1134 = vpop.xlane.xlu0 %1133
        %v1135 = vsub.f32 %v1118, %v1125
        %v1136 = vsub.f32 %v1119, %v1128
        %v1137 = vsub.f32 %v1120, %v1131
        %v1138 = vsub.f32 %v1121, %v1134
        %v1139 = vmul.f32 %v1135, 1.442695
        %v1140 = vpow.pop %v1139
        %v1141 = vmul.f32 %v1136, 1.442695
        %v1142 = vpow.pop %v1141
        %v1143 = vmul.f32 %v1137, 1.442695
        %v1144 = vpow.pop %v1143
        %v1145 = vmul.f32 %v1138, 1.442695
        %v1146 = vpow.pop %v1145
        %v1147 = vsel %vm1122, %v1140, 0.0
        %1148 = vadd.xlane.f32.xlu0 %v1147
        %v1149 = vpop.xlane.xlu0 %1148
        %v1150 = vsel %vm1122, %v1142, 0.0
        %1151 = vadd.xlane.f32.xlu0 %v1150
        %v1152 = vpop.xlane.xlu0 %1151
        %v1153 = vsel %vm1122, %v1144, 0.0
        %1154 = vadd.xlane.f32.xlu0 %v1153
        %v1155 = vpop.xlane.xlu0 %1154
        %v1156 = vsel %vm1122, %v1146, 0.0
        %1157 = vadd.xlane.f32.xlu0 %v1156
        %v1158 = vpop.xlane.xlu0 %1157
        %v1159 = vrcp.pop %v1149
        %v1160 = vrcp.pop %v1152
        %v1161 = vrcp.pop %v1155
        %v1162 = vrcp.pop %v1158
        %v1163 = vmul.f32 %v1140, %v1159
        %v1164 = vmul.f32 %v1142, %v1160
        %v1165 = vmul.f32 %v1144, %v1161
        %v1166 = vmul.f32 %v1146, %v1162
        %v1167 = vpack.c.bf16 %v1163, %v1163
        %v1168 = vpack.c.bf16 %v1164, %v1164
        %v1169 = vpack.c.bf16 %v1165, %v1165
        %v1170 = vpack.c.bf16 %v1166, %v1166
        %v1173 = vunpack.c.l.b16 %v1004
        %v1174 = vunpack.c.l.b16 %v1005
        %v1175 = vpack.c.b16 %v1174, %v1173
        %v1178 = vsel %vm1122, %v1167, 0
        %1180 = vmatpush.bf16.msra.mxu0 0
        %1181 = vmatpush.bf16.msra.mxu0 0
        %1182 = vmatpush.bf16.msra.mxu0 0
        %1183 = vmatpush.bf16.msra.mxu0 0
        %1184 = vmatpush.bf16.msra.mxu0 0
        %1185 = vmatpush.bf16.msra.mxu0 0
        %1186 = vmatpush.bf16.msra.mxu0 0
        %1187 = vmatpush.bf16.msra.mxu0 %v1175
        %1188 = vmatmul.bf16.gmra.mxu0 %v1178
        %v1189 = vpop.f32.mrf.mxu0
        %v1190 = vadd.f32 0.0, %v1189
        %v1191 = vpop.f32.mrf.mxu0
        %1192 = vdwg.mxu0
        %v1195 = vunpack.c.l.b16 %v1006
        %v1196 = vunpack.c.l.b16 %v1007
        %v1197 = vpack.c.b16 %v1196, %v1195
        %v1200 = vsel %vm1122, %v1168, 0
        %1202 = vmatpush.bf16.msra.mxu0 0
        %1203 = vmatpush.bf16.msra.mxu0 0
        %1204 = vmatpush.bf16.msra.mxu0 0
        %1205 = vmatpush.bf16.msra.mxu0 0
        %1206 = vmatpush.bf16.msra.mxu0 0
        %1207 = vmatpush.bf16.msra.mxu0 0
        %1208 = vmatpush.bf16.msra.mxu0 0
        %1209 = vmatpush.bf16.msra.mxu0 %v1197
        %1210 = vmatmul.bf16.gmra.mxu0 %v1200
        %v1211 = vpop.f32.mrf.mxu0
        %v1212 = vadd.f32 0.0, %v1211
        %v1213 = vpop.f32.mrf.mxu0
        %1214 = vdwg.mxu0
        %v1217 = vunpack.c.l.b16 %v1008
        %v1218 = vunpack.c.l.b16 %v1009
        %v1219 = vpack.c.b16 %v1218, %v1217
        %v1222 = vsel %vm1122, %v1169, 0
        %1224 = vmatpush.bf16.msra.mxu0 0
        %1225 = vmatpush.bf16.msra.mxu0 0
        %1226 = vmatpush.bf16.msra.mxu0 0
        %1227 = vmatpush.bf16.msra.mxu0 0
        %1228 = vmatpush.bf16.msra.mxu0 0
        %1229 = vmatpush.bf16.msra.mxu0 0
        %1230 = vmatpush.bf16.msra.mxu0 0
        %1231 = vmatpush.bf16.msra.mxu0 %v1219
        %1232 = vmatmul.bf16.gmra.mxu0 %v1222
        %v1233 = vpop.f32.mrf.mxu0
        %v1234 = vadd.f32 0.0, %v1233
        %v1235 = vpop.f32.mrf.mxu0
        %1236 = vdwg.mxu0
        %v1239 = vunpack.c.l.b16 %v1010
        %v1240 = vunpack.c.l.b16 %v1011
        %v1241 = vpack.c.b16 %v1240, %v1239
        %v1244 = vsel %vm1122, %v1170, 0
        %1246 = vmatpush.bf16.msra.mxu0 0
        %1247 = vmatpush.bf16.msra.mxu0 0
        %1248 = vmatpush.bf16.msra.mxu0 0
        %1249 = vmatpush.bf16.msra.mxu0 0
        %1250 = vmatpush.bf16.msra.mxu0 0
        %1251 = vmatpush.bf16.msra.mxu0 0
        %1252 = vmatpush.bf16.msra.mxu0 0
        %1253 = vmatpush.bf16.msra.mxu0 %v1241
        %1254 = vmatmul.bf16.gmra.mxu0 %v1244
        %v1255 = vpop.f32.mrf.mxu0
        %v1256 = vadd.f32 0.0, %v1255
        %v1257 = vpop.f32.mrf.mxu0
        %1258 = vdwg.mxu0
        %1260 = vrot.lane.b32.xlu0 %v1212, 32
        %v1261 = vpop.permute.xlu0 %1260
        %1264 = vrot.lane.b32.xlu0 %v1234, 64
        %v1265 = vpop.permute.xlu0 %1264
        %1268 = vrot.lane.b32.xlu0 %v1256, 96
        %v1269 = vpop.permute.xlu0 %1268
        %v1271 = vsel %vm1017, %v1190, %v1261
        %vm1272 = vcmask 523264
        %v1273 = vsel %vm1272, %v1271, %v1265
        %vm1274 = vcmask 785408
        %v1275 = vsel %vm1274, %v1273, %v1269
        %v1276 = vpack.c.bf16 %v1275, %v1275
        %v1277 = vld [vmem:[#allocation13] sm:$0xf]
        %v1278 = vld [vmem:[#allocation13 + $0x4] sm:$0xf]
        %v1279 = vld [vmem:[#allocation13 + $0x8] sm:$0xf]
        %v1280 = vld [vmem:[#allocation13 + $0xc] sm:$0xf]
        %v1281 = vld [vmem:[#allocation13 + $0x10] sm:$0xf]
        %v1282 = vld [vmem:[#allocation13 + $0x14] sm:$0xf]
        %v1283 = vld [vmem:[#allocation13 + $0x18] sm:$0xf]
        %v1284 = vld [vmem:[#allocation13 + $0x1c] sm:$0xf]
        %v1285 = vld [vmem:[#allocation13 + $0x20] sm:$0xf]
        %v1286 = vld [vmem:[#allocation13 + $0x24] sm:$0xf]
        %v1287 = vld [vmem:[#allocation13 + $0x28] sm:$0xf]
        %v1288 = vld [vmem:[#allocation13 + $0x2c] sm:$0xf]
        %v1289 = vld [vmem:[#allocation13 + $0x30] sm:$0xf]
        %v1290 = vld [vmem:[#allocation13 + $0x34] sm:$0xf]
        %v1291 = vld [vmem:[#allocation13 + $0x38] sm:$0xf]
        %v1292 = vld [vmem:[#allocation13 + $0x3c] sm:$0xf]
        %v1293 = vld [vmem:[#allocation14] sm:$0x1]
        %v1295 = vperm.slane %v1293, 0
        %v1313 = vunpack.c.l.b16 %v1277
        %v1314 = vunpack.c.l.b16 %v1278
        %v1315 = vunpack.c.l.b16 %v1279
        %v1316 = vunpack.c.l.b16 %v1280
        %v1317 = vunpack.c.l.b16 %v1281
        %v1318 = vunpack.c.l.b16 %v1282
        %v1319 = vunpack.c.l.b16 %v1283
        %v1320 = vunpack.c.l.b16 %v1284
        %v1321 = vunpack.c.l.b16 %v1285
        %v1322 = vunpack.c.l.b16 %v1286
        %v1323 = vunpack.c.l.b16 %v1287
        %v1324 = vunpack.c.l.b16 %v1288
        %v1325 = vunpack.c.l.b16 %v1289
        %v1326 = vunpack.c.l.b16 %v1290
        %v1327 = vunpack.c.l.b16 %v1291
        %v1328 = vunpack.c.l.b16 %v1292
        %v1329 = vpack.c.b16 %v1314, %v1313
        %v1330 = vpack.c.b16 %v1316, %v1315
        %v1331 = vpack.c.b16 %v1318, %v1317
        %v1332 = vpack.c.b16 %v1320, %v1319
        %v1333 = vpack.c.b16 %v1322, %v1321
        %v1334 = vpack.c.b16 %v1324, %v1323
        %v1335 = vpack.c.b16 %v1326, %v1325
        %v1336 = vpack.c.b16 %v1328, %v1327
        %1345 = vmatpush.bf16.msra.mxu0 %v1336
        %1346 = vmatpush.bf16.msra.mxu0 %v1335
        %1347 = vmatpush.bf16.msra.mxu0 %v1334
        %1348 = vmatpush.bf16.msra.mxu0 %v1333
        %1349 = vmatpush.bf16.msra.mxu0 %v1332
        %1350 = vmatpush.bf16.msra.mxu0 %v1331
        %1351 = vmatpush.bf16.msra.mxu0 %v1330
        %1352 = vmatpush.bf16.msra.mxu0 %v1329
        %1353 = vmatmul.bf16.gmra.mxu0 %v1276
        %v1354 = vpop.f32.mrf.mxu0
        %v1355 = vadd.f32 %v1295, %v1354
        %v1356 = vpop.f32.mrf.mxu0
        %1357 = vdwg.mxu0
        %v1358 = vadd.f32 %v987, %v1355
        %v1359 = vld [vmem:[#allocation16] sm:$0x1]
        %v1360 = vld [vmem:[#allocation17] sm:$0x1]
        %1361 = vadd.xlane.f32.xlu0 %v1358
        %v1362 = vpop.xlane.xlu0 %1361
        %v1363 = vrcp.pop 128.0
        %v1364 = vmul.f32 128.0, %v1363
        %v1365 = vsub.f32 1.0, %v1364
        %v1366 = vmul.f32 %v1363, %v1365
        %v1367 = vadd.f32 %v1363, %v1366
        %vm1368 = vweird.f32 %v1363
        %v1369 = vsel %vm1368, %v1363, %v1367
        %v1370 = vmul.f32 %v1362, %v1369
        %v1371 = vsub.f32 %v1358, %v1370
        %v1372 = vmul.f32 %v1371, %v1371
        %1373 = vadd.xlane.f32.xlu0 %v1372
        %v1374 = vpop.xlane.xlu0 %1373
        %v1375 = vmul.f32 %v1374, %v1369
        %v1376 = vadd.f32 %v1375, 1e-05
        %v1377 = vrsqrt.pop %v1376
        %v1378 = vmul.f32 %v1377, %v1376
        %v1379 = vmul.f32 %v1378, %v1377
        %v1380 = vmul.f32 0.5, %v1379
        %v1381 = vsub.f32 1.5, %v1380
        %v1382 = vmul.f32 %v1377, %v1381
        %vm1383 = vweird.f32 %v1376
        %vm1384 = vweird.f32 %v1377
        %vm1385 = vmor %vm1383, %vm1384
        %v1386 = vsel %vm1385, %v1377, %v1382
        %v1387 = vmul.f32 %v1371, %v1386
        %v1389 = vperm.slane %v1359, 0
        %v1391 = vmul.f32 %v1387, %v1389
        %v1393 = vperm.slane %v1360, 0
        %v1395 = vadd.f32 %v1391, %v1393
        %v1396 = vpack.c.bf16 %v1395, %v1395
        %v1397 = vld [vmem:[#allocation19] sm:$0xff]
        %v1398 = vld [vmem:[#allocation19 + $0x8] sm:$0xff]
        %v1399 = vld [vmem:[#allocation19 + $0x10] sm:$0xff]
        %v1400 = vld [vmem:[#allocation19 + $0x18] sm:$0xff]
        %v1401 = vld [vmem:[#allocation19 + $0x20] sm:$0xff]
        %v1402 = vld [vmem:[#allocation19 + $0x28] sm:$0xff]
        %v1403 = vld [vmem:[#allocation19 + $0x30] sm:$0xff]
        %v1404 = vld [vmem:[#allocation19 + $0x38] sm:$0xff]
        %v1405 = vld [vmem:[#allocation19 + $0x40] sm:$0xff]
        %v1406 = vld [vmem:[#allocation19 + $0x48] sm:$0xff]
        %v1407 = vld [vmem:[#allocation19 + $0x50] sm:$0xff]
        %v1408 = vld [vmem:[#allocation19 + $0x58] sm:$0xff]
        %v1409 = vld [vmem:[#allocation19 + $0x60] sm:$0xff]
        %v1410 = vld [vmem:[#allocation19 + $0x68] sm:$0xff]
        %v1411 = vld [vmem:[#allocation19 + $0x70] sm:$0xff]
        %v1412 = vld [vmem:[#allocation19 + $0x78] sm:$0xff]
        %v1413 = vld [vmem:[#allocation19 + $0x80] sm:$0xff]
        %v1414 = vld [vmem:[#allocation19 + $0x88] sm:$0xff]
        %v1415 = vld [vmem:[#allocation19 + $0x90] sm:$0xff]
        %v1416 = vld [vmem:[#allocation19 + $0x98] sm:$0xff]
        %v1417 = vld [vmem:[#allocation19 + $0xa0] sm:$0xff]
        %v1418 = vld [vmem:[#allocation19 + $0xa8] sm:$0xff]
        %v1419 = vld [vmem:[#allocation19 + $0xb0] sm:$0xff]
        %v1420 = vld [vmem:[#allocation19 + $0xb8] sm:$0xff]
        %v1421 = vld [vmem:[#allocation19 + $0xc0] sm:$0xff]
        %v1422 = vld [vmem:[#allocation19 + $0xc8] sm:$0xff]
        %v1423 = vld [vmem:[#allocation19 + $0xd0] sm:$0xff]
        %v1424 = vld [vmem:[#allocation19 + $0xd8] sm:$0xff]
        %v1425 = vld [vmem:[#allocation19 + $0xe0] sm:$0xff]
        %v1426 = vld [vmem:[#allocation19 + $0xe8] sm:$0xff]
        %v1427 = vld [vmem:[#allocation19 + $0xf0] sm:$0xff]
        %v1428 = vld [vmem:[#allocation19 + $0xf8] sm:$0xff]
        %v1429 = vld [vmem:[%s10] sm:$0xf]
        %v1431 = vperm.slane %v1429, 0
        %v1432 = vperm.slane %v1429, 1
        %v1433 = vperm.slane %v1429, 2
        %v1434 = vperm.slane %v1429, 3
        %v1471 = vunpack.c.l.b16 %v1397
        %v1472 = vunpack.c.h.b16 %v1397
        %v1473 = vunpack.c.l.b16 %v1398
        %v1474 = vunpack.c.h.b16 %v1398
        %v1475 = vunpack.c.l.b16 %v1399
        %v1476 = vunpack.c.h.b16 %v1399
        %v1477 = vunpack.c.l.b16 %v1400
        %v1478 = vunpack.c.h.b16 %v1400
        %v1479 = vunpack.c.l.b16 %v1401
        %v1480 = vunpack.c.h.b16 %v1401
        %v1481 = vunpack.c.l.b16 %v1402
        %v1482 = vunpack.c.h.b16 %v1402
        %v1483 = vunpack.c.l.b16 %v1403
        %v1484 = vunpack.c.h.b16 %v1403
        %v1485 = vunpack.c.l.b16 %v1404
        %v1486 = vunpack.c.h.b16 %v1404
        %v1487 = vunpack.c.l.b16 %v1405
        %v1488 = vunpack.c.h.b16 %v1405
        %v1489 = vunpack.c.l.b16 %v1406
        %v1490 = vunpack.c.h.b16 %v1406
        %v1491 = vunpack.c.l.b16 %v1407
        %v1492 = vunpack.c.h.b16 %v1407
        %v1493 = vunpack.c.l.b16 %v1408
        %v1494 = vunpack.c.h.b16 %v1408
        %v1495 = vunpack.c.l.b16 %v1409
        %v1496 = vunpack.c.h.b16 %v1409
        %v1497 = vunpack.c.l.b16 %v1410
        %v1498 = vunpack.c.h.b16 %v1410
        %v1499 = vunpack.c.l.b16 %v1411
        %v1500 = vunpack.c.h.b16 %v1411
        %v1501 = vunpack.c.l.b16 %v1412
        %v1502 = vunpack.c.h.b16 %v1412
        %v1503 = vunpack.c.l.b16 %v1413
        %v1504 = vunpack.c.h.b16 %v1413
        %v1505 = vunpack.c.l.b16 %v1414
        %v1506 = vunpack.c.h.b16 %v1414
        %v1507 = vunpack.c.l.b16 %v1415
        %v1508 = vunpack.c.h.b16 %v1415
        %v1509 = vunpack.c.l.b16 %v1416
        %v1510 = vunpack.c.h.b16 %v1416
        %v1511 = vunpack.c.l.b16 %v1417
        %v1512 = vunpack.c.h.b16 %v1417
        %v1513 = vunpack.c.l.b16 %v1418
        %v1514 = vunpack.c.h.b16 %v1418
        %v1515 = vunpack.c.l.b16 %v1419
        %v1516 = vunpack.c.h.b16 %v1419
        %v1517 = vunpack.c.l.b16 %v1420
        %v1518 = vunpack.c.h.b16 %v1420
        %v1519 = vunpack.c.l.b16 %v1421
        %v1520 = vunpack.c.h.b16 %v1421
        %v1521 = vunpack.c.l.b16 %v1422
        %v1522 = vunpack.c.h.b16 %v1422
        %v1523 = vunpack.c.l.b16 %v1423
        %v1524 = vunpack.c.h.b16 %v1423
        %v1525 = vunpack.c.l.b16 %v1424
        %v1526 = vunpack.c.h.b16 %v1424
        %v1527 = vunpack.c.l.b16 %v1425
        %v1528 = vunpack.c.h.b16 %v1425
        %v1529 = vunpack.c.l.b16 %v1426
        %v1530 = vunpack.c.h.b16 %v1426
        %v1531 = vunpack.c.l.b16 %v1427
        %v1532 = vunpack.c.h.b16 %v1427
        %v1533 = vunpack.c.l.b16 %v1428
        %v1534 = vunpack.c.h.b16 %v1428
        %v1535 = vpack.c.b16 %v1475, %v1471
        %v1536 = vpack.c.b16 %v1476, %v1472
        %v1537 = vpack.c.b16 %v1477, %v1473
        %v1538 = vpack.c.b16 %v1478, %v1474
        %v1539 = vpack.c.b16 %v1483, %v1479
        %v1540 = vpack.c.b16 %v1484, %v1480
        %v1541 = vpack.c.b16 %v1485, %v1481
        %v1542 = vpack.c.b16 %v1486, %v1482
        %v1543 = vpack.c.b16 %v1491, %v1487
        %v1544 = vpack.c.b16 %v1492, %v1488
        %v1545 = vpack.c.b16 %v1493, %v1489
        %v1546 = vpack.c.b16 %v1494, %v1490
        %v1547 = vpack.c.b16 %v1499, %v1495
        %v1548 = vpack.c.b16 %v1500, %v1496
        %v1549 = vpack.c.b16 %v1501, %v1497
        %v1550 = vpack.c.b16 %v1502, %v1498
        %v1551 = vpack.c.b16 %v1507, %v1503
        %v1552 = vpack.c.b16 %v1508, %v1504
        %v1553 = vpack.c.b16 %v1509, %v1505
        %v1554 = vpack.c.b16 %v1510, %v1506
        %v1555 = vpack.c.b16 %v1515, %v1511
        %v1556 = vpack.c.b16 %v1516, %v1512
        %v1557 = vpack.c.b16 %v1517, %v1513
        %v1558 = vpack.c.b16 %v1518, %v1514
        %v1559 = vpack.c.b16 %v1523, %v1519
        %v1560 = vpack.c.b16 %v1524, %v1520
        %v1561 = vpack.c.b16 %v1525, %v1521
        %v1562 = vpack.c.b16 %v1526, %v1522
        %v1563 = vpack.c.b16 %v1531, %v1527
        %v1564 = vpack.c.b16 %v1532, %v1528
        %v1565 = vpack.c.b16 %v1533, %v1529
        %v1566 = vpack.c.b16 %v1534, %v1530
        %1599 = vmatpush.bf16.msra.mxu0 %v1563
        %1600 = vmatpush.bf16.msra.mxu0 %v1559
        %1601 = vmatpush.bf16.msra.mxu0 %v1555
        %1602 = vmatpush.bf16.msra.mxu0 %v1551
        %1603 = vmatpush.bf16.msra.mxu0 %v1547
        %1604 = vmatpush.bf16.msra.mxu0 %v1543
        %1605 = vmatpush.bf16.msra.mxu0 %v1539
        %1606 = vmatpush.bf16.msra.mxu0 %v1535
        %1607 = vmatmul.bf16.gmra.mxu0 %v1396
        %v1608 = vpop.f32.mrf.mxu0
        %v1609 = vadd.f32 %v1431, %v1608
        %v1610 = vpop.f32.mrf.mxu0
        %1611 = vdwg.mxu0
        %1612 = vmatpush.bf16.msra.mxu0 %v1564
        %1613 = vmatpush.bf16.msra.mxu0 %v1560
        %1614 = vmatpush.bf16.msra.mxu0 %v1556
        %1615 = vmatpush.bf16.msra.mxu0 %v1552
        %1616 = vmatpush.bf16.msra.mxu0 %v1548
        %1617 = vmatpush.bf16.msra.mxu0 %v1544
        %1618 = vmatpush.bf16.msra.mxu0 %v1540
        %1619 = vmatpush.bf16.msra.mxu0 %v1536
        %1620 = vmatmul.bf16.gmra.mxu0 %v1396
        %v1621 = vpop.f32.mrf.mxu0
        %v1622 = vadd.f32 %v1432, %v1621
        %v1623 = vpop.f32.mrf.mxu0
        %1624 = vdwg.mxu0
        %1625 = vmatpush.bf16.msra.mxu0 %v1565
        %1626 = vmatpush.bf16.msra.mxu0 %v1561
        %1627 = vmatpush.bf16.msra.mxu0 %v1557
        %1628 = vmatpush.bf16.msra.mxu0 %v1553
        %1629 = vmatpush.bf16.msra.mxu0 %v1549
        %1630 = vmatpush.bf16.msra.mxu0 %v1545
        %1631 = vmatpush.bf16.msra.mxu0 %v1541
        %1632 = vmatpush.bf16.msra.mxu0 %v1537
        %1633 = vmatmul.bf16.gmra.mxu0 %v1396
        %v1634 = vpop.f32.mrf.mxu0
        %v1635 = vadd.f32 %v1433, %v1634
        %v1636 = vpop.f32.mrf.mxu0
        %1637 = vdwg.mxu0
        %1638 = vmatpush.bf16.msra.mxu0 %v1566
        %1639 = vmatpush.bf16.msra.mxu0 %v1562
        %1640 = vmatpush.bf16.msra.mxu0 %v1558
        %1641 = vmatpush.bf16.msra.mxu0 %v1554
        %1642 = vmatpush.bf16.msra.mxu0 %v1550
        %1643 = vmatpush.bf16.msra.mxu0 %v1546
        %1644 = vmatpush.bf16.msra.mxu0 %v1542
        %1645 = vmatpush.bf16.msra.mxu0 %v1538
        %1646 = vmatmul.bf16.gmra.mxu0 %v1396
        %v1647 = vpop.f32.mrf.mxu0
        %v1648 = vadd.f32 %v1434, %v1647
        %v1649 = vpop.f32.mrf.mxu0
        %1650 = vdwg.mxu0
        %v1651 = vmul.f32 %v1609, 0.5
        %v1652 = vmul.f32 %v1622, 0.5
        %v1653 = vmul.f32 %v1635, 0.5
        %v1654 = vmul.f32 %v1648, 0.5
        %v1655 = vmul.f32 %v1609, 0.044715
        %v1656 = vmul.f32 %v1622, 0.044715
        %v1657 = vmul.f32 %v1635, 0.044715
        %v1658 = vmul.f32 %v1648, 0.044715
        %v1659 = vmul.f32 %v1655, %v1609
        %v1660 = vmul.f32 %v1656, %v1622
        %v1661 = vmul.f32 %v1657, %v1635
        %v1662 = vmul.f32 %v1658, %v1648
        %v1663 = vmul.f32 %v1659, %v1609
        %v1664 = vmul.f32 %v1660, %v1622
        %v1665 = vmul.f32 %v1661, %v1635
        %v1666 = vmul.f32 %v1662, %v1648
        %v1667 = vadd.f32 %v1609, %v1663
        %v1668 = vadd.f32 %v1622, %v1664
        %v1669 = vadd.f32 %v1635, %v1665
        %v1670 = vadd.f32 %v1648, %v1666
        %v1671 = vmul.f32 %v1667, 0.7978846
        %v1672 = vmul.f32 %v1668, 0.7978846
        %v1673 = vmul.f32 %v1669, 0.7978846
        %v1674 = vmul.f32 %v1670, 0.7978846
        %v1675 = vtanh.pop %v1671
        %v1676 = vtanh.pop %v1672
        %v1677 = vtanh.pop %v1673
        %v1678 = vtanh.pop %v1674
        %v1679 = vadd.f32 %v1675, 1.0
        %v1680 = vadd.f32 %v1676, 1.0
        %v1681 = vadd.f32 %v1677, 1.0
        %v1682 = vadd.f32 %v1678, 1.0
        %v1683 = vmul.f32 %v1651, %v1679
        %v1684 = vmul.f32 %v1652, %v1680
        %v1685 = vmul.f32 %v1653, %v1681
        %v1686 = vmul.f32 %v1654, %v1682
        %v1687 = vpack.c.bf16 %v1683, %v1683
        %v1688 = vpack.c.bf16 %v1684, %v1684
        %v1689 = vpack.c.bf16 %v1685, %v1685
        %v1690 = vpack.c.bf16 %v1686, %v1686
        %v1691 = vld [vmem:[#allocation20] sm:$0xf]
        %v1692 = vld [vmem:[#allocation20 + $0x4] sm:$0xf]
        %v1693 = vld [vmem:[#allocation20 + $0x8] sm:$0xf]
        %v1694 = vld [vmem:[#allocation20 + $0xc] sm:$0xf]
        %v1695 = vld [vmem:[#allocation20 + $0x10] sm:$0xf]
        %v1696 = vld [vmem:[#allocation20 + $0x14] sm:$0xf]
        %v1697 = vld [vmem:[#allocation20 + $0x18] sm:$0xf]
        %v1698 = vld [vmem:[#allocation20 + $0x1c] sm:$0xf]
        %v1699 = vld [vmem:[#allocation20 + $0x20] sm:$0xf]
        %v1700 = vld [vmem:[#allocation20 + $0x24] sm:$0xf]
        %v1701 = vld [vmem:[#allocation20 + $0x28] sm:$0xf]
        %v1702 = vld [vmem:[#allocation20 + $0x2c] sm:$0xf]
        %v1703 = vld [vmem:[#allocation20 + $0x30] sm:$0xf]
        %v1704 = vld [vmem:[#allocation20 + $0x34] sm:$0xf]
        %v1705 = vld [vmem:[#allocation20 + $0x38] sm:$0xf]
        %v1706 = vld [vmem:[#allocation20 + $0x3c] sm:$0xf]
        %v1707 = vld [vmem:[#allocation20 + $0x40] sm:$0xf]
        %v1708 = vld [vmem:[#allocation20 + $0x44] sm:$0xf]
        %v1709 = vld [vmem:[#allocation20 + $0x48] sm:$0xf]
        %v1710 = vld [vmem:[#allocation20 + $0x4c] sm:$0xf]
        %v1711 = vld [vmem:[#allocation20 + $0x50] sm:$0xf]
        %v1712 = vld [vmem:[#allocation20 + $0x54] sm:$0xf]
        %v1713 = vld [vmem:[#allocation20 + $0x58] sm:$0xf]
        %v1714 = vld [vmem:[#allocation20 + $0x5c] sm:$0xf]
        %v1715 = vld [vmem:[#allocation20 + $0x60] sm:$0xf]
        %v1716 = vld [vmem:[#allocation20 + $0x64] sm:$0xf]
        %v1717 = vld [vmem:[#allocation20 + $0x68] sm:$0xf]
        %v1718 = vld [vmem:[#allocation20 + $0x6c] sm:$0xf]
        %v1719 = vld [vmem:[#allocation20 + $0x70] sm:$0xf]
        %v1720 = vld [vmem:[#allocation20 + $0x74] sm:$0xf]
        %v1721 = vld [vmem:[#allocation20 + $0x78] sm:$0xf]
        %v1722 = vld [vmem:[#allocation20 + $0x7c] sm:$0xf]
        %v1723 = vld [vmem:[#allocation20 + $0x80] sm:$0xf]
        %v1724 = vld [vmem:[#allocation20 + $0x84] sm:$0xf]
        %v1725 = vld [vmem:[#allocation20 + $0x88] sm:$0xf]
        %v1726 = vld [vmem:[#allocation20 + $0x8c] sm:$0xf]
        %v1727 = vld [vmem:[#allocation20 + $0x90] sm:$0xf]
        %v1728 = vld [vmem:[#allocation20 + $0x94] sm:$0xf]
        %v1729 = vld [vmem:[#allocation20 + $0x98] sm:$0xf]
        %v1730 = vld [vmem:[#allocation20 + $0x9c] sm:$0xf]
        %v1731 = vld [vmem:[#allocation20 + $0xa0] sm:$0xf]
        %v1732 = vld [vmem:[#allocation20 + $0xa4] sm:$0xf]
        %v1733 = vld [vmem:[#allocation20 + $0xa8] sm:$0xf]
        %v1734 = vld [vmem:[#allocation20 + $0xac] sm:$0xf]
        %v1735 = vld [vmem:[#allocation20 + $0xb0] sm:$0xf]
        %v1736 = vld [vmem:[#allocation20 + $0xb4] sm:$0xf]
        %v1737 = vld [vmem:[#allocation20 + $0xb8] sm:$0xf]
        %v1738 = vld [vmem:[#allocation20 + $0xbc] sm:$0xf]
        %v1739 = vld [vmem:[#allocation20 + $0xc0] sm:$0xf]
        %v1740 = vld [vmem:[#allocation20 + $0xc4] sm:$0xf]
        %v1741 = vld [vmem:[#allocation20 + $0xc8] sm:$0xf]
        %v1742 = vld [vmem:[#allocation20 + $0xcc] sm:$0xf]
        %v1743 = vld [vmem:[#allocation20 + $0xd0] sm:$0xf]
        %v1744 = vld [vmem:[#allocation20 + $0xd4] sm:$0xf]
        %v1745 = vld [vmem:[#allocation20 + $0xd8] sm:$0xf]
        %v1746 = vld [vmem:[#allocation20 + $0xdc] sm:$0xf]
        %v1747 = vld [vmem:[#allocation20 + $0xe0] sm:$0xf]
        %v1748 = vld [vmem:[#allocation20 + $0xe4] sm:$0xf]
        %v1749 = vld [vmem:[#allocation20 + $0xe8] sm:$0xf]
        %v1750 = vld [vmem:[#allocation20 + $0xec] sm:$0xf]
        %v1751 = vld [vmem:[#allocation20 + $0xf0] sm:$0xf]
        %v1752 = vld [vmem:[#allocation20 + $0xf4] sm:$0xf]
        %v1753 = vld [vmem:[#allocation20 + $0xf8] sm:$0xf]
        %v1754 = vld [vmem:[#allocation20 + $0xfc] sm:$0xf]
        %v1755 = vld [vmem:[%s12] sm:$0x1]
        %v1757 = vperm.slane %v1755, 0
        %v1823 = vunpack.c.l.b16 %v1691
        %v1824 = vunpack.c.l.b16 %v1692
        %v1825 = vunpack.c.l.b16 %v1693
        %v1826 = vunpack.c.l.b16 %v1694
        %v1827 = vunpack.c.l.b16 %v1695
        %v1828 = vunpack.c.l.b16 %v1696
        %v1829 = vunpack.c.l.b16 %v1697
        %v1830 = vunpack.c.l.b16 %v1698
        %v1831 = vunpack.c.l.b16 %v1699
        %v1832 = vunpack.c.l.b16 %v1700
        %v1833 = vunpack.c.l.b16 %v1701
        %v1834 = vunpack.c.l.b16 %v1702
        %v1835 = vunpack.c.l.b16 %v1703
        %v1836 = vunpack.c.l.b16 %v1704
        %v1837 = vunpack.c.l.b16 %v1705
        %v1838 = vunpack.c.l.b16 %v1706
        %v1839 = vunpack.c.l.b16 %v1707
        %v1840 = vunpack.c.l.b16 %v1708
        %v1841 = vunpack.c.l.b16 %v1709
        %v1842 = vunpack.c.l.b16 %v1710
        %v1843 = vunpack.c.l.b16 %v1711
        %v1844 = vunpack.c.l.b16 %v1712
        %v1845 = vunpack.c.l.b16 %v1713
        %v1846 = vunpack.c.l.b16 %v1714
        %v1847 = vunpack.c.l.b16 %v1715
        %v1848 = vunpack.c.l.b16 %v1716
        %v1849 = vunpack.c.l.b16 %v1717
        %v1850 = vunpack.c.l.b16 %v1718
        %v1851 = vunpack.c.l.b16 %v1719
        %v1852 = vunpack.c.l.b16 %v1720
        %v1853 = vunpack.c.l.b16 %v1721
        %v1854 = vunpack.c.l.b16 %v1722
        %v1855 = vunpack.c.l.b16 %v1723
        %v1856 = vunpack.c.l.b16 %v1724
        %v1857 = vunpack.c.l.b16 %v1725
        %v1858 = vunpack.c.l.b16 %v1726
        %v1859 = vunpack.c.l.b16 %v1727
        %v1860 = vunpack.c.l.b16 %v1728
        %v1861 = vunpack.c.l.b16 %v1729
        %v1862 = vunpack.c.l.b16 %v1730
        %v1863 = vunpack.c.l.b16 %v1731
        %v1864 = vunpack.c.l.b16 %v1732
        %v1865 = vunpack.c.l.b16 %v1733
        %v1866 = vunpack.c.l.b16 %v1734
        %v1867 = vunpack.c.l.b16 %v1735
        %v1868 = vunpack.c.l.b16 %v1736
        %v1869 = vunpack.c.l.b16 %v1737
        %v1870 = vunpack.c.l.b16 %v1738
        %v1871 = vunpack.c.l.b16 %v1739
        %v1872 = vunpack.c.l.b16 %v1740
        %v1873 = vunpack.c.l.b16 %v1741
        %v1874 = vunpack.c.l.b16 %v1742
        %v1875 = vunpack.c.l.b16 %v1743
        %v1876 = vunpack.c.l.b16 %v1744
        %v1877 = vunpack.c.l.b16 %v1745
        %v1878 = vunpack.c.l.b16 %v1746
        %v1879 = vunpack.c.l.b16 %v1747
        %v1880 = vunpack.c.l.b16 %v1748
        %v1881 = vunpack.c.l.b16 %v1749
        %v1882 = vunpack.c.l.b16 %v1750
        %v1883 = vunpack.c.l.b16 %v1751
        %v1884 = vunpack.c.l.b16 %v1752
        %v1885 = vunpack.c.l.b16 %v1753
        %v1886 = vunpack.c.l.b16 %v1754
        %v1887 = vpack.c.b16 %v1824, %v1823
        %v1888 = vpack.c.b16 %v1826, %v1825
        %v1889 = vpack.c.b16 %v1828, %v1827
        %v1890 = vpack.c.b16 %v1830, %v1829
        %v1891 = vpack.c.b16 %v1832, %v1831
        %v1892 = vpack.c.b16 %v1834, %v1833
        %v1893 = vpack.c.b16 %v1836, %v1835
        %v1894 = vpack.c.b16 %v1838, %v1837
        %v1895 = vpack.c.b16 %v1840, %v1839
        %v1896 = vpack.c.b16 %v1842, %v1841
        %v1897 = vpack.c.b16 %v1844, %v1843
        %v1898 = vpack.c.b16 %v1846, %v1845
        %v1899 = vpack.c.b16 %v1848, %v1847
        %v1900 = vpack.c.b16 %v1850, %v1849
        %v1901 = vpack.c.b16 %v1852, %v1851
        %v1902 = vpack.c.b16 %v1854, %v1853
        %v1903 = vpack.c.b16 %v1856, %v1855
        %v1904 = vpack.c.b16 %v1858, %v1857
        %v1905 = vpack.c.b16 %v1860, %v1859
        %v1906 = vpack.c.b16 %v1862, %v1861
        %v1907 = vpack.c.b16 %v1864, %v1863
        %v1908 = vpack.c.b16 %v1866, %v1865
        %v1909 = vpack.c.b16 %v1868, %v1867
        %v1910 = vpack.c.b16 %v1870, %v1869
        %v1911 = vpack.c.b16 %v1872, %v1871
        %v1912 = vpack.c.b16 %v1874, %v1873
        %v1913 = vpack.c.b16 %v1876, %v1875
        %v1914 = vpack.c.b16 %v1878, %v1877
        %v1915 = vpack.c.b16 %v1880, %v1879
        %v1916 = vpack.c.b16 %v1882, %v1881
        %v1917 = vpack.c.b16 %v1884, %v1883
        %v1918 = vpack.c.b16 %v1886, %v1885
        %1951 = vmatpush.bf16.msra.mxu0 %v1894
        %1952 = vmatpush.bf16.msra.mxu0 %v1893
        %1953 = vmatpush.bf16.msra.mxu0 %v1892
        %1954 = vmatpush.bf16.msra.mxu0 %v1891
        %1955 = vmatpush.bf16.msra.mxu0 %v1890
        %1956 = vmatpush.bf16.msra.mxu0 %v1889
        %1957 = vmatpush.bf16.msra.mxu0 %v1888
        %1958 = vmatpush.bf16.msra.mxu0 %v1887
        %1959 = vmatmul.bf16.gmra.mxu0 %v1687
        %v1960 = vpop.f32.mrf.mxu0
        %v1961 = vadd.f32 %v1757, %v1960
        %v1962 = vpop.f32.mrf.mxu0
        %1963 = vdwg.mxu0
        %1964 = vmatpush.bf16.msra.mxu0 %v1902
        %1965 = vmatpush.bf16.msra.mxu0 %v1901
        %1966 = vmatpush.bf16.msra.mxu0 %v1900
        %1967 = vmatpush.bf16.msra.mxu0 %v1899
        %1968 = vmatpush.bf16.msra.mxu0 %v1898
        %1969 = vmatpush.bf16.msra.mxu0 %v1897
        %1970 = vmatpush.bf16.msra.mxu0 %v1896
        %1971 = vmatpush.bf16.msra.mxu0 %v1895
        %1972 = vmatmul.bf16.gmra.mxu0 %v1688
        %v1973 = vpop.f32.mrf.mxu0
        %v1974 = vadd.f32 %v1961, %v1973
        %v1975 = vpop.f32.mrf.mxu0
        %1976 = vdwg.mxu0
        %1977 = vmatpush.bf16.msra.mxu0 %v1910
        %1978 = vmatpush.bf16.msra.mxu0 %v1909
        %1979 = vmatpush.bf16.msra.mxu0 %v1908
        %1980 = vmatpush.bf16.msra.mxu0 %v1907
        %1981 = vmatpush.bf16.msra.mxu0 %v1906
        %1982 = vmatpush.bf16.msra.mxu0 %v1905
        %1983 = vmatpush.bf16.msra.mxu0 %v1904
        %1984 = vmatpush.bf16.msra.mxu0 %v1903
        %1985 = vmatmul.bf16.gmra.mxu0 %v1689
        %v1986 = vpop.f32.mrf.mxu0
        %v1987 = vadd.f32 %v1974, %v1986
        %v1988 = vpop.f32.mrf.mxu0
        %1989 = vdwg.mxu0
        %1990 = vmatpush.bf16.msra.mxu0 %v1918
        %1991 = vmatpush.bf16.msra.mxu0 %v1917
        %1992 = vmatpush.bf16.msra.mxu0 %v1916
        %1993 = vmatpush.bf16.msra.mxu0 %v1915
        %1994 = vmatpush.bf16.msra.mxu0 %v1914
        %1995 = vmatpush.bf16.msra.mxu0 %v1913
        %1996 = vmatpush.bf16.msra.mxu0 %v1912
        %1997 = vmatpush.bf16.msra.mxu0 %v1911
        %1998 = vmatmul.bf16.gmra.mxu0 %v1690
        %v1999 = vpop.f32.mrf.mxu0
        %v2000 = vadd.f32 %v1987, %v1999
        %v2001 = vpop.f32.mrf.mxu0
        %2002 = vdwg.mxu0
        %v2003 = vadd.f32 %v1358, %v2000
        %2004 = vst [vmem:[%s613] sm:$0xff] %v2003
        %s2005 = sand.u32 %s335, 1
        %s2006 = scalar_lea.sflag [#allocation7], %s2005
        %s2007 = sand.u32 %s335, 1
        %s2008 = smul.addr %s2007, 8
        %s2009 = scalar_lea.vmem [#allocation22], %s2008
        // Predicated region
        $region117: #{tpu_custom_call.1} parent=71 // pred_check
          %p2010 = pneg %p345
        $region118: #{tpu_custom_call.1} parent=71 // pred_check_branch
          %2012 = sbr.rel (%p2010) target = $region120
        $region119: #{tpu_custom_call.1} parent=71 // pred_region
          %2014 = vsyncadd %s2006, 0
          %s2015 = smul.addr %s39, 2
          %s2016 = sadd.s32 %s40, %s2015
          %s2017 = smul.addr %s2016, 8
          %s2018 = scalar_lea.hbm %s13, %s2017
          %s2020 = sshll.u32 %s2009, 4
          %s2021 = int_to_ptr.vmem [resolvable:$true] %s2020
          %s2022 = sshll.u32 %s2018, 4
          %s2023 = int_to_ptr.hbm [resolvable:$true] %s2022
          %2025 = dma.vmem_to_hbm [thread:$0]  %s2021, 128, %s2023, %s2006
        $region120: #{tpu_custom_call.1} parent=71 // pred_fallthru
          _
      $region72: #{tpu_custom_call.1} parent=5 // pred_fallthru
        _
      %p2026 = scmp.le.s32.totalorder 2, %s30
      // Predicated region
      $region121: #{tpu_custom_call.1} parent=5 // pred_check
        %p2027 = pneg %p2026
      $region122: #{tpu_custom_call.1} parent=5 // pred_check_branch
        %2029 = sbr.rel (%p2027) target = $region124
      $region123: #{tpu_custom_call.1} parent=5 // pred_region
        %s2030 = ssub.s32 %s30, 2
        // Predicated region
        $region125: #{tpu_custom_call.1} parent=123 // pred_check
          %p2031 = pneg %p351
        $region126: #{tpu_custom_call.1} parent=123 // pred_check_branch
          %2033 = sbr.rel (%p2031) target = $region128
        $region127: #{tpu_custom_call.1} parent=123 // pred_region
          %s2034 = sand.u32 %s336, 1
          %s2035 = scalar_lea.sflag [#allocation7], %s2034
          %s2036 = sand.u32 %s336, 1
          %s2037 = smul.addr %s2036, 8
          %s2038 = scalar_lea.vmem [#allocation22], %s2037
          %2040 = dma.done %s2035, 128
        $region128: #{tpu_custom_call.1} parent=123 // pred_fallthru
          _
      $region124: #{tpu_custom_call.1} parent=5 // pred_fallthru
        _
    $region6: #{tpu_custom_call.1} parent=1 // loop_footer
      %s34 = sadd.s32 1, %s30
    $region7: #{tpu_custom_call.1} parent=1 // loop_footer_branch
      %29 = sbr.rel target = $region3
    $region8: #{tpu_custom_call.1} parent=1 // loop_exit
      _
    %2041 = vsyncpa [#allocation6], 1
    %s2042 = scalar_lea.sflag [#allocation6], 1
    %2043 = vsyncpa %s2042, 1
    %2044 = vsyncpa [#allocation9], 1
    %2045 = vsyncpa [#allocation12], 1
    %2046 = vsyncpa [#allocation15], 1
    %2047 = vsyncpa [#allocation18], 1
    %2048 = vsyncpa [#allocation21], 1
    %2049 = vsyncpa [#allocation7], 1
    %s2050 = scalar_lea.sflag [#allocation7], 1
    %2051 = vsyncpa %s2050, 1

</llo_original>
